<compile_context>
chip_gen: v6e
topology: v6e:2x2x1
jax: 0.10.0
libtpu: 0.0.40
codegen_flags: <defaults>
</compile_context>

<pallas_src>
import functools

import jax
import jax.numpy as jnp
from jax.experimental import pallas as pl
from jax.experimental.pallas import tpu as pltpu

LEAKY_SLOPE = 0.2   # deep_gcns BasicConv leaky_relu negative slope
BN_EPS = 1e-5

PRIMITIVES = ['none', 'skip_connect', 'conv_1x1', 'edge_conv', 'mr_conv',
              'gat', 'semi_gcn', 'gin', 'sage', 'res_sage']
NONE, SKIP, CONV = 0, 1, 2
# 14 edges for steps=4 (2+3+4+5): two real ops feeding every intermediate node.
NORMAL_SELECTED_IDXS = (CONV, CONV,                      # node 2: edges 0,1
                        SKIP, NONE, CONV,                # node 3: edges 2,3,4
                        CONV, NONE, NONE, SKIP,          # node 4: edges 5..8
                        CONV, NONE, NONE, NONE, CONV)    # node 5: edges 9..13


def _conv_edge_groups(selected, steps):
    """Group conv_1x1 edges by their source-state index.

    All edges in a group read the same activation, so their (C, C) weights are packed
    side-by-side (output dim) and evaluated as one wider MXU matmul.
    Returns tuple of (src_state_idx, (edge_idx, ...)) sorted by source state.
    """
    groups = {}
    offset = 0
    for i in range(steps):
        n = 2 + i
        for j in range(n):
            if selected[offset + j] == CONV:
                groups.setdefault(j, []).append(offset + j)
        offset += n
    return tuple((src, tuple(edges)) for src, edges in sorted(groups.items()))


def _full_spec(shape):
    """Full-array block (grid=(1,)): block_shape == array dims, always legal."""
    zeros = (0,) * len(shape)
    return pl.BlockSpec(tuple(shape), lambda i, _z=zeros: _z)


# ---------------------------------------------------------------------------
# The single fused Pallas kernel: stem + all cells + fusion + pool + classifier
# ---------------------------------------------------------------------------
def _network_kernel(*refs, B, N, C, steps, multiplier, num_cells, selected, groups):
    o_ref = refs[-1]
    it = iter(refs[:-1])
    x_ref = next(it)
    stem_w, stem_sh = next(it), next(it)

    def mm(h, w_ref, sh_ref):
        # 1x1 conv with BN scale folded into bf16 weights; shift added in f32.
        return jnp.dot(h.astype(jnp.bfloat16), w_ref[...],
                       preferred_element_type=jnp.float32) + sh_ref[...]

    def relu(v):
        return jnp.maximum(v, 0.0)

    def leaky(v):
        return jnp.where(v > 0.0, v, LEAKY_SLOPE * v)

    # --- stem: Conv + BN (no activation); s0 = s1 = stem(x) -------------------
    stem = mm(x_ref[...], stem_w, stem_sh)
    s0 = s1 = stem
    pre_layers = [stem]

    # --- NAS cells (fixed / decided architecture) ------------------------------
    for _ in range(num_cells):
        pre0_w, pre0_sh = next(it), next(it)
        pre1_w, pre1_sh = next(it), next(it)
        group_refs = [(next(it), next(it)) for _ in range(len(groups))]

        s0p = relu(mm(s0, pre0_w, pre0_sh))      # preprocess0: Conv+BN+ReLU
        s1p = relu(mm(s1, pre1_w, pre1_sh))      # preprocess1: Conv+BN+ReLU
        states = [s0p, s1p]
        edge_out = {}

        def emit_groups(src_idx, states=states, group_refs=group_refs,
                        edge_out=edge_out):
            # one fused matmul per (source state, all conv_1x1 edges reading it)
            for (g_src, g_edges), (w_ref, sh_ref) in zip(groups, group_refs):
                if g_src != src_idx:
                    continue
                y = relu(mm(states[src_idx], w_ref, sh_ref))
                if len(g_edges) == 1:
                    edge_out[g_edges[0]] = y
                else:
                    for k, e in enumerate(g_edges):
                        edge_out[e] = y[:, k * C:(k + 1) * C]

        emit_groups(0)
        emit_groups(1)
        offset = 0
        for _ in range(steps):
            n = len(states)
            acc = None
            for j in range(n):
                sel = selected[offset + j]
                if sel == NONE:                  # 'none' primitive -> edge skipped
                    continue
                o = states[j] if sel == SKIP else edge_out[offset + j]
                acc = o if acc is None else acc + o
            if acc is None:
                acc = jnp.zeros_like(states[0])
            states.append(acc)
            emit_groups(len(states) - 1)         # edges reading the new state
            offset += n

        cell_out = jnp.concatenate(states[-multiplier:], axis=1)
        s0, s1 = s1, cell_out
        pre_layers.append(cell_out)

    # --- fusion conv + global max/avg pool + classifier ------------------------
    fusion_w, fusion_sh = next(it), next(it)
    c1_w, c1_sh = next(it), next(it)
    c2_w, c2_sh = next(it), next(it)
    c3_w, c3_sh = next(it), next(it)

    fusion_in = jnp.concatenate(pre_layers, axis=1)            # (B*N, 3C + mult*C*L)
    y = leaky(mm(fusion_in, fusion_w, fusion_sh))              # (B*N, E)
    y3 = y.reshape(B, N, y.shape[1])                           # lane dim preserved
    pooled = jnp.concatenate([jnp.max(y3, axis=1),             # adaptive_max_pool2d(.,1)
                              jnp.mean(y3, axis=1)], axis=1)   # adaptive_avg_pool2d(.,1)
    h = leaky(mm(pooled, c1_w, c1_sh))                         # (B, 512)
    # TODO(synk): Dropout(p=0.5) treated as eval-mode identity.
    h = leaky(mm(h, c2_w, c2_sh))                              # (B, 256)
    o_ref[...] = mm(h, c3_w, c3_sh).astype(o_ref.dtype)        # (B, 128) padded logits


# ---------------------------------------------------------------------------
# Parameter construction (deterministic, synthetic; BN scale folded into weights)
# ---------------------------------------------------------------------------
def init_layer(key, cin, cout, *, bias=False, norm=True):
    kw, kb, kg, kt = jax.random.split(key, 4)
    w = jax.random.normal(kw, (cin, cout), jnp.float32) / jnp.sqrt(float(cin))
    b = (0.1 * jax.random.normal(kb, (cout,), jnp.float32)
         if bias else jnp.zeros((cout,), jnp.float32))
    if norm:
        gamma = 1.0 + 0.1 * jax.random.normal(kg, (cout,), jnp.float32)
        beta = 0.1 * jax.random.normal(kt, (cout,), jnp.float32)
        running_mean = jnp.zeros((cout,), jnp.float32)
        running_var = jnp.ones((cout,), jnp.float32)
        scale = gamma / jnp.sqrt(running_var + BN_EPS)
        shift = beta + (b - running_mean) * scale
    else:
        scale = jnp.ones((cout,), jnp.float32)
        shift = b
    # Fold BN scale into the weights (bf16 MXU operand); keep only the shift add in-kernel.
    w_folded = (w * scale[None, :]).astype(jnp.bfloat16)
    return {"w": w_folded, "shift": shift.reshape(1, cout).astype(jnp.float32)}


def init_params(key, *, C, num_classes, num_cells, steps, multiplier,
                stem_multiplier, in_channels, emb_dims, switch_on):
    keys = iter(jax.random.split(key, 512))
    p = {}
    C_curr = stem_multiplier * C
    p["stem"] = init_layer(next(keys), in_channels, C_curr, bias=False, norm=True)
    # `preprocess` parameters retained for fidelity; its output only feeds graph-conv
    # primitives, which the fixed architecture never selects (unused in forward).
    p["preprocess"] = init_layer(next(keys), in_channels, C, bias=False, norm=True)

    groups = _conv_edge_groups(NORMAL_SELECTED_IDXS, steps)
    C_pp, C_p = C_curr, C_curr
    cells = []
    for _ in range(num_cells):
        cp = {"pre0": init_layer(next(keys), C_pp, C, bias=False, norm=True),
              "pre1": init_layer(next(keys), C_p, C, bias=False, norm=True)}
        edge_layers = {}
        for e, sel in enumerate(NORMAL_SELECTED_IDXS):
            if sel == CONV:
                edge_layers[e] = init_layer(next(keys), C, C, bias=False, norm=True)
        # Pack edges reading the same source state into one wider (C, len*C) matmul.
        gl = []
        for _, edges in groups:
            gl.append({"w": jnp.concatenate([edge_layers[e]["w"] for e in edges], axis=1),
                       "shift": jnp.concatenate([edge_layers[e]["shift"] for e in edges],
                                                axis=1)})
        cp["groups"] = gl
        cells.append(cp)
        C_pp, C_p = C_p, multiplier * C
    p["cells"] = cells

    fusion_in = stem_multiplier * C + C * multiplier * num_cells
    p["fusion"] = init_layer(next(keys), fusion_in, emb_dims, bias=False, norm=True)
    p["cls1"] = init_layer(next(keys), emb_dims * 2, 512, bias=True, norm=True)
    p["cls2"] = init_layer(next(keys), 512, 256, bias=True, norm=True)
    cls3 = init_layer(next(keys), 256, num_classes, bias=True, norm=False)
    # Pad final classifier Cout to a multiple of 128 -> lane-dense unmasked store.
    pad = pl.cdiv(num_classes, 128) * 128
    w3 = jnp.zeros((256, pad), jnp.bfloat16).at[:, :num_classes].set(cls3["w"])
    sh3 = jnp.zeros((1, pad), jnp.float32).at[:, :num_classes].set(cls3["shift"])
    p["cls3"] = {"w": w3, "shift": sh3}
    # Architecture parameters kept for fidelity (only used for undecided edges).
    n_edges = sum(2 + i for i in range(steps))
    p["alphas"] = [0.001 * jax.random.normal(next(keys), (switch_on,), jnp.float32)
                   for _ in range(n_edges)]
    return p


# ---------------------------------------------------------------------------
# Forward pass: ONE fused pallas_call for the whole network
# ---------------------------------------------------------------------------
def network_forward(params, x, *, C, steps, multiplier, num_cells, num_classes):
    B, Cin, N, _ = x.shape
    xf = jnp.transpose(x[..., 0], (0, 2, 1)).reshape(B * N, Cin)   # (B*N, in_channels)

    # TODO(synk): x_0 = preprocess(x), the dilated-kNN edge_index and softmax(alphas) are
    # only consumed by graph-conv primitives / undecided edges, never selected by the
    # fixed architecture; their dead computation is elided.

    groups = _conv_edge_groups(NORMAL_SELECTED_IDXS, steps)
    args = [xf, params["stem"]["w"], params["stem"]["shift"]]
    for cp in params["cells"]:
        args += [cp["pre0"]["w"], cp["pre0"]["shift"],
                 cp["pre1"]["w"], cp["pre1"]["shift"]]
        for g in cp["groups"]:
            args += [g["w"], g["shift"]]
    args += [params["fusion"]["w"], params["fusion"]["shift"],
             params["cls1"]["w"], params["cls1"]["shift"],
             params["cls2"]["w"], params["cls2"]["shift"],
             params["cls3"]["w"], params["cls3"]["shift"]]

    Op = params["cls3"]["w"].shape[1]                              # 128-padded logits
    kernel = functools.partial(_network_kernel, B=B, N=N, C=C, steps=steps,
                               multiplier=multiplier, num_cells=num_cells,
                               selected=NORMAL_SELECTED_IDXS, groups=groups)

    logits_padded = pl.pallas_call(
        kernel,
        out_shape=jax.ShapeDtypeStruct((B, Op), jnp.float32),
        grid=(1,),
        in_specs=[_full_spec(a.shape) for a in args],
        out_specs=_full_spec((B, Op)),
        compiler_params=pltpu.CompilerParams(dimension_semantics=("arbitrary",)),
    )(*args)
    return logits_padded[:, :num_classes]                          # (B, num_classes)


# ---------------------------------------------------------------------------
if __name__ == "__main__":
    # Small but consistent shapes: batch=2, in_channels=3, 32 points.
    B, IN_CH, N = 2, 3, 32
    C, NUM_CLASSES, NUM_CELLS = 8, 10, 2
    STEPS, MULT, STEM_MULT, EMB, K, SWITCH_ON = 4, 4, 3, 64, 9, 8

    key = jax.random.PRNGKey(0)
    pkey, xkey = jax.random.split(key)
    params = init_params(pkey, C=C, num_classes=NUM_CLASSES, num_cells=NUM_CELLS,
                         steps=STEPS, multiplier=MULT, stem_multiplier=STEM_MULT,
                         in_channels=IN_CH, emb_dims=EMB, switch_on=SWITCH_ON)

    # PyTorch NCHW point-cloud input: (B, in_channels, num_points, 1)
    x = jax.random.normal(xkey, (B, IN_CH, N, 1), jnp.float32)

    fwd = jax.jit(functools.partial(network_forward, C=C, steps=STEPS,
                                    multiplier=MULT, num_cells=NUM_CELLS,
                                    num_classes=NUM_CLASSES))
    logits = fwd(params, x)
    jax.block_until_ready(logits)
    assert logits.shape == (B, NUM_CLASSES)
    assert bool(jnp.all(jnp.isfinite(logits)))
    print("KERNEL_OK")
</pallas_src>

<mosaic_0001>
module attributes {stable_mosaic.version = 11 : i64} {
  func.func @_network_kernel(%arg0: i32, %arg1: memref<64x3xf32, #tpu.memory_space<vmem>>, %arg2: memref<3x24xbf16, #tpu.memory_space<vmem>>, %arg3: memref<1x24xf32, #tpu.memory_space<vmem>>, %arg4: memref<24x8xbf16, #tpu.memory_space<vmem>>, %arg5: memref<1x8xf32, #tpu.memory_space<vmem>>, %arg6: memref<24x8xbf16, #tpu.memory_space<vmem>>, %arg7: memref<1x8xf32, #tpu.memory_space<vmem>>, %arg8: memref<8x24xbf16, #tpu.memory_space<vmem>>, %arg9: memref<1x24xf32, #tpu.memory_space<vmem>>, %arg10: memref<8x8xbf16, #tpu.memory_space<vmem>>, %arg11: memref<1x8xf32, #tpu.memory_space<vmem>>, %arg12: memref<8x8xbf16, #tpu.memory_space<vmem>>, %arg13: memref<1x8xf32, #tpu.memory_space<vmem>>, %arg14: memref<8x8xbf16, #tpu.memory_space<vmem>>, %arg15: memref<1x8xf32, #tpu.memory_space<vmem>>, %arg16: memref<24x8xbf16, #tpu.memory_space<vmem>>, %arg17: memref<1x8xf32, #tpu.memory_space<vmem>>, %arg18: memref<32x8xbf16, #tpu.memory_space<vmem>>, %arg19: memref<1x8xf32, #tpu.memory_space<vmem>>, %arg20: memref<8x24xbf16, #tpu.memory_space<vmem>>, %arg21: memref<1x24xf32, #tpu.memory_space<vmem>>, %arg22: memref<8x8xbf16, #tpu.memory_space<vmem>>, %arg23: memref<1x8xf32, #tpu.memory_space<vmem>>, %arg24: memref<8x8xbf16, #tpu.memory_space<vmem>>, %arg25: memref<1x8xf32, #tpu.memory_space<vmem>>, %arg26: memref<8x8xbf16, #tpu.memory_space<vmem>>, %arg27: memref<1x8xf32, #tpu.memory_space<vmem>>, %arg28: memref<88x64xbf16, #tpu.memory_space<vmem>>, %arg29: memref<1x64xf32, #tpu.memory_space<vmem>>, %arg30: memref<128x512xbf16, #tpu.memory_space<vmem>>, %arg31: memref<1x512xf32, #tpu.memory_space<vmem>>, %arg32: memref<512x256xbf16, #tpu.memory_space<vmem>>, %arg33: memref<1x256xf32, #tpu.memory_space<vmem>>, %arg34: memref<256x128xbf16, #tpu.memory_space<vmem>>, %arg35: memref<1x128xf32, #tpu.memory_space<vmem>>, %arg36: memref<2x128xf32, #tpu.memory_space<vmem>>) attributes {dimension_semantics = [#tpu.dimension_semantics<arbitrary>], iteration_bounds = array<i64: 1>, scalar_prefetch = 0 : i64, scratch_operands = 0 : i64, tpu.core_type = #tpu.core_type<tc>, window_params = [{pipeline_mode = #tpu.pipeline_mode<synchronous>, transform_indices = @transform_0, window_bounds = array<i64: 64, 3>}, {pipeline_mode = #tpu.pipeline_mode<synchronous>, transform_indices = @transform_1, window_bounds = array<i64: 3, 24>}, {pipeline_mode = #tpu.pipeline_mode<synchronous>, transform_indices = @transform_2, window_bounds = array<i64: 1, 24>}, {pipeline_mode = #tpu.pipeline_mode<synchronous>, transform_indices = @transform_3, window_bounds = array<i64: 24, 8>}, {pipeline_mode = #tpu.pipeline_mode<synchronous>, transform_indices = @transform_4, window_bounds = array<i64: 1, 8>}, {pipeline_mode = #tpu.pipeline_mode<synchronous>, transform_indices = @transform_5, window_bounds = array<i64: 24, 8>}, {pipeline_mode = #tpu.pipeline_mode<synchronous>, transform_indices = @transform_6, window_bounds = array<i64: 1, 8>}, {pipeline_mode = #tpu.pipeline_mode<synchronous>, transform_indices = @transform_7, window_bounds = array<i64: 8, 24>}, {pipeline_mode = #tpu.pipeline_mode<synchronous>, transform_indices = @transform_8, window_bounds = array<i64: 1, 24>}, {pipeline_mode = #tpu.pipeline_mode<synchronous>, transform_indices = @transform_9, window_bounds = array<i64: 8, 8>}, {pipeline_mode = #tpu.pipeline_mode<synchronous>, transform_indices = @transform_10, window_bounds = array<i64: 1, 8>}, {pipeline_mode = #tpu.pipeline_mode<synchronous>, transform_indices = @transform_11, window_bounds = array<i64: 8, 8>}, {pipeline_mode = #tpu.pipeline_mode<synchronous>, transform_indices = @transform_12, window_bounds = array<i64: 1, 8>}, {pipeline_mode = #tpu.pipeline_mode<synchronous>, transform_indices = @transform_13, window_bounds = array<i64: 8, 8>}, {pipeline_mode = #tpu.pipeline_mode<synchronous>, transform_indices = @transform_14, window_bounds = array<i64: 1, 8>}, {pipeline_mode = #tpu.pipeline_mode<synchronous>, transform_indices = @transform_15, window_bounds = array<i64: 24, 8>}, {pipeline_mode = #tpu.pipeline_mode<synchronous>, transform_indices = @transform_16, window_bounds = array<i64: 1, 8>}, {pipeline_mode = #tpu.pipeline_mode<synchronous>, transform_indices = @transform_17, window_bounds = array<i64: 32, 8>}, {pipeline_mode = #tpu.pipeline_mode<synchronous>, transform_indices = @transform_18, window_bounds = array<i64: 1, 8>}, {pipeline_mode = #tpu.pipeline_mode<synchronous>, transform_indices = @transform_19, window_bounds = array<i64: 8, 24>}, {pipeline_mode = #tpu.pipeline_mode<synchronous>, transform_indices = @transform_20, window_bounds = array<i64: 1, 24>}, {pipeline_mode = #tpu.pipeline_mode<synchronous>, transform_indices = @transform_21, window_bounds = array<i64: 8, 8>}, {pipeline_mode = #tpu.pipeline_mode<synchronous>, transform_indices = @transform_22, window_bounds = array<i64: 1, 8>}, {pipeline_mode = #tpu.pipeline_mode<synchronous>, transform_indices = @transform_23, window_bounds = array<i64: 8, 8>}, {pipeline_mode = #tpu.pipeline_mode<synchronous>, transform_indices = @transform_24, window_bounds = array<i64: 1, 8>}, {pipeline_mode = #tpu.pipeline_mode<synchronous>, transform_indices = @transform_25, window_bounds = array<i64: 8, 8>}, {pipeline_mode = #tpu.pipeline_mode<synchronous>, transform_indices = @transform_26, window_bounds = array<i64: 1, 8>}, {pipeline_mode = #tpu.pipeline_mode<synchronous>, transform_indices = @transform_27, window_bounds = array<i64: 88, 64>}, {pipeline_mode = #tpu.pipeline_mode<synchronous>, transform_indices = @transform_28, window_bounds = array<i64: 1, 64>}, {pipeline_mode = #tpu.pipeline_mode<synchronous>, transform_indices = @transform_29, window_bounds = array<i64: 128, 512>}, {pipeline_mode = #tpu.pipeline_mode<synchronous>, transform_indices = @transform_30, window_bounds = array<i64: 1, 512>}, {pipeline_mode = #tpu.pipeline_mode<synchronous>, transform_indices = @transform_31, window_bounds = array<i64: 512, 256>}, {pipeline_mode = #tpu.pipeline_mode<synchronous>, transform_indices = @transform_32, window_bounds = array<i64: 1, 256>}, {pipeline_mode = #tpu.pipeline_mode<synchronous>, transform_indices = @transform_33, window_bounds = array<i64: 256, 128>}, {pipeline_mode = #tpu.pipeline_mode<synchronous>, transform_indices = @transform_34, window_bounds = array<i64: 1, 128>}, {pipeline_mode = #tpu.pipeline_mode<synchronous>, transform_indices = @transform_35, window_bounds = array<i64: 2, 128>}]} {
    %c0 = arith.constant 0 : index
    %c0_0 = arith.constant 0 : index
    %0 = vector.load %arg1[%c0, %c0_0] : memref<64x3xf32, #tpu.memory_space<vmem>>, vector<64x3xf32>
    %1 = arith.truncf %0 : vector<64x3xf32> to vector<64x3xbf16>
    %c0_1 = arith.constant 0 : index
    %c0_2 = arith.constant 0 : index
    %2 = vector.load %arg2[%c0_1, %c0_2] : memref<3x24xbf16, #tpu.memory_space<vmem>>, vector<3x24xbf16>
    %cst = arith.constant dense<0.000000e+00> : vector<64x24xf32>
    %3 = tpu.matmul %1, %2, %cst {dimension_numbers = #tpu.dot_dimension_numbers<[1], [0], [0], [1], [0, 0, 1, 1], [], []>} : vector<64x3xbf16>, vector<3x24xbf16>, vector<64x24xf32> -> vector<64x24xf32>
    %c0_3 = arith.constant 0 : index
    %c0_4 = arith.constant 0 : index
    %4 = vector.load %arg3[%c0_3, %c0_4] : memref<1x24xf32, #tpu.memory_space<vmem>>, vector<1x24xf32>
    %5 = vector.broadcast %4 : vector<1x24xf32> to vector<64x24xf32>
    %6 = arith.addf %3, %5 : vector<64x24xf32>
    %7 = arith.truncf %6 : vector<64x24xf32> to vector<64x24xbf16>
    %c0_5 = arith.constant 0 : index
    %c0_6 = arith.constant 0 : index
    %8 = vector.load %arg4[%c0_5, %c0_6] : memref<24x8xbf16, #tpu.memory_space<vmem>>, vector<24x8xbf16>
    %cst_7 = arith.constant dense<0.000000e+00> : vector<64x8xf32>
    %9 = tpu.matmul %7, %8, %cst_7 {dimension_numbers = #tpu.dot_dimension_numbers<[1], [0], [0], [1], [0, 0, 1, 1], [], []>} : vector<64x24xbf16>, vector<24x8xbf16>, vector<64x8xf32> -> vector<64x8xf32>
    %c0_8 = arith.constant 0 : index
    %c0_9 = arith.constant 0 : index
    %10 = vector.load %arg5[%c0_8, %c0_9] : memref<1x8xf32, #tpu.memory_space<vmem>>, vector<1x8xf32>
    %11 = vector.broadcast %10 : vector<1x8xf32> to vector<64x8xf32>
    %12 = arith.addf %9, %11 : vector<64x8xf32>
    %cst_10 = arith.constant 0.000000e+00 : f32
    %13 = vector.broadcast %cst_10 : f32 to vector<64x8xf32>
    %14 = arith.maximumf %12, %13 : vector<64x8xf32>
    %15 = arith.truncf %6 : vector<64x24xf32> to vector<64x24xbf16>
    %c0_11 = arith.constant 0 : index
    %c0_12 = arith.constant 0 : index
    %16 = vector.load %arg6[%c0_11, %c0_12] : memref<24x8xbf16, #tpu.memory_space<vmem>>, vector<24x8xbf16>
    %cst_13 = arith.constant dense<0.000000e+00> : vector<64x8xf32>
    %17 = tpu.matmul %15, %16, %cst_13 {dimension_numbers = #tpu.dot_dimension_numbers<[1], [0], [0], [1], [0, 0, 1, 1], [], []>} : vector<64x24xbf16>, vector<24x8xbf16>, vector<64x8xf32> -> vector<64x8xf32>
    %c0_14 = arith.constant 0 : index
    %c0_15 = arith.constant 0 : index
    %18 = vector.load %arg7[%c0_14, %c0_15] : memref<1x8xf32, #tpu.memory_space<vmem>>, vector<1x8xf32>
    %19 = vector.broadcast %18 : vector<1x8xf32> to vector<64x8xf32>
    %20 = arith.addf %17, %19 : vector<64x8xf32>
    %cst_16 = arith.constant 0.000000e+00 : f32
    %21 = vector.broadcast %cst_16 : f32 to vector<64x8xf32>
    %22 = arith.maximumf %20, %21 : vector<64x8xf32>
    %23 = arith.truncf %14 : vector<64x8xf32> to vector<64x8xbf16>
    %c0_17 = arith.constant 0 : index
    %c0_18 = arith.constant 0 : index
    %24 = vector.load %arg8[%c0_17, %c0_18] : memref<8x24xbf16, #tpu.memory_space<vmem>>, vector<8x24xbf16>
    %cst_19 = arith.constant dense<0.000000e+00> : vector<64x24xf32>
    %25 = tpu.matmul %23, %24, %cst_19 {dimension_numbers = #tpu.dot_dimension_numbers<[1], [0], [0], [1], [0, 0, 1, 1], [], []>} : vector<64x8xbf16>, vector<8x24xbf16>, vector<64x24xf32> -> vector<64x24xf32>
    %c0_20 = arith.constant 0 : index
    %c0_21 = arith.constant 0 : index
    %26 = vector.load %arg9[%c0_20, %c0_21] : memref<1x24xf32, #tpu.memory_space<vmem>>, vector<1x24xf32>
    %27 = vector.broadcast %26 : vector<1x24xf32> to vector<64x24xf32>
    %28 = arith.addf %25, %27 : vector<64x24xf32>
    %cst_22 = arith.constant 0.000000e+00 : f32
    %29 = vector.broadcast %cst_22 : f32 to vector<64x24xf32>
    %30 = arith.maximumf %28, %29 : vector<64x24xf32>
    %31 = vector.extract_strided_slice %30 {offsets = [0, 0], sizes = [64, 8], strides = [1, 1]} : vector<64x24xf32> to vector<64x8xf32>
    %32 = vector.extract_strided_slice %30 {offsets = [0, 8], sizes = [64, 8], strides = [1, 1]} : vector<64x24xf32> to vector<64x8xf32>
    %33 = vector.extract_strided_slice %30 {offsets = [0, 16], sizes = [64, 8], strides = [1, 1]} : vector<64x24xf32> to vector<64x8xf32>
    %34 = arith.truncf %22 : vector<64x8xf32> to vector<64x8xbf16>
    %c0_23 = arith.constant 0 : index
    %c0_24 = arith.constant 0 : index
    %35 = vector.load %arg10[%c0_23, %c0_24] : memref<8x8xbf16, #tpu.memory_space<vmem>>, vector<8x8xbf16>
    %cst_25 = arith.constant dense<0.000000e+00> : vector<64x8xf32>
    %36 = tpu.matmul %34, %35, %cst_25 {dimension_numbers = #tpu.dot_dimension_numbers<[1], [0], [0], [1], [0, 0, 1, 1], [], []>} : vector<64x8xbf16>, vector<8x8xbf16>, vector<64x8xf32> -> vector<64x8xf32>
    %c0_26 = arith.constant 0 : index
    %c0_27 = arith.constant 0 : index
    %37 = vector.load %arg11[%c0_26, %c0_27] : memref<1x8xf32, #tpu.memory_space<vmem>>, vector<1x8xf32>
    %38 = vector.broadcast %37 : vector<1x8xf32> to vector<64x8xf32>
    %39 = arith.addf %36, %38 : vector<64x8xf32>
    %cst_28 = arith.constant 0.000000e+00 : f32
    %40 = vector.broadcast %cst_28 : f32 to vector<64x8xf32>
    %41 = arith.maximumf %39, %40 : vector<64x8xf32>
    %42 = arith.addf %31, %41 : vector<64x8xf32>
    %43 = arith.truncf %42 : vector<64x8xf32> to vector<64x8xbf16>
    %c0_29 = arith.constant 0 : index
    %c0_30 = arith.constant 0 : index
    %44 = vector.load %arg12[%c0_29, %c0_30] : memref<8x8xbf16, #tpu.memory_space<vmem>>, vector<8x8xbf16>
    %cst_31 = arith.constant dense<0.000000e+00> : vector<64x8xf32>
    %45 = tpu.matmul %43, %44, %cst_31 {dimension_numbers = #tpu.dot_dimension_numbers<[1], [0], [0], [1], [0, 0, 1, 1], [], []>} : vector<64x8xbf16>, vector<8x8xbf16>, vector<64x8xf32> -> vector<64x8xf32>
    %c0_32 = arith.constant 0 : index
    %c0_33 = arith.constant 0 : index
    %46 = vector.load %arg13[%c0_32, %c0_33] : memref<1x8xf32, #tpu.memory_space<vmem>>, vector<1x8xf32>
    %47 = vector.broadcast %46 : vector<1x8xf32> to vector<64x8xf32>
    %48 = arith.addf %45, %47 : vector<64x8xf32>
    %cst_34 = arith.constant 0.000000e+00 : f32
    %49 = vector.broadcast %cst_34 : f32 to vector<64x8xf32>
    %50 = arith.maximumf %48, %49 : vector<64x8xf32>
    %51 = arith.addf %14, %50 : vector<64x8xf32>
    %52 = arith.addf %32, %51 : vector<64x8xf32>
    %53 = arith.truncf %52 : vector<64x8xf32> to vector<64x8xbf16>
    %c0_35 = arith.constant 0 : index
    %c0_36 = arith.constant 0 : index
    %54 = vector.load %arg14[%c0_35, %c0_36] : memref<8x8xbf16, #tpu.memory_space<vmem>>, vector<8x8xbf16>
    %cst_37 = arith.constant dense<0.000000e+00> : vector<64x8xf32>
    %55 = tpu.matmul %53, %54, %cst_37 {dimension_numbers = #tpu.dot_dimension_numbers<[1], [0], [0], [1], [0, 0, 1, 1], [], []>} : vector<64x8xbf16>, vector<8x8xbf16>, vector<64x8xf32> -> vector<64x8xf32>
    %c0_38 = arith.constant 0 : index
    %c0_39 = arith.constant 0 : index
    %56 = vector.load %arg15[%c0_38, %c0_39] : memref<1x8xf32, #tpu.memory_space<vmem>>, vector<1x8xf32>
    %57 = vector.broadcast %56 : vector<1x8xf32> to vector<64x8xf32>
    %58 = arith.addf %55, %57 : vector<64x8xf32>
    %cst_40 = arith.constant 0.000000e+00 : f32
    %59 = vector.broadcast %cst_40 : f32 to vector<64x8xf32>
    %60 = arith.maximumf %58, %59 : vector<64x8xf32>
    %61 = arith.addf %33, %60 : vector<64x8xf32>
    %62 = tpu.concatenate %42, %51, %52, %61 in 1 : vector<64x8xf32>, vector<64x8xf32>, vector<64x8xf32>, vector<64x8xf32> -> vector<64x32xf32>
    %63 = arith.truncf %6 : vector<64x24xf32> to vector<64x24xbf16>
    %c0_41 = arith.constant 0 : index
    %c0_42 = arith.constant 0 : index
    %64 = vector.load %arg16[%c0_41, %c0_42] : memref<24x8xbf16, #tpu.memory_space<vmem>>, vector<24x8xbf16>
    %cst_43 = arith.constant dense<0.000000e+00> : vector<64x8xf32>
    %65 = tpu.matmul %63, %64, %cst_43 {dimension_numbers = #tpu.dot_dimension_numbers<[1], [0], [0], [1], [0, 0, 1, 1], [], []>} : vector<64x24xbf16>, vector<24x8xbf16>, vector<64x8xf32> -> vector<64x8xf32>
    %c0_44 = arith.constant 0 : index
    %c0_45 = arith.constant 0 : index
    %66 = vector.load %arg17[%c0_44, %c0_45] : memref<1x8xf32, #tpu.memory_space<vmem>>, vector<1x8xf32>
    %67 = vector.broadcast %66 : vector<1x8xf32> to vector<64x8xf32>
    %68 = arith.addf %65, %67 : vector<64x8xf32>
    %cst_46 = arith.constant 0.000000e+00 : f32
    %69 = vector.broadcast %cst_46 : f32 to vector<64x8xf32>
    %70 = arith.maximumf %68, %69 : vector<64x8xf32>
    %71 = arith.truncf %62 : vector<64x32xf32> to vector<64x32xbf16>
    %c0_47 = arith.constant 0 : index
    %c0_48 = arith.constant 0 : index
    %72 = vector.load %arg18[%c0_47, %c0_48] : memref<32x8xbf16, #tpu.memory_space<vmem>>, vector<32x8xbf16>
    %cst_49 = arith.constant dense<0.000000e+00> : vector<64x8xf32>
    %73 = tpu.matmul %71, %72, %cst_49 {dimension_numbers = #tpu.dot_dimension_numbers<[1], [0], [0], [1], [0, 0, 1, 1], [], []>} : vector<64x32xbf16>, vector<32x8xbf16>, vector<64x8xf32> -> vector<64x8xf32>
    %c0_50 = arith.constant 0 : index
    %c0_51 = arith.constant 0 : index
    %74 = vector.load %arg19[%c0_50, %c0_51] : memref<1x8xf32, #tpu.memory_space<vmem>>, vector<1x8xf32>
    %75 = vector.broadcast %74 : vector<1x8xf32> to vector<64x8xf32>
    %76 = arith.addf %73, %75 : vector<64x8xf32>
    %cst_52 = arith.constant 0.000000e+00 : f32
    %77 = vector.broadcast %cst_52 : f32 to vector<64x8xf32>
    %78 = arith.maximumf %76, %77 : vector<64x8xf32>
    %79 = arith.truncf %70 : vector<64x8xf32> to vector<64x8xbf16>
    %c0_53 = arith.constant 0 : index
    %c0_54 = arith.constant 0 : index
    %80 = vector.load %arg20[%c0_53, %c0_54] : memref<8x24xbf16, #tpu.memory_space<vmem>>, vector<8x24xbf16>
    %cst_55 = arith.constant dense<0.000000e+00> : vector<64x24xf32>
    %81 = tpu.matmul %79, %80, %cst_55 {dimension_numbers = #tpu.dot_dimension_numbers<[1], [0], [0], [1], [0, 0, 1, 1], [], []>} : vector<64x8xbf16>, vector<8x24xbf16>, vector<64x24xf32> -> vector<64x24xf32>
    %c0_56 = arith.constant 0 : index
    %c0_57 = arith.constant 0 : index
    %82 = vector.load %arg21[%c0_56, %c0_57] : memref<1x24xf32, #tpu.memory_space<vmem>>, vector<1x24xf32>
    %83 = vector.broadcast %82 : vector<1x24xf32> to vector<64x24xf32>
    %84 = arith.addf %81, %83 : vector<64x24xf32>
    %cst_58 = arith.constant 0.000000e+00 : f32
    %85 = vector.broadcast %cst_58 : f32 to vector<64x24xf32>
    %86 = arith.maximumf %84, %85 : vector<64x24xf32>
    %87 = vector.extract_strided_slice %86 {offsets = [0, 0], sizes = [64, 8], strides = [1, 1]} : vector<64x24xf32> to vector<64x8xf32>
    %88 = vector.extract_strided_slice %86 {offsets = [0, 8], sizes = [64, 8], strides = [1, 1]} : vector<64x24xf32> to vector<64x8xf32>
    %89 = vector.extract_strided_slice %86 {offsets = [0, 16], sizes = [64, 8], strides = [1, 1]} : vector<64x24xf32> to vector<64x8xf32>
    %90 = arith.truncf %78 : vector<64x8xf32> to vector<64x8xbf16>
    %c0_59 = arith.constant 0 : index
    %c0_60 = arith.constant 0 : index
    %91 = vector.load %arg22[%c0_59, %c0_60] : memref<8x8xbf16, #tpu.memory_space<vmem>>, vector<8x8xbf16>
    %cst_61 = arith.constant dense<0.000000e+00> : vector<64x8xf32>
    %92 = tpu.matmul %90, %91, %cst_61 {dimension_numbers = #tpu.dot_dimension_numbers<[1], [0], [0], [1], [0, 0, 1, 1], [], []>} : vector<64x8xbf16>, vector<8x8xbf16>, vector<64x8xf32> -> vector<64x8xf32>
    %c0_62 = arith.constant 0 : index
    %c0_63 = arith.constant 0 : index
    %93 = vector.load %arg23[%c0_62, %c0_63] : memref<1x8xf32, #tpu.memory_space<vmem>>, vector<1x8xf32>
    %94 = vector.broadcast %93 : vector<1x8xf32> to vector<64x8xf32>
    %95 = arith.addf %92, %94 : vector<64x8xf32>
    %cst_64 = arith.constant 0.000000e+00 : f32
    %96 = vector.broadcast %cst_64 : f32 to vector<64x8xf32>
    %97 = arith.maximumf %95, %96 : vector<64x8xf32>
    %98 = arith.addf %87, %97 : vector<64x8xf32>
    %99 = arith.truncf %98 : vector<64x8xf32> to vector<64x8xbf16>
    %c0_65 = arith.constant 0 : index
    %c0_66 = arith.constant 0 : index
    %100 = vector.load %arg24[%c0_65, %c0_66] : memref<8x8xbf16, #tpu.memory_space<vmem>>, vector<8x8xbf16>
    %cst_67 = arith.constant dense<0.000000e+00> : vector<64x8xf32>
    %101 = tpu.matmul %99, %100, %cst_67 {dimension_numbers = #tpu.dot_dimension_numbers<[1], [0], [0], [1], [0, 0, 1, 1], [], []>} : vector<64x8xbf16>, vector<8x8xbf16>, vector<64x8xf32> -> vector<64x8xf32>
    %c0_68 = arith.constant 0 : index
    %c0_69 = arith.constant 0 : index
    %102 = vector.load %arg25[%c0_68, %c0_69] : memref<1x8xf32, #tpu.memory_space<vmem>>, vector<1x8xf32>
    %103 = vector.broadcast %102 : vector<1x8xf32> to vector<64x8xf32>
    %104 = arith.addf %101, %103 : vector<64x8xf32>
    %cst_70 = arith.constant 0.000000e+00 : f32
    %105 = vector.broadcast %cst_70 : f32 to vector<64x8xf32>
    %106 = arith.maximumf %104, %105 : vector<64x8xf32>
    %107 = arith.addf %70, %106 : vector<64x8xf32>
    %108 = arith.addf %88, %107 : vector<64x8xf32>
    %109 = arith.truncf %108 : vector<64x8xf32> to vector<64x8xbf16>
    %c0_71 = arith.constant 0 : index
    %c0_72 = arith.constant 0 : index
    %110 = vector.load %arg26[%c0_71, %c0_72] : memref<8x8xbf16, #tpu.memory_space<vmem>>, vector<8x8xbf16>
    %cst_73 = arith.constant dense<0.000000e+00> : vector<64x8xf32>
    %111 = tpu.matmul %109, %110, %cst_73 {dimension_numbers = #tpu.dot_dimension_numbers<[1], [0], [0], [1], [0, 0, 1, 1], [], []>} : vector<64x8xbf16>, vector<8x8xbf16>, vector<64x8xf32> -> vector<64x8xf32>
    %c0_74 = arith.constant 0 : index
    %c0_75 = arith.constant 0 : index
    %112 = vector.load %arg27[%c0_74, %c0_75] : memref<1x8xf32, #tpu.memory_space<vmem>>, vector<1x8xf32>
    %113 = vector.broadcast %112 : vector<1x8xf32> to vector<64x8xf32>
    %114 = arith.addf %111, %113 : vector<64x8xf32>
    %cst_76 = arith.constant 0.000000e+00 : f32
    %115 = vector.broadcast %cst_76 : f32 to vector<64x8xf32>
    %116 = arith.maximumf %114, %115 : vector<64x8xf32>
    %117 = arith.addf %89, %116 : vector<64x8xf32>
    %118 = tpu.concatenate %98, %107, %108, %117 in 1 : vector<64x8xf32>, vector<64x8xf32>, vector<64x8xf32>, vector<64x8xf32> -> vector<64x32xf32>
    %119 = tpu.concatenate %6, %62, %118 in 1 : vector<64x24xf32>, vector<64x32xf32>, vector<64x32xf32> -> vector<64x88xf32>
    %120 = arith.truncf %119 : vector<64x88xf32> to vector<64x88xbf16>
    %c0_77 = arith.constant 0 : index
    %c0_78 = arith.constant 0 : index
    %121 = vector.load %arg28[%c0_77, %c0_78] : memref<88x64xbf16, #tpu.memory_space<vmem>>, vector<88x64xbf16>
    %cst_79 = arith.constant dense<0.000000e+00> : vector<64x64xf32>
    %122 = tpu.matmul %120, %121, %cst_79 {dimension_numbers = #tpu.dot_dimension_numbers<[1], [0], [0], [1], [0, 0, 1, 1], [], []>} : vector<64x88xbf16>, vector<88x64xbf16>, vector<64x64xf32> -> vector<64x64xf32>
    %c0_80 = arith.constant 0 : index
    %c0_81 = arith.constant 0 : index
    %123 = vector.load %arg29[%c0_80, %c0_81] : memref<1x64xf32, #tpu.memory_space<vmem>>, vector<1x64xf32>
    %124 = vector.broadcast %123 : vector<1x64xf32> to vector<64x64xf32>
    %125 = arith.addf %122, %124 : vector<64x64xf32>
    %cst_82 = arith.constant 0.000000e+00 : f32
    %126 = vector.broadcast %cst_82 : f32 to vector<64x64xf32>
    %127 = arith.cmpf ogt, %125, %126 : vector<64x64xf32>
    %cst_83 = arith.constant 2.000000e-01 : f32
    %128 = vector.broadcast %cst_83 : f32 to vector<64x64xf32>
    %129 = arith.mulf %128, %125 : vector<64x64xf32>
    %130 = arith.select %127, %125, %129 : vector<64x64xi1>, vector<64x64xf32>
    %131 = vector.shape_cast %130 : vector<64x64xf32> to vector<2x32x64xf32>
    %cst_84 = arith.constant dense<0xFF800000> : vector<2x64xf32>
    %132 = vector.multi_reduction <maximumf>, %131, %cst_84 [1] : vector<2x32x64xf32> to vector<2x64xf32>
    %cst_85 = arith.constant dense<0.000000e+00> : vector<2x64xf32>
    %133 = vector.multi_reduction <add>, %131, %cst_85 [1] : vector<2x32x64xf32> to vector<2x64xf32>
    %cst_86 = arith.constant 3.200000e+01 : f32
    %134 = vector.broadcast %cst_86 : f32 to vector<2x64xf32>
    %135 = arith.divf %133, %134 : vector<2x64xf32>
    %136 = tpu.concatenate %132, %135 in 1 : vector<2x64xf32>, vector<2x64xf32> -> vector<2x128xf32>
    %137 = arith.truncf %136 : vector<2x128xf32> to vector<2x128xbf16>
    %c0_87 = arith.constant 0 : index
    %c0_88 = arith.constant 0 : index
    %138 = vector.load %arg30[%c0_87, %c0_88] : memref<128x512xbf16, #tpu.memory_space<vmem>>, vector<128x512xbf16>
    %cst_89 = arith.constant dense<0.000000e+00> : vector<2x512xf32>
    %139 = tpu.matmul %137, %138, %cst_89 {dimension_numbers = #tpu.dot_dimension_numbers<[1], [0], [0], [1], [0, 0, 1, 1], [], []>} : vector<2x128xbf16>, vector<128x512xbf16>, vector<2x512xf32> -> vector<2x512xf32>
    %c0_90 = arith.constant 0 : index
    %c0_91 = arith.constant 0 : index
    %140 = vector.load %arg31[%c0_90, %c0_91] : memref<1x512xf32, #tpu.memory_space<vmem>>, vector<1x512xf32>
    %141 = vector.broadcast %140 : vector<1x512xf32> to vector<2x512xf32>
    %142 = arith.addf %139, %141 : vector<2x512xf32>
    %cst_92 = arith.constant 0.000000e+00 : f32
    %143 = vector.broadcast %cst_92 : f32 to vector<2x512xf32>
    %144 = arith.cmpf ogt, %142, %143 : vector<2x512xf32>
    %cst_93 = arith.constant 2.000000e-01 : f32
    %145 = vector.broadcast %cst_93 : f32 to vector<2x512xf32>
    %146 = arith.mulf %145, %142 : vector<2x512xf32>
    %147 = arith.select %144, %142, %146 : vector<2x512xi1>, vector<2x512xf32>
    %148 = arith.truncf %147 : vector<2x512xf32> to vector<2x512xbf16>
    %c0_94 = arith.constant 0 : index
    %c0_95 = arith.constant 0 : index
    %149 = vector.load %arg32[%c0_94, %c0_95] : memref<512x256xbf16, #tpu.memory_space<vmem>>, vector<512x256xbf16>
    %cst_96 = arith.constant dense<0.000000e+00> : vector<2x256xf32>
    %150 = tpu.matmul %148, %149, %cst_96 {dimension_numbers = #tpu.dot_dimension_numbers<[1], [0], [0], [1], [0, 0, 1, 1], [], []>} : vector<2x512xbf16>, vector<512x256xbf16>, vector<2x256xf32> -> vector<2x256xf32>
    %c0_97 = arith.constant 0 : index
    %c0_98 = arith.constant 0 : index
    %151 = vector.load %arg33[%c0_97, %c0_98] : memref<1x256xf32, #tpu.memory_space<vmem>>, vector<1x256xf32>
    %152 = vector.broadcast %151 : vector<1x256xf32> to vector<2x256xf32>
    %153 = arith.addf %150, %152 : vector<2x256xf32>
    %cst_99 = arith.constant 0.000000e+00 : f32
    %154 = vector.broadcast %cst_99 : f32 to vector<2x256xf32>
    %155 = arith.cmpf ogt, %153, %154 : vector<2x256xf32>
    %cst_100 = arith.constant 2.000000e-01 : f32
    %156 = vector.broadcast %cst_100 : f32 to vector<2x256xf32>
    %157 = arith.mulf %156, %153 : vector<2x256xf32>
    %158 = arith.select %155, %153, %157 : vector<2x256xi1>, vector<2x256xf32>
    %159 = arith.truncf %158 : vector<2x256xf32> to vector<2x256xbf16>
    %c0_101 = arith.constant 0 : index
    %c0_102 = arith.constant 0 : index
    %160 = vector.load %arg34[%c0_101, %c0_102] : memref<256x128xbf16, #tpu.memory_space<vmem>>, vector<256x128xbf16>
    %cst_103 = arith.constant dense<0.000000e+00> : vector<2x128xf32>
    %161 = tpu.matmul %159, %160, %cst_103 {dimension_numbers = #tpu.dot_dimension_numbers<[1], [0], [0], [1], [0, 0, 1, 1], [], []>} : vector<2x256xbf16>, vector<256x128xbf16>, vector<2x128xf32> -> vector<2x128xf32>
    %c0_104 = arith.constant 0 : index
    %c0_105 = arith.constant 0 : index
    %162 = vector.load %arg35[%c0_104, %c0_105] : memref<1x128xf32, #tpu.memory_space<vmem>>, vector<1x128xf32>
    %163 = vector.broadcast %162 : vector<1x128xf32> to vector<2x128xf32>
    %164 = arith.addf %161, %163 : vector<2x128xf32>
    %c0_106 = arith.constant 0 : index
    %c0_107 = arith.constant 0 : index
    %165 = vector.load %arg36[%c0_106, %c0_107] : memref<2x128xf32, #tpu.memory_space<vmem>>, vector<2x128xf32>
    tpu.vector_store %arg36[%c0_106, %c0_107], %164 {strides = array<i32>} : memref<2x128xf32, #tpu.memory_space<vmem>>, vector<2x128xf32>,
    return
  }
  func.func @transform_0(%arg0: i32) -> (i32, i32) {
    %c0_i32 = arith.constant 0 : i32
    %c0_i32_0 = arith.constant 0 : i32
    %c0_i32_1 = arith.constant 0 : i32
    return %c0_i32, %c0_i32_0 : i32, i32
  }
  func.func @transform_1(%arg0: i32) -> (i32, i32) {
    %c0_i32 = arith.constant 0 : i32
    %c0_i32_0 = arith.constant 0 : i32
    %c0_i32_1 = arith.constant 0 : i32
    return %c0_i32, %c0_i32_0 : i32, i32
  }
  func.func @transform_2(%arg0: i32) -> (i32, i32) {
    %c0_i32 = arith.constant 0 : i32
    %c0_i32_0 = arith.constant 0 : i32
    %c0_i32_1 = arith.constant 0 : i32
    return %c0_i32, %c0_i32_0 : i32, i32
  }
  func.func @transform_3(%arg0: i32) -> (i32, i32) {
    %c0_i32 = arith.constant 0 : i32
    %c0_i32_0 = arith.constant 0 : i32
    %c0_i32_1 = arith.constant 0 : i32
    return %c0_i32, %c0_i32_0 : i32, i32
  }
  func.func @transform_4(%arg0: i32) -> (i32, i32) {
    %c0_i32 = arith.constant 0 : i32
    %c0_i32_0 = arith.constant 0 : i32
    %c0_i32_1 = arith.constant 0 : i32
    return %c0_i32, %c0_i32_0 : i32, i32
  }
  func.func @transform_5(%arg0: i32) -> (i32, i32) {
    %c0_i32 = arith.constant 0 : i32
    %c0_i32_0 = arith.constant 0 : i32
    %c0_i32_1 = arith.constant 0 : i32
    return %c0_i32, %c0_i32_0 : i32, i32
  }
  func.func @transform_6(%arg0: i32) -> (i32, i32) {
    %c0_i32 = arith.constant 0 : i32
    %c0_i32_0 = arith.constant 0 : i32
    %c0_i32_1 = arith.constant 0 : i32
    return %c0_i32, %c0_i32_0 : i32, i32
  }
  func.func @transform_7(%arg0: i32) -> (i32, i32) {
    %c0_i32 = arith.constant 0 : i32
    %c0_i32_0 = arith.constant 0 : i32
    %c0_i32_1 = arith.constant 0 : i32
    return %c0_i32, %c0_i32_0 : i32, i32
  }
  func.func @transform_8(%arg0: i32) -> (i32, i32) {
    %c0_i32 = arith.constant 0 : i32
    %c0_i32_0 = arith.constant 0 : i32
    %c0_i32_1 = arith.constant 0 : i32
    return %c0_i32, %c0_i32_0 : i32, i32
  }
  func.func @transform_9(%arg0: i32) -> (i32, i32) {
    %c0_i32 = arith.constant 0 : i32
    %c0_i32_0 = arith.constant 0 : i32
    %c0_i32_1 = arith.constant 0 : i32
    return %c0_i32, %c0_i32_0 : i32, i32
  }
  func.func @transform_10(%arg0: i32) -> (i32, i32) {
    %c0_i32 = arith.constant 0 : i32
    %c0_i32_0 = arith.constant 0 : i32
    %c0_i32_1 = arith.constant 0 : i32
    return %c0_i32, %c0_i32_0 : i32, i32
  }
  func.func @transform_11(%arg0: i32) -> (i32, i32) {
    %c0_i32 = arith.constant 0 : i32
    %c0_i32_0 = arith.constant 0 : i32
    %c0_i32_1 = arith.constant 0 : i32
    return %c0_i32, %c0_i32_0 : i32, i32
  }
  func.func @transform_12(%arg0: i32) -> (i32, i32) {
    %c0_i32 = arith.constant 0 : i32
    %c0_i32_0 = arith.constant 0 : i32
    %c0_i32_1 = arith.constant 0 : i32
    return %c0_i32, %c0_i32_0 : i32, i32
  }
  func.func @transform_13(%arg0: i32) -> (i32, i32) {
    %c0_i32 = arith.constant 0 : i32
    %c0_i32_0 = arith.constant 0 : i32
    %c0_i32_1 = arith.constant 0 : i32
    return %c0_i32, %c0_i32_0 : i32, i32
  }
  func.func @transform_14(%arg0: i32) -> (i32, i32) {
    %c0_i32 = arith.constant 0 : i32
    %c0_i32_0 = arith.constant 0 : i32
    %c0_i32_1 = arith.constant 0 : i32
    return %c0_i32, %c0_i32_0 : i32, i32
  }
  func.func @transform_15(%arg0: i32) -> (i32, i32) {
    %c0_i32 = arith.constant 0 : i32
    %c0_i32_0 = arith.constant 0 : i32
    %c0_i32_1 = arith.constant 0 : i32
    return %c0_i32, %c0_i32_0 : i32, i32
  }
  func.func @transform_16(%arg0: i32) -> (i32, i32) {
    %c0_i32 = arith.constant 0 : i32
    %c0_i32_0 = arith.constant 0 : i32
    %c0_i32_1 = arith.constant 0 : i32
    return %c0_i32, %c0_i32_0 : i32, i32
  }
  func.func @transform_17(%arg0: i32) -> (i32, i32) {
    %c0_i32 = arith.constant 0 : i32
    %c0_i32_0 = arith.constant 0 : i32
    %c0_i32_1 = arith.constant 0 : i32
    return %c0_i32, %c0_i32_0 : i32, i32
  }
  func.func @transform_18(%arg0: i32) -> (i32, i32) {
    %c0_i32 = arith.constant 0 : i32
    %c0_i32_0 = arith.constant 0 : i32
    %c0_i32_1 = arith.constant 0 : i32
    return %c0_i32, %c0_i32_0 : i32, i32
  }
  func.func @transform_19(%arg0: i32) -> (i32, i32) {
    %c0_i32 = arith.constant 0 : i32
    %c0_i32_0 = arith.constant 0 : i32
    %c0_i32_1 = arith.constant 0 : i32
    return %c0_i32, %c0_i32_0 : i32, i32
  }
  func.func @transform_20(%arg0: i32) -> (i32, i32) {
    %c0_i32 = arith.constant 0 : i32
    %c0_i32_0 = arith.constant 0 : i32
    %c0_i32_1 = arith.constant 0 : i32
    return %c0_i32, %c0_i32_0 : i32, i32
  }
  func.func @transform_21(%arg0: i32) -> (i32, i32) {
    %c0_i32 = arith.constant 0 : i32
    %c0_i32_0 = arith.constant 0 : i32
    %c0_i32_1 = arith.constant 0 : i32
    return %c0_i32, %c0_i32_0 : i32, i32
  }
  func.func @transform_22(%arg0: i32) -> (i32, i32) {
    %c0_i32 = arith.constant 0 : i32
    %c0_i32_0 = arith.constant 0 : i32
    %c0_i32_1 = arith.constant 0 : i32
    return %c0_i32, %c0_i32_0 : i32, i32
  }
  func.func @transform_23(%arg0: i32) -> (i32, i32) {
    %c0_i32 = arith.constant 0 : i32
    %c0_i32_0 = arith.constant 0 : i32
    %c0_i32_1 = arith.constant 0 : i32
    return %c0_i32, %c0_i32_0 : i32, i32
  }
  func.func @transform_24(%arg0: i32) -> (i32, i32) {
    %c0_i32 = arith.constant 0 : i32
    %c0_i32_0 = arith.constant 0 : i32
    %c0_i32_1 = arith.constant 0 : i32
    return %c0_i32, %c0_i32_0 : i32, i32
  }
  func.func @transform_25(%arg0: i32) -> (i32, i32) {
    %c0_i32 = arith.constant 0 : i32
    %c0_i32_0 = arith.constant 0 : i32
    %c0_i32_1 = arith.constant 0 : i32
    return %c0_i32, %c0_i32_0 : i32, i32
  }
  func.func @transform_26(%arg0: i32) -> (i32, i32) {
    %c0_i32 = arith.constant 0 : i32
    %c0_i32_0 = arith.constant 0 : i32
    %c0_i32_1 = arith.constant 0 : i32
    return %c0_i32, %c0_i32_0 : i32, i32
  }
  func.func @transform_27(%arg0: i32) -> (i32, i32) {
    %c0_i32 = arith.constant 0 : i32
    %c0_i32_0 = arith.constant 0 : i32
    %c0_i32_1 = arith.constant 0 : i32
    return %c0_i32, %c0_i32_0 : i32, i32
  }
  func.func @transform_28(%arg0: i32) -> (i32, i32) {
    %c0_i32 = arith.constant 0 : i32
    %c0_i32_0 = arith.constant 0 : i32
    %c0_i32_1 = arith.constant 0 : i32
    return %c0_i32, %c0_i32_0 : i32, i32
  }
  func.func @transform_29(%arg0: i32) -> (i32, i32) {
    %c0_i32 = arith.constant 0 : i32
    %c0_i32_0 = arith.constant 0 : i32
    %c0_i32_1 = arith.constant 0 : i32
    return %c0_i32, %c0_i32_0 : i32, i32
  }
  func.func @transform_30(%arg0: i32) -> (i32, i32) {
    %c0_i32 = arith.constant 0 : i32
    %c0_i32_0 = arith.constant 0 : i32
    %c0_i32_1 = arith.constant 0 : i32
    return %c0_i32, %c0_i32_0 : i32, i32
  }
  func.func @transform_31(%arg0: i32) -> (i32, i32) {
    %c0_i32 = arith.constant 0 : i32
    %c0_i32_0 = arith.constant 0 : i32
    %c0_i32_1 = arith.constant 0 : i32
    return %c0_i32, %c0_i32_0 : i32, i32
  }
  func.func @transform_32(%arg0: i32) -> (i32, i32) {
    %c0_i32 = arith.constant 0 : i32
    %c0_i32_0 = arith.constant 0 : i32
    %c0_i32_1 = arith.constant 0 : i32
    return %c0_i32, %c0_i32_0 : i32, i32
  }
  func.func @transform_33(%arg0: i32) -> (i32, i32) {
    %c0_i32 = arith.constant 0 : i32
    %c0_i32_0 = arith.constant 0 : i32
    %c0_i32_1 = arith.constant 0 : i32
    return %c0_i32, %c0_i32_0 : i32, i32
  }
  func.func @transform_34(%arg0: i32) -> (i32, i32) {
    %c0_i32 = arith.constant 0 : i32
    %c0_i32_0 = arith.constant 0 : i32
    %c0_i32_1 = arith.constant 0 : i32
    return %c0_i32, %c0_i32_0 : i32, i32
  }
  func.func @transform_35(%arg0: i32) -> (i32, i32) {
    %c0_i32 = arith.constant 0 : i32
    %c0_i32_0 = arith.constant 0 : i32
    %c0_i32_1 = arith.constant 0 : i32
    return %c0_i32, %c0_i32_0 : i32, i32
  }
}

</mosaic_0001>

<llo_original>
// kernel: network_forward.1
$region0: #{network_forward.1}
  #allocation0 [shape = 'u32[]', space=smem, size = 0x4, offset = 0x4, fixed_abs, tag = 'smem constant byte address 0x4 - core index']
  #allocation1 [shape = 'u32[144,128]{1,0:T(1,128)}', space=vmem, size = 0x12000, scoped, tag = 'internal scratch']
  %s0 = inlined_call_operand.smem [shape: u32[36], index: -1, kind: input, shape index: {}]
  %s1 = sld [smem:[%s0]]
  %s2 = scalar_lea.smem %s0, 1
  %s3 = sld [smem:[%s2]]
  %s4 = scalar_lea.smem %s0, 2
  %s5 = sld [smem:[%s4]]
  %s6 = scalar_lea.smem %s0, 3
  %s7 = sld [smem:[%s6]]
  %s8 = scalar_lea.smem %s0, 4
  %s9 = sld [smem:[%s8]]
  %s10 = scalar_lea.smem %s0, 5
  %s11 = sld [smem:[%s10]]
  %s12 = scalar_lea.smem %s0, 6
  %s13 = sld [smem:[%s12]]
  %s14 = scalar_lea.smem %s0, 7
  %s15 = sld [smem:[%s14]]
  %s16 = scalar_lea.smem %s0, 8
  %s17 = sld [smem:[%s16]]
  %s18 = scalar_lea.smem %s0, 9
  %s19 = sld [smem:[%s18]]
  %s20 = scalar_lea.smem %s0, 10
  %s21 = sld [smem:[%s20]]
  %s22 = scalar_lea.smem %s0, 11
  %s23 = sld [smem:[%s22]]
  %s24 = scalar_lea.smem %s0, 12
  %s25 = sld [smem:[%s24]]
  %s26 = scalar_lea.smem %s0, 13
  %s27 = sld [smem:[%s26]]
  %s28 = scalar_lea.smem %s0, 14
  %s29 = sld [smem:[%s28]]
  %s30 = scalar_lea.smem %s0, 15
  %s31 = sld [smem:[%s30]]
  %s32 = scalar_lea.smem %s0, 16
  %s33 = sld [smem:[%s32]]
  %s34 = scalar_lea.smem %s0, 17
  %s35 = sld [smem:[%s34]]
  %s36 = scalar_lea.smem %s0, 18
  %s37 = sld [smem:[%s36]]
  %s38 = scalar_lea.smem %s0, 19
  %s39 = sld [smem:[%s38]]
  %s40 = scalar_lea.smem %s0, 20
  %s41 = sld [smem:[%s40]]
  %s42 = scalar_lea.smem %s0, 21
  %s43 = sld [smem:[%s42]]
  %s44 = scalar_lea.smem %s0, 22
  %s45 = sld [smem:[%s44]]
  %s46 = scalar_lea.smem %s0, 23
  %s47 = sld [smem:[%s46]]
  %s48 = scalar_lea.smem %s0, 24
  %s49 = sld [smem:[%s48]]
  %s50 = scalar_lea.smem %s0, 25
  %s51 = sld [smem:[%s50]]
  %s52 = scalar_lea.smem %s0, 26
  %s53 = sld [smem:[%s52]]
  %s54 = scalar_lea.smem %s0, 27
  %s55 = sld [smem:[%s54]]
  %s56 = scalar_lea.smem %s0, 28
  %s57 = sld [smem:[%s56]]
  %s58 = scalar_lea.smem %s0, 29
  %s59 = sld [smem:[%s58]]
  %s60 = scalar_lea.smem %s0, 30
  %s61 = sld [smem:[%s60]]
  %s62 = scalar_lea.smem %s0, 31
  %s63 = sld [smem:[%s62]]
  %s64 = scalar_lea.smem %s0, 32
  %s65 = sld [smem:[%s64]]
  %s66 = scalar_lea.smem %s0, 33
  %s67 = sld [smem:[%s66]]
  %s68 = scalar_lea.smem %s0, 34
  %s69 = sld [smem:[%s68]]
  %s70 = scalar_lea.smem %s0, 35
  %s71 = sld [smem:[%s70]]
  %s72 = sld [smem:[#allocation0]]
  $region158: #{network_forward.1} parent=0
    _
  %s74 = ssub.s32 1, %s72
  %s75 = scalar_select 0, %s74, %s72
  $region1: #{network_forward.1} parent=0
    #allocation2 [shape = 'u8[131072]{0}', space=vmem, size = 0x20000, scoped, tag = 'input window, operand 29, single buffered']
    #allocation3 [shape = 's32[1]{0}', space=sflag, size = 0x4, scoped, tag = 'scoped memory for network_forward.1']
    #allocation4 [shape = 's32[1]{0}', space=sflag, size = 0x4, scoped, tag = 'scoped memory for network_forward.1']
    #allocation5 [shape = 'u8[262144]{0}', space=vmem, size = 0x40000, scoped, tag = 'input window, operand 31, single buffered']
    #allocation6 [shape = 's32[1]{0}', space=sflag, size = 0x4, scoped, tag = 'scoped memory for network_forward.1']
    #allocation7 [shape = 'u8[1024]{0}', space=vmem, size = 0x400, scoped, tag = 'output window, operand 0, single buffered']
    %76 = vsyncpa [#allocation3], 0
    %77 = vsyncpa [#allocation6], 0
    %78 = vsyncpa [#allocation4], 0
    // Predicated region
    $region2: #{network_forward.1} parent=1 // pred_check
      _
    $region3: #{network_forward.1} parent=1 // pred_check_branch
      %80 = sbr.rel (0) target = $region5
    $region4: #{network_forward.1} parent=1 // pred_region
      _
    $region5: #{network_forward.1} parent=1 // pred_fallthru
      _
    // Predicated region
    $region6: #{network_forward.1} parent=1 // pred_check
      _
    $region7: #{network_forward.1} parent=1 // pred_check_branch
      %82 = sbr.rel (0) target = $region9
    $region8: #{network_forward.1} parent=1 // pred_region
      _
    $region9: #{network_forward.1} parent=1 // pred_fallthru
      _
    // Predicated region
    $region10: #{network_forward.1} parent=1 // pred_check
      _
    $region11: #{network_forward.1} parent=1 // pred_check_branch
      %84 = sbr.rel (0) target = $region13
    $region12: #{network_forward.1} parent=1 // pred_region
      _
    $region13: #{network_forward.1} parent=1 // pred_fallthru
      _
    // Predicated region
    $region14: #{network_forward.1} parent=1 // pred_check
      _
    $region15: #{network_forward.1} parent=1 // pred_check_branch
      %86 = sbr.rel (0) target = $region17
    $region16: #{network_forward.1} parent=1 // pred_region
      _
    $region17: #{network_forward.1} parent=1 // pred_fallthru
      _
    // Predicated region
    $region18: #{network_forward.1} parent=1 // pred_check
      _
    $region19: #{network_forward.1} parent=1 // pred_check_branch
      %88 = sbr.rel (0) target = $region21
    $region20: #{network_forward.1} parent=1 // pred_region
      _
    $region21: #{network_forward.1} parent=1 // pred_fallthru
      _
    // Predicated region
    $region22: #{network_forward.1} parent=1 // pred_check
      _
    $region23: #{network_forward.1} parent=1 // pred_check_branch
      %90 = sbr.rel (0) target = $region25
    $region24: #{network_forward.1} parent=1 // pred_region
      _
    $region25: #{network_forward.1} parent=1 // pred_fallthru
      _
    // Predicated region
    $region26: #{network_forward.1} parent=1 // pred_check
      _
    $region27: #{network_forward.1} parent=1 // pred_check_branch
      %92 = sbr.rel (0) target = $region29
    $region28: #{network_forward.1} parent=1 // pred_region
      _
    $region29: #{network_forward.1} parent=1 // pred_fallthru
      _
    // Predicated region
    $region30: #{network_forward.1} parent=1 // pred_check
      _
    $region31: #{network_forward.1} parent=1 // pred_check_branch
      %94 = sbr.rel (0) target = $region33
    $region32: #{network_forward.1} parent=1 // pred_region
      _
    $region33: #{network_forward.1} parent=1 // pred_fallthru
      _
    // Predicated region
    $region34: #{network_forward.1} parent=1 // pred_check
      _
    $region35: #{network_forward.1} parent=1 // pred_check_branch
      %96 = sbr.rel (0) target = $region37
    $region36: #{network_forward.1} parent=1 // pred_region
      _
    $region37: #{network_forward.1} parent=1 // pred_fallthru
      _
    // Predicated region
    $region38: #{network_forward.1} parent=1 // pred_check
      _
    $region39: #{network_forward.1} parent=1 // pred_check_branch
      %98 = sbr.rel (0) target = $region41
    $region40: #{network_forward.1} parent=1 // pred_region
      _
    $region41: #{network_forward.1} parent=1 // pred_fallthru
      _
    // Predicated region
    $region42: #{network_forward.1} parent=1 // pred_check
      _
    $region43: #{network_forward.1} parent=1 // pred_check_branch
      %100 = sbr.rel (0) target = $region45
    $region44: #{network_forward.1} parent=1 // pred_region
      _
    $region45: #{network_forward.1} parent=1 // pred_fallthru
      _
    // Predicated region
    $region46: #{network_forward.1} parent=1 // pred_check
      _
    $region47: #{network_forward.1} parent=1 // pred_check_branch
      %102 = sbr.rel (0) target = $region49
    $region48: #{network_forward.1} parent=1 // pred_region
      _
    $region49: #{network_forward.1} parent=1 // pred_fallthru
      _
    // Predicated region
    $region50: #{network_forward.1} parent=1 // pred_check
      _
    $region51: #{network_forward.1} parent=1 // pred_check_branch
      %104 = sbr.rel (0) target = $region53
    $region52: #{network_forward.1} parent=1 // pred_region
      _
    $region53: #{network_forward.1} parent=1 // pred_fallthru
      _
    // Predicated region
    $region54: #{network_forward.1} parent=1 // pred_check
      _
    $region55: #{network_forward.1} parent=1 // pred_check_branch
      %106 = sbr.rel (0) target = $region57
    $region56: #{network_forward.1} parent=1 // pred_region
      _
    $region57: #{network_forward.1} parent=1 // pred_fallthru
      _
    // Predicated region
    $region58: #{network_forward.1} parent=1 // pred_check
      _
    $region59: #{network_forward.1} parent=1 // pred_check_branch
      %108 = sbr.rel (0) target = $region61
    $region60: #{network_forward.1} parent=1 // pred_region
      _
    $region61: #{network_forward.1} parent=1 // pred_fallthru
      _
    // Predicated region
    $region62: #{network_forward.1} parent=1 // pred_check
      _
    $region63: #{network_forward.1} parent=1 // pred_check_branch
      %110 = sbr.rel (0) target = $region65
    $region64: #{network_forward.1} parent=1 // pred_region
      _
    $region65: #{network_forward.1} parent=1 // pred_fallthru
      _
    // Predicated region
    $region66: #{network_forward.1} parent=1 // pred_check
      _
    $region67: #{network_forward.1} parent=1 // pred_check_branch
      %112 = sbr.rel (0) target = $region69
    $region68: #{network_forward.1} parent=1 // pred_region
      _
    $region69: #{network_forward.1} parent=1 // pred_fallthru
      _
    // Predicated region
    $region70: #{network_forward.1} parent=1 // pred_check
      _
    $region71: #{network_forward.1} parent=1 // pred_check_branch
      %114 = sbr.rel (0) target = $region73
    $region72: #{network_forward.1} parent=1 // pred_region
      _
    $region73: #{network_forward.1} parent=1 // pred_fallthru
      _
    // Predicated region
    $region74: #{network_forward.1} parent=1 // pred_check
      _
    $region75: #{network_forward.1} parent=1 // pred_check_branch
      %116 = sbr.rel (0) target = $region77
    $region76: #{network_forward.1} parent=1 // pred_region
      _
    $region77: #{network_forward.1} parent=1 // pred_fallthru
      _
    // Predicated region
    $region78: #{network_forward.1} parent=1 // pred_check
      _
    $region79: #{network_forward.1} parent=1 // pred_check_branch
      %118 = sbr.rel (0) target = $region81
    $region80: #{network_forward.1} parent=1 // pred_region
      _
    $region81: #{network_forward.1} parent=1 // pred_fallthru
      _
    // Predicated region
    $region82: #{network_forward.1} parent=1 // pred_check
      _
    $region83: #{network_forward.1} parent=1 // pred_check_branch
      %120 = sbr.rel (0) target = $region85
    $region84: #{network_forward.1} parent=1 // pred_region
      _
    $region85: #{network_forward.1} parent=1 // pred_fallthru
      _
    // Predicated region
    $region86: #{network_forward.1} parent=1 // pred_check
      _
    $region87: #{network_forward.1} parent=1 // pred_check_branch
      %122 = sbr.rel (0) target = $region89
    $region88: #{network_forward.1} parent=1 // pred_region
      _
    $region89: #{network_forward.1} parent=1 // pred_fallthru
      _
    // Predicated region
    $region90: #{network_forward.1} parent=1 // pred_check
      _
    $region91: #{network_forward.1} parent=1 // pred_check_branch
      %124 = sbr.rel (0) target = $region93
    $region92: #{network_forward.1} parent=1 // pred_region
      _
    $region93: #{network_forward.1} parent=1 // pred_fallthru
      _
    // Predicated region
    $region94: #{network_forward.1} parent=1 // pred_check
      _
    $region95: #{network_forward.1} parent=1 // pred_check_branch
      %126 = sbr.rel (0) target = $region97
    $region96: #{network_forward.1} parent=1 // pred_region
      _
    $region97: #{network_forward.1} parent=1 // pred_fallthru
      _
    // Predicated region
    $region98: #{network_forward.1} parent=1 // pred_check
      _
    $region99: #{network_forward.1} parent=1 // pred_check_branch
      %128 = sbr.rel (0) target = $region101
    $region100: #{network_forward.1} parent=1 // pred_region
      _
    $region101: #{network_forward.1} parent=1 // pred_fallthru
      _
    // Predicated region
    $region102: #{network_forward.1} parent=1 // pred_check
      _
    $region103: #{network_forward.1} parent=1 // pred_check_branch
      %130 = sbr.rel (0) target = $region105
    $region104: #{network_forward.1} parent=1 // pred_region
      _
    $region105: #{network_forward.1} parent=1 // pred_fallthru
      _
    // Predicated region
    $region106: #{network_forward.1} parent=1 // pred_check
      _
    $region107: #{network_forward.1} parent=1 // pred_check_branch
      %132 = sbr.rel (0) target = $region109
    $region108: #{network_forward.1} parent=1 // pred_region
      _
    $region109: #{network_forward.1} parent=1 // pred_fallthru
      _
    // Predicated region
    $region110: #{network_forward.1} parent=1 // pred_check
      _
    $region111: #{network_forward.1} parent=1 // pred_check_branch
      %134 = sbr.rel (0) target = $region113
    $region112: #{network_forward.1} parent=1 // pred_region
      _
    $region113: #{network_forward.1} parent=1 // pred_fallthru
      _
    // Predicated region
    $region114: #{network_forward.1} parent=1 // pred_check
      _
    $region115: #{network_forward.1} parent=1 // pred_check_branch
      %136 = sbr.rel (0) target = $region117
    $region116: #{network_forward.1} parent=1 // pred_region
      _
    $region117: #{network_forward.1} parent=1 // pred_fallthru
      _
    // Predicated region
    $region118: #{network_forward.1} parent=1 // pred_check
      _
    $region119: #{network_forward.1} parent=1 // pred_check_branch
      %138 = sbr.rel (0) target = $region121
    $region120: #{network_forward.1} parent=1 // pred_region
      %s140 = ssub.s32 4096, 4096
      %141 = vsyncadd [#allocation3], %s140
      %s142 = sshll.u32 [#allocation2], 4
      %s143 = int_to_ptr.vmem [resolvable:$true] %s142
      %148 = dma.hbm_to_vmem [thread:$0]  %s59, 4096, %s143, [#allocation3], 256, 256, 16
    $region121: #{network_forward.1} parent=1 // pred_fallthru
      _
    // Predicated region
    $region122: #{network_forward.1} parent=1 // pred_check
      _
    $region123: #{network_forward.1} parent=1 // pred_check_branch
      %150 = sbr.rel (0) target = $region125
    $region124: #{network_forward.1} parent=1 // pred_region
      _
    $region125: #{network_forward.1} parent=1 // pred_fallthru
      _
    // Predicated region
    $region126: #{network_forward.1} parent=1 // pred_check
      _
    $region127: #{network_forward.1} parent=1 // pred_check_branch
      %152 = sbr.rel (0) target = $region129
    $region128: #{network_forward.1} parent=1 // pred_region
      %s154 = ssub.s32 8192, 8192
      %155 = vsyncadd [#allocation6], %s154
      %s156 = sshll.u32 [#allocation5], 4
      %s157 = int_to_ptr.vmem [resolvable:$true] %s156
      %162 = dma.hbm_to_vmem [thread:$0]  %s63, 8192, %s157, [#allocation6], 128, 128, 8
    $region129: #{network_forward.1} parent=1 // pred_fallthru
      _
    // Predicated region
    $region130: #{network_forward.1} parent=1 // pred_check
      _
    $region131: #{network_forward.1} parent=1 // pred_check_branch
      %164 = sbr.rel (0) target = $region133
    $region132: #{network_forward.1} parent=1 // pred_region
      _
    $region133: #{network_forward.1} parent=1 // pred_fallthru
      _
    // Predicated region
    $region134: #{network_forward.1} parent=1 // pred_check
      _
    $region135: #{network_forward.1} parent=1 // pred_check_branch
      %166 = sbr.rel (0) target = $region137
    $region136: #{network_forward.1} parent=1 // pred_region
      _
    $region137: #{network_forward.1} parent=1 // pred_fallthru
      _
    // Predicated region
    $region138: #{network_forward.1} parent=1 // pred_check
      _
    $region139: #{network_forward.1} parent=1 // pred_check_branch
      %168 = sbr.rel (0) target = $region141
    $region140: #{network_forward.1} parent=1 // pred_region
      _
    $region141: #{network_forward.1} parent=1 // pred_fallthru
      _
    // Predicated region
    $region142: #{network_forward.1} parent=1 // pred_check
      _
    $region143: #{network_forward.1} parent=1 // pred_check_branch
      %170 = sbr.rel (0) target = $region145
    $region144: #{network_forward.1} parent=1 // pred_region
      %171 = dma.done [#allocation3], 4096
    $region145: #{network_forward.1} parent=1 // pred_fallthru
      _
    // Predicated region
    $region146: #{network_forward.1} parent=1 // pred_check
      _
    $region147: #{network_forward.1} parent=1 // pred_check_branch
      %173 = sbr.rel (0) target = $region149
    $region148: #{network_forward.1} parent=1 // pred_region
      %174 = dma.done [#allocation6], 8192
    $region149: #{network_forward.1} parent=1 // pred_fallthru
      _
    %v176 = vld [vmem:[%s1] sm:$0xff]
    %v177 = vld [vmem:[%s1 + $0x8] sm:$0xff]
    %v178 = vld [vmem:[%s1 + $0x10] sm:$0xff]
    %v179 = vld [vmem:[%s1 + $0x18] sm:$0xff]
    %v180 = vld [vmem:[%s1 + $0x20] sm:$0xff]
    %v181 = vld [vmem:[%s1 + $0x28] sm:$0xff]
    %v182 = vld [vmem:[%s1 + $0x30] sm:$0xff]
    %v183 = vld [vmem:[%s1 + $0x38] sm:$0xff]
    %v184 = vpack.c.bf16 %v177, %v176
    %v185 = vpack.c.bf16 %v179, %v178
    %v186 = vpack.c.bf16 %v181, %v180
    %v187 = vpack.c.bf16 %v183, %v182
    %v188 = vld [vmem:[%s3] sm:$0x3]
    %v189 = vld [vmem:[%s5] sm:$0x1]
    %v191 = vlaneseq
    %v192 = vshrl.u32 %v191, 7
    %v193 = vsub.s32 0, %v192
    %v194 = vrot.slane %v189, %v193
    %vm196 = vcmask 23552
    %v198 = vsel %vm196, %v184, 0
    %v201 = vsel %vm196, %v185, 0
    %v204 = vsel %vm196, %v186, 0
    %v207 = vsel %vm196, %v187, 0
    %vm209 = vcmask 1040384
    %vm210 = vcmask 1041408
    %v211 = vsel %vm209, 4294967295, 65535
    %v212 = vsel %vm210, %v211, 0
    %v214 = vand.u32 %v188, %v212
    %216 = vmatprep.subr.bf16.mxu0 0
    %217 = vmatpush1.bf16.msra.mxu0 0
    %218 = vmatprep.subr.bf16.mxu0 0
    %219 = vmatpush1.bf16.msra.mxu0 0
    %220 = vmatprep.subr.bf16.mxu0 0
    %221 = vmatpush1.bf16.msra.mxu0 0
    %222 = vmatprep.subr.bf16.mxu0 0
    %223 = vmatpush1.bf16.msra.mxu0 0
    %224 = vmatprep.subr.bf16.mxu0 0
    %225 = vmatpush1.bf16.msra.mxu0 0
    %226 = vmatprep.subr.bf16.mxu0 0
    %227 = vmatpush1.bf16.msra.mxu0 0
    %228 = vmatprep.subr.bf16.mxu0 0
    %229 = vmatpush1.bf16.msra.mxu0 0
    %230 = vmatprep.subr.bf16.mxu0 0
    %231 = vmatpush1.bf16.msra.mxu0 %v214
    %232 = vmatprep.subr.bf16.mxu0 0
    %233 = vmatpush2.bf16.msra.mxu0 0
    %234 = vmatprep.subr.bf16.mxu0 0
    %235 = vmatpush2.bf16.msra.mxu0 0
    %236 = vmatprep.subr.bf16.mxu0 0
    %237 = vmatpush2.bf16.msra.mxu0 0
    %238 = vmatprep.subr.bf16.mxu0 0
    %239 = vmatpush2.bf16.msra.mxu0 0
    %240 = vmatprep.subr.bf16.mxu0 0
    %241 = vmatpush2.bf16.msra.mxu0 0
    %242 = vmatprep.subr.bf16.mxu0 0
    %243 = vmatpush2.bf16.msra.mxu0 0
    %244 = vmatprep.subr.bf16.mxu0 0
    %245 = vmatpush2.bf16.msra.mxu0 0
    %246 = vmatprep.subr.bf16.mxu0 0
    %247 = vmatpush2.bf16.msra.mxu0 0
    %248 = vmatprep.mubr.bf16.mxu0 0
    %249 = vmatmul.mubr.bf16.gmra.mxu0 %v198
    %v250 = vpop.f32.mrf.mxu0
    %v251 = vadd.f32 %v194, %v250
    %v252 = vpop.f32.mrf.mxu0
    %v253 = vpop.f32.mrf.mxu0
    %v254 = vadd.f32 %v194, %v253
    %v255 = vpop.f32.mrf.mxu0
    %256 = vmatprep.mubr.bf16.mxu0 0
    %257 = vmatmul.mubr.bf16.gmra.mxu0 %v201
    %v258 = vpop.f32.mrf.mxu0
    %v259 = vadd.f32 %v194, %v258
    %v260 = vpop.f32.mrf.mxu0
    %v261 = vpop.f32.mrf.mxu0
    %v262 = vadd.f32 %v194, %v261
    %v263 = vpop.f32.mrf.mxu0
    %264 = vmatprep.mubr.bf16.mxu0 0
    %265 = vmatmul.mubr.bf16.gmra.mxu0 %v204
    %v266 = vpop.f32.mrf.mxu0
    %v267 = vadd.f32 %v194, %v266
    %v268 = vpop.f32.mrf.mxu0
    %v269 = vpop.f32.mrf.mxu0
    %v270 = vadd.f32 %v194, %v269
    %v271 = vpop.f32.mrf.mxu0
    %272 = vmatprep.mubr.bf16.mxu0 0
    %273 = vmatmul.mubr.bf16.gmra.mxu0 %v207
    %v274 = vpop.f32.mrf.mxu0
    %v275 = vadd.f32 %v194, %v274
    %v276 = vpop.f32.mrf.mxu0
    %v277 = vpop.f32.mrf.mxu0
    %v278 = vadd.f32 %v194, %v277
    %v279 = vpop.f32.mrf.mxu0
    %280 = vdwg.mxu0
    %v281 = vpack.c.bf16 %v254, %v251
    %v282 = vpack.c.bf16 %v262, %v259
    %v283 = vpack.c.bf16 %v270, %v267
    %v284 = vpack.c.bf16 %v278, %v275
    %v285 = vld [vmem:[%s7] sm:$0xf]
    %v286 = vld [vmem:[%s7 + $0x4] sm:$0xf]
    %v287 = vld [vmem:[%s7 + $0x8] sm:$0xf]
    %v288 = vld [vmem:[%s9] sm:$0x1]
    %v290 = vlaneseq
    %v291 = vshrl.u32 %v290, 7
    %v292 = vsub.s32 0, %v291
    %v293 = vrot.slane %v288, %v292
    %v298 = vunpack.c.l.b16 %v285
    %v299 = vunpack.c.l.b16 %v286
    %v300 = vunpack.c.l.b16 %v287
    %v301 = vpack.c.b16 %v299, %v298
    %v302 = vpack.c.b16 %v300, %v300
    %vm304 = vcmask 195584
    %v306 = vsel %vm304, %v281, 0
    %v309 = vsel %vm304, %v282, 0
    %v312 = vsel %vm304, %v283, 0
    %v315 = vsel %vm304, %v284, 0
    %vm317 = vcmask 1043456
    %v319 = vsel %vm317, %v302, 0
    %321 = vmatprep.subr.bf16.mxu0 0
    %322 = vmatpush1.bf16.msra.mxu0 0
    %323 = vmatprep.subr.bf16.mxu0 0
    %324 = vmatpush1.bf16.msra.mxu0 0
    %325 = vmatprep.subr.bf16.mxu0 0
    %326 = vmatpush1.bf16.msra.mxu0 0
    %327 = vmatprep.subr.bf16.mxu0 0
    %328 = vmatpush1.bf16.msra.mxu0 0
    %329 = vmatprep.subr.bf16.mxu0 0
    %330 = vmatpush1.bf16.msra.mxu0 0
    %331 = vmatprep.subr.bf16.mxu0 0
    %332 = vmatpush1.bf16.msra.mxu0 0
    %333 = vmatprep.subr.bf16.mxu0 0
    %334 = vmatpush1.bf16.msra.mxu0 %v319
    %335 = vmatprep.subr.bf16.mxu0 0
    %336 = vmatpush1.bf16.msra.mxu0 %v301
    %337 = vmatprep.subr.bf16.mxu0 0
    %338 = vmatpush2.bf16.msra.mxu0 0
    %339 = vmatprep.subr.bf16.mxu0 0
    %340 = vmatpush2.bf16.msra.mxu0 0
    %341 = vmatprep.subr.bf16.mxu0 0
    %342 = vmatpush2.bf16.msra.mxu0 0
    %343 = vmatprep.subr.bf16.mxu0 0
    %344 = vmatpush2.bf16.msra.mxu0 0
    %345 = vmatprep.subr.bf16.mxu0 0
    %346 = vmatpush2.bf16.msra.mxu0 0
    %347 = vmatprep.subr.bf16.mxu0 0
    %348 = vmatpush2.bf16.msra.mxu0 0
    %349 = vmatprep.subr.bf16.mxu0 0
    %350 = vmatpush2.bf16.msra.mxu0 0
    %351 = vmatprep.subr.bf16.mxu0 0
    %352 = vmatpush2.bf16.msra.mxu0 0
    %353 = vmatprep.mubr.bf16.mxu0 0
    %354 = vmatmul.mubr.bf16.gmra.mxu0 %v306
    %v355 = vpop.f32.mrf.mxu0
    %v356 = vadd.f32 %v293, %v355
    %v357 = vpop.f32.mrf.mxu0
    %v358 = vpop.f32.mrf.mxu0
    %v359 = vadd.f32 %v293, %v358
    %v360 = vpop.f32.mrf.mxu0
    %361 = vmatprep.mubr.bf16.mxu0 0
    %362 = vmatmul.mubr.bf16.gmra.mxu0 %v309
    %v363 = vpop.f32.mrf.mxu0
    %v364 = vadd.f32 %v293, %v363
    %v365 = vpop.f32.mrf.mxu0
    %v366 = vpop.f32.mrf.mxu0
    %v367 = vadd.f32 %v293, %v366
    %v368 = vpop.f32.mrf.mxu0
    %369 = vmatprep.mubr.bf16.mxu0 0
    %370 = vmatmul.mubr.bf16.gmra.mxu0 %v312
    %v371 = vpop.f32.mrf.mxu0
    %v372 = vadd.f32 %v293, %v371
    %v373 = vpop.f32.mrf.mxu0
    %v374 = vpop.f32.mrf.mxu0
    %v375 = vadd.f32 %v293, %v374
    %v376 = vpop.f32.mrf.mxu0
    %377 = vmatprep.mubr.bf16.mxu0 0
    %378 = vmatmul.mubr.bf16.gmra.mxu0 %v315
    %v379 = vpop.f32.mrf.mxu0
    %v380 = vadd.f32 %v293, %v379
    %v381 = vpop.f32.mrf.mxu0
    %v382 = vpop.f32.mrf.mxu0
    %v383 = vadd.f32 %v293, %v382
    %v384 = vpop.f32.mrf.mxu0
    %385 = vdwg.mxu0
    %v386 = vmax.f32 %v356, 0.0
    %v387 = vmax.f32 %v359, 0.0
    %v388 = vmax.f32 %v364, 0.0
    %v389 = vmax.f32 %v367, 0.0
    %v390 = vmax.f32 %v372, 0.0
    %v391 = vmax.f32 %v375, 0.0
    %v392 = vmax.f32 %v380, 0.0
    %v393 = vmax.f32 %v383, 0.0
    %v394 = vld [vmem:[%s11] sm:$0xf]
    %v395 = vld [vmem:[%s11 + $0x4] sm:$0xf]
    %v396 = vld [vmem:[%s11 + $0x8] sm:$0xf]
    %v397 = vld [vmem:[%s13] sm:$0x1]
    %v399 = vlaneseq
    %v400 = vshrl.u32 %v399, 7
    %v401 = vsub.s32 0, %v400
    %v402 = vrot.slane %v397, %v401
    %v407 = vunpack.c.l.b16 %v394
    %v408 = vunpack.c.l.b16 %v395
    %v409 = vunpack.c.l.b16 %v396
    %v410 = vpack.c.b16 %v408, %v407
    %v411 = vpack.c.b16 %v409, %v409
    %v414 = vsel %vm317, %v411, 0
    %416 = vmatprep.subr.bf16.mxu0 0
    %417 = vmatpush1.bf16.msra.mxu0 0
    %418 = vmatprep.subr.bf16.mxu0 0
    %419 = vmatpush1.bf16.msra.mxu0 0
    %420 = vmatprep.subr.bf16.mxu0 0
    %421 = vmatpush1.bf16.msra.mxu0 0
    %422 = vmatprep.subr.bf16.mxu0 0
    %423 = vmatpush1.bf16.msra.mxu0 0
    %424 = vmatprep.subr.bf16.mxu0 0
    %425 = vmatpush1.bf16.msra.mxu0 0
    %426 = vmatprep.subr.bf16.mxu0 0
    %427 = vmatpush1.bf16.msra.mxu0 0
    %428 = vmatprep.subr.bf16.mxu0 0
    %429 = vmatpush1.bf16.msra.mxu0 %v414
    %430 = vmatprep.subr.bf16.mxu0 0
    %431 = vmatpush1.bf16.msra.mxu0 %v410
    %432 = vmatprep.subr.bf16.mxu0 0
    %433 = vmatpush2.bf16.msra.mxu0 0
    %434 = vmatprep.subr.bf16.mxu0 0
    %435 = vmatpush2.bf16.msra.mxu0 0
    %436 = vmatprep.subr.bf16.mxu0 0
    %437 = vmatpush2.bf16.msra.mxu0 0
    %438 = vmatprep.subr.bf16.mxu0 0
    %439 = vmatpush2.bf16.msra.mxu0 0
    %440 = vmatprep.subr.bf16.mxu0 0
    %441 = vmatpush2.bf16.msra.mxu0 0
    %442 = vmatprep.subr.bf16.mxu0 0
    %443 = vmatpush2.bf16.msra.mxu0 0
    %444 = vmatprep.subr.bf16.mxu0 0
    %445 = vmatpush2.bf16.msra.mxu0 0
    %446 = vmatprep.subr.bf16.mxu0 0
    %447 = vmatpush2.bf16.msra.mxu0 0
    %448 = vmatprep.mubr.bf16.mxu0 0
    %449 = vmatmul.mubr.bf16.gmra.mxu0 %v306
    %v450 = vpop.f32.mrf.mxu0
    %v451 = vadd.f32 %v402, %v450
    %v452 = vpop.f32.mrf.mxu0
    %v453 = vpop.f32.mrf.mxu0
    %v454 = vadd.f32 %v402, %v453
    %v455 = vpop.f32.mrf.mxu0
    %456 = vmatprep.mubr.bf16.mxu0 0
    %457 = vmatmul.mubr.bf16.gmra.mxu0 %v309
    %v458 = vpop.f32.mrf.mxu0
    %v459 = vadd.f32 %v402, %v458
    %v460 = vpop.f32.mrf.mxu0
    %v461 = vpop.f32.mrf.mxu0
    %v462 = vadd.f32 %v402, %v461
    %v463 = vpop.f32.mrf.mxu0
    %464 = vmatprep.mubr.bf16.mxu0 0
    %465 = vmatmul.mubr.bf16.gmra.mxu0 %v312
    %v466 = vpop.f32.mrf.mxu0
    %v467 = vadd.f32 %v402, %v466
    %v468 = vpop.f32.mrf.mxu0
    %v469 = vpop.f32.mrf.mxu0
    %v470 = vadd.f32 %v402, %v469
    %v471 = vpop.f32.mrf.mxu0
    %472 = vmatprep.mubr.bf16.mxu0 0
    %473 = vmatmul.mubr.bf16.gmra.mxu0 %v315
    %v474 = vpop.f32.mrf.mxu0
    %v475 = vadd.f32 %v402, %v474
    %v476 = vpop.f32.mrf.mxu0
    %v477 = vpop.f32.mrf.mxu0
    %v478 = vadd.f32 %v402, %v477
    %v479 = vpop.f32.mrf.mxu0
    %480 = vdwg.mxu0
    %v481 = vmax.f32 %v451, 0.0
    %v482 = vmax.f32 %v454, 0.0
    %v483 = vmax.f32 %v459, 0.0
    %v484 = vmax.f32 %v462, 0.0
    %v485 = vmax.f32 %v467, 0.0
    %v486 = vmax.f32 %v470, 0.0
    %v487 = vmax.f32 %v475, 0.0
    %v488 = vmax.f32 %v478, 0.0
    %v489 = vpack.c.bf16 %v387, %v386
    %v490 = vpack.c.bf16 %v389, %v388
    %v491 = vpack.c.bf16 %v391, %v390
    %v492 = vpack.c.bf16 %v393, %v392
    %v493 = vld [vmem:[%s15] sm:$0xf]
    %v494 = vld [vmem:[%s17] sm:$0x1]
    %v496 = vlaneseq
    %v497 = vshrl.u32 %v496, 7
    %v498 = vsub.s32 0, %v497
    %v499 = vrot.slane %v494, %v498
    %vm501 = vcmask 64512
    %v503 = vsel %vm501, %v489, 0
    %v506 = vsel %vm501, %v490, 0
    %v509 = vsel %vm501, %v491, 0
    %v512 = vsel %vm501, %v492, 0
    %v515 = vsel %vm317, %v493, 0
    %517 = vmatprep.subr.bf16.mxu0 0
    %518 = vmatpush1.bf16.msra.mxu0 0
    %519 = vmatprep.subr.bf16.mxu0 0
    %520 = vmatpush1.bf16.msra.mxu0 0
    %521 = vmatprep.subr.bf16.mxu0 0
    %522 = vmatpush1.bf16.msra.mxu0 0
    %523 = vmatprep.subr.bf16.mxu0 0
    %524 = vmatpush1.bf16.msra.mxu0 0
    %525 = vmatprep.subr.bf16.mxu0 0
    %526 = vmatpush1.bf16.msra.mxu0 0
    %527 = vmatprep.subr.bf16.mxu0 0
    %528 = vmatpush1.bf16.msra.mxu0 0
    %529 = vmatprep.subr.bf16.mxu0 0
    %530 = vmatpush1.bf16.msra.mxu0 0
    %531 = vmatprep.subr.bf16.mxu0 0
    %532 = vmatpush1.bf16.msra.mxu0 %v515
    %533 = vmatprep.subr.bf16.mxu0 0
    %534 = vmatpush2.bf16.msra.mxu0 0
    %535 = vmatprep.subr.bf16.mxu0 0
    %536 = vmatpush2.bf16.msra.mxu0 0
    %537 = vmatprep.subr.bf16.mxu0 0
    %538 = vmatpush2.bf16.msra.mxu0 0
    %539 = vmatprep.subr.bf16.mxu0 0
    %540 = vmatpush2.bf16.msra.mxu0 0
    %541 = vmatprep.subr.bf16.mxu0 0
    %542 = vmatpush2.bf16.msra.mxu0 0
    %543 = vmatprep.subr.bf16.mxu0 0
    %544 = vmatpush2.bf16.msra.mxu0 0
    %545 = vmatprep.subr.bf16.mxu0 0
    %546 = vmatpush2.bf16.msra.mxu0 0
    %547 = vmatprep.subr.bf16.mxu0 0
    %548 = vmatpush2.bf16.msra.mxu0 0
    %549 = vmatprep.mubr.bf16.mxu0 0
    %550 = vmatmul.mubr.bf16.gmra.mxu0 %v503
    %v551 = vpop.f32.mrf.mxu0
    %v552 = vadd.f32 %v499, %v551
    %v553 = vpop.f32.mrf.mxu0
    %v554 = vpop.f32.mrf.mxu0
    %v555 = vadd.f32 %v499, %v554
    %v556 = vpop.f32.mrf.mxu0
    %557 = vmatprep.mubr.bf16.mxu0 0
    %558 = vmatmul.mubr.bf16.gmra.mxu0 %v506
    %v559 = vpop.f32.mrf.mxu0
    %v560 = vadd.f32 %v499, %v559
    %v561 = vpop.f32.mrf.mxu0
    %v562 = vpop.f32.mrf.mxu0
    %v563 = vadd.f32 %v499, %v562
    %v564 = vpop.f32.mrf.mxu0
    %565 = vmatprep.mubr.bf16.mxu0 0
    %566 = vmatmul.mubr.bf16.gmra.mxu0 %v509
    %v567 = vpop.f32.mrf.mxu0
    %v568 = vadd.f32 %v499, %v567
    %v569 = vpop.f32.mrf.mxu0
    %v570 = vpop.f32.mrf.mxu0
    %v571 = vadd.f32 %v499, %v570
    %v572 = vpop.f32.mrf.mxu0
    %573 = vmatprep.mubr.bf16.mxu0 0
    %574 = vmatmul.mubr.bf16.gmra.mxu0 %v512
    %v575 = vpop.f32.mrf.mxu0
    %v576 = vadd.f32 %v499, %v575
    %v577 = vpop.f32.mrf.mxu0
    %v578 = vpop.f32.mrf.mxu0
    %v579 = vadd.f32 %v499, %v578
    %v580 = vpop.f32.mrf.mxu0
    %581 = vdwg.mxu0
    %v582 = vmax.f32 %v552, 0.0
    %v583 = vmax.f32 %v555, 0.0
    %v584 = vmax.f32 %v560, 0.0
    %v585 = vmax.f32 %v563, 0.0
    %v586 = vmax.f32 %v568, 0.0
    %v587 = vmax.f32 %v571, 0.0
    %v588 = vmax.f32 %v576, 0.0
    %v589 = vmax.f32 %v579, 0.0
    %v590 = vpack.c.bf16 %v482, %v481
    %v591 = vpack.c.bf16 %v484, %v483
    %v592 = vpack.c.bf16 %v486, %v485
    %v593 = vpack.c.bf16 %v488, %v487
    %v594 = vld [vmem:[%s19] sm:$0xf]
    %v595 = vld [vmem:[%s21] sm:$0x1]
    %v597 = vlaneseq
    %v598 = vshrl.u32 %v597, 7
    %v599 = vsub.s32 0, %v598
    %v600 = vrot.slane %v595, %v599
    %v603 = vsel %vm501, %v590, 0
    %v606 = vsel %vm501, %v591, 0
    %v609 = vsel %vm501, %v592, 0
    %v612 = vsel %vm501, %v593, 0
    %v615 = vsel %vm317, %v594, 0
    %617 = vmatprep.subr.bf16.mxu0 0
    %618 = vmatpush1.bf16.msra.mxu0 0
    %619 = vmatprep.subr.bf16.mxu0 0
    %620 = vmatpush1.bf16.msra.mxu0 0
    %621 = vmatprep.subr.bf16.mxu0 0
    %622 = vmatpush1.bf16.msra.mxu0 0
    %623 = vmatprep.subr.bf16.mxu0 0
    %624 = vmatpush1.bf16.msra.mxu0 0
    %625 = vmatprep.subr.bf16.mxu0 0
    %626 = vmatpush1.bf16.msra.mxu0 0
    %627 = vmatprep.subr.bf16.mxu0 0
    %628 = vmatpush1.bf16.msra.mxu0 0
    %629 = vmatprep.subr.bf16.mxu0 0
    %630 = vmatpush1.bf16.msra.mxu0 0
    %631 = vmatprep.subr.bf16.mxu0 0
    %632 = vmatpush1.bf16.msra.mxu0 %v615
    %633 = vmatprep.subr.bf16.mxu0 0
    %634 = vmatpush2.bf16.msra.mxu0 0
    %635 = vmatprep.subr.bf16.mxu0 0
    %636 = vmatpush2.bf16.msra.mxu0 0
    %637 = vmatprep.subr.bf16.mxu0 0
    %638 = vmatpush2.bf16.msra.mxu0 0
    %639 = vmatprep.subr.bf16.mxu0 0
    %640 = vmatpush2.bf16.msra.mxu0 0
    %641 = vmatprep.subr.bf16.mxu0 0
    %642 = vmatpush2.bf16.msra.mxu0 0
    %643 = vmatprep.subr.bf16.mxu0 0
    %644 = vmatpush2.bf16.msra.mxu0 0
    %645 = vmatprep.subr.bf16.mxu0 0
    %646 = vmatpush2.bf16.msra.mxu0 0
    %647 = vmatprep.subr.bf16.mxu0 0
    %648 = vmatpush2.bf16.msra.mxu0 0
    %649 = vmatprep.mubr.bf16.mxu0 0
    %650 = vmatmul.mubr.bf16.gmra.mxu0 %v603
    %v651 = vpop.f32.mrf.mxu0
    %v652 = vadd.f32 %v600, %v651
    %v653 = vpop.f32.mrf.mxu0
    %v654 = vpop.f32.mrf.mxu0
    %v655 = vadd.f32 %v600, %v654
    %v656 = vpop.f32.mrf.mxu0
    %657 = vmatprep.mubr.bf16.mxu0 0
    %658 = vmatmul.mubr.bf16.gmra.mxu0 %v606
    %v659 = vpop.f32.mrf.mxu0
    %v660 = vadd.f32 %v600, %v659
    %v661 = vpop.f32.mrf.mxu0
    %v662 = vpop.f32.mrf.mxu0
    %v663 = vadd.f32 %v600, %v662
    %v664 = vpop.f32.mrf.mxu0
    %665 = vmatprep.mubr.bf16.mxu0 0
    %666 = vmatmul.mubr.bf16.gmra.mxu0 %v609
    %v667 = vpop.f32.mrf.mxu0
    %v668 = vadd.f32 %v600, %v667
    %v669 = vpop.f32.mrf.mxu0
    %v670 = vpop.f32.mrf.mxu0
    %v671 = vadd.f32 %v600, %v670
    %v672 = vpop.f32.mrf.mxu0
    %673 = vmatprep.mubr.bf16.mxu0 0
    %674 = vmatmul.mubr.bf16.gmra.mxu0 %v612
    %v675 = vpop.f32.mrf.mxu0
    %v676 = vadd.f32 %v600, %v675
    %v677 = vpop.f32.mrf.mxu0
    %v678 = vpop.f32.mrf.mxu0
    %v679 = vadd.f32 %v600, %v678
    %v680 = vpop.f32.mrf.mxu0
    %681 = vdwg.mxu0
    %v682 = vmax.f32 %v652, 0.0
    %v683 = vmax.f32 %v655, 0.0
    %v684 = vmax.f32 %v660, 0.0
    %v685 = vmax.f32 %v663, 0.0
    %v686 = vmax.f32 %v668, 0.0
    %v687 = vmax.f32 %v671, 0.0
    %v688 = vmax.f32 %v676, 0.0
    %v689 = vmax.f32 %v679, 0.0
    %v690 = vadd.f32 %v582, %v682
    %v691 = vadd.f32 %v583, %v683
    %v692 = vadd.f32 %v584, %v684
    %v693 = vadd.f32 %v585, %v685
    %v694 = vadd.f32 %v586, %v686
    %v695 = vadd.f32 %v587, %v687
    %v696 = vadd.f32 %v588, %v688
    %v697 = vadd.f32 %v589, %v689
    %v698 = vpack.c.bf16 %v691, %v690
    %v699 = vpack.c.bf16 %v693, %v692
    %v700 = vpack.c.bf16 %v695, %v694
    %v701 = vpack.c.bf16 %v697, %v696
    %v702 = vld [vmem:[%s23] sm:$0xf]
    %v703 = vld [vmem:[%s25] sm:$0x1]
    %v705 = vlaneseq
    %v706 = vshrl.u32 %v705, 7
    %v707 = vsub.s32 0, %v706
    %v708 = vrot.slane %v703, %v707
    %v711 = vsel %vm501, %v698, 0
    %v714 = vsel %vm501, %v699, 0
    %v717 = vsel %vm501, %v700, 0
    %v720 = vsel %vm501, %v701, 0
    %v723 = vsel %vm317, %v702, 0
    %725 = vmatprep.subr.bf16.mxu0 0
    %726 = vmatpush1.bf16.msra.mxu0 0
    %727 = vmatprep.subr.bf16.mxu0 0
    %728 = vmatpush1.bf16.msra.mxu0 0
    %729 = vmatprep.subr.bf16.mxu0 0
    %730 = vmatpush1.bf16.msra.mxu0 0
    %731 = vmatprep.subr.bf16.mxu0 0
    %732 = vmatpush1.bf16.msra.mxu0 0
    %733 = vmatprep.subr.bf16.mxu0 0
    %734 = vmatpush1.bf16.msra.mxu0 0
    %735 = vmatprep.subr.bf16.mxu0 0
    %736 = vmatpush1.bf16.msra.mxu0 0
    %737 = vmatprep.subr.bf16.mxu0 0
    %738 = vmatpush1.bf16.msra.mxu0 0
    %739 = vmatprep.subr.bf16.mxu0 0
    %740 = vmatpush1.bf16.msra.mxu0 %v723
    %741 = vmatprep.subr.bf16.mxu0 0
    %742 = vmatpush2.bf16.msra.mxu0 0
    %743 = vmatprep.subr.bf16.mxu0 0
    %744 = vmatpush2.bf16.msra.mxu0 0
    %745 = vmatprep.subr.bf16.mxu0 0
    %746 = vmatpush2.bf16.msra.mxu0 0
    %747 = vmatprep.subr.bf16.mxu0 0
    %748 = vmatpush2.bf16.msra.mxu0 0
    %749 = vmatprep.subr.bf16.mxu0 0
    %750 = vmatpush2.bf16.msra.mxu0 0
    %751 = vmatprep.subr.bf16.mxu0 0
    %752 = vmatpush2.bf16.msra.mxu0 0
    %753 = vmatprep.subr.bf16.mxu0 0
    %754 = vmatpush2.bf16.msra.mxu0 0
    %755 = vmatprep.subr.bf16.mxu0 0
    %756 = vmatpush2.bf16.msra.mxu0 0
    %757 = vmatprep.mubr.bf16.mxu0 0
    %758 = vmatmul.mubr.bf16.gmra.mxu0 %v711
    %v759 = vpop.f32.mrf.mxu0
    %v760 = vadd.f32 %v708, %v759
    %v761 = vpop.f32.mrf.mxu0
    %v762 = vpop.f32.mrf.mxu0
    %v763 = vadd.f32 %v708, %v762
    %v764 = vpop.f32.mrf.mxu0
    %765 = vmatprep.mubr.bf16.mxu0 0
    %766 = vmatmul.mubr.bf16.gmra.mxu0 %v714
    %v767 = vpop.f32.mrf.mxu0
    %v768 = vadd.f32 %v708, %v767
    %v769 = vpop.f32.mrf.mxu0
    %v770 = vpop.f32.mrf.mxu0
    %v771 = vadd.f32 %v708, %v770
    %v772 = vpop.f32.mrf.mxu0
    %773 = vmatprep.mubr.bf16.mxu0 0
    %774 = vmatmul.mubr.bf16.gmra.mxu0 %v717
    %v775 = vpop.f32.mrf.mxu0
    %v776 = vadd.f32 %v708, %v775
    %v777 = vpop.f32.mrf.mxu0
    %v778 = vpop.f32.mrf.mxu0
    %v779 = vadd.f32 %v708, %v778
    %v780 = vpop.f32.mrf.mxu0
    %781 = vmatprep.mubr.bf16.mxu0 0
    %782 = vmatmul.mubr.bf16.gmra.mxu0 %v720
    %v783 = vpop.f32.mrf.mxu0
    %v784 = vadd.f32 %v708, %v783
    %v785 = vpop.f32.mrf.mxu0
    %v786 = vpop.f32.mrf.mxu0
    %v787 = vadd.f32 %v708, %v786
    %v788 = vpop.f32.mrf.mxu0
    %789 = vdwg.mxu0
    %v790 = vmax.f32 %v760, 0.0
    %v791 = vmax.f32 %v763, 0.0
    %v792 = vmax.f32 %v768, 0.0
    %v793 = vmax.f32 %v771, 0.0
    %v794 = vmax.f32 %v776, 0.0
    %v795 = vmax.f32 %v779, 0.0
    %v796 = vmax.f32 %v784, 0.0
    %v797 = vmax.f32 %v787, 0.0
    %v798 = vadd.f32 %v386, %v790
    %v799 = vadd.f32 %v387, %v791
    %v800 = vadd.f32 %v388, %v792
    %v801 = vadd.f32 %v389, %v793
    %v802 = vadd.f32 %v390, %v794
    %v803 = vadd.f32 %v391, %v795
    %v804 = vadd.f32 %v392, %v796
    %v805 = vadd.f32 %v393, %v797
    %814 = vrot.lane.b32.xlu0 %v798, 8
    %v815 = vpop.permute.xlu0 %814
    %816 = vrot.lane.b32.xlu0 %v799, 8
    %v817 = vpop.permute.xlu0 %816
    %818 = vrot.lane.b32.xlu0 %v800, 8
    %v819 = vpop.permute.xlu0 %818
    %820 = vrot.lane.b32.xlu0 %v801, 8
    %v821 = vpop.permute.xlu0 %820
    %822 = vrot.lane.b32.xlu0 %v802, 8
    %v823 = vpop.permute.xlu0 %822
    %824 = vrot.lane.b32.xlu0 %v803, 8
    %v825 = vpop.permute.xlu0 %824
    %826 = vrot.lane.b32.xlu0 %v804, 8
    %v827 = vpop.permute.xlu0 %826
    %828 = vrot.lane.b32.xlu0 %v805, 8
    %v829 = vpop.permute.xlu0 %828
    %v838 = vadd.f32 %v582, %v815
    %v839 = vadd.f32 %v583, %v817
    %v840 = vadd.f32 %v584, %v819
    %v841 = vadd.f32 %v585, %v821
    %v842 = vadd.f32 %v586, %v823
    %v843 = vadd.f32 %v587, %v825
    %v844 = vadd.f32 %v588, %v827
    %v845 = vadd.f32 %v589, %v829
    %v846 = vpack.c.bf16 %v839, %v838
    %v847 = vpack.c.bf16 %v841, %v840
    %v848 = vpack.c.bf16 %v843, %v842
    %v849 = vpack.c.bf16 %v845, %v844
    %v850 = vld [vmem:[%s27] sm:$0xf]
    %v851 = vld [vmem:[%s29] sm:$0x1]
    %v853 = vlaneseq
    %v854 = vshrl.u32 %v853, 7
    %v855 = vsub.s32 0, %v854
    %v856 = vrot.slane %v851, %v855
    %862 = vrot.lane.b32.xlu0 %v846, 120
    %v863 = vpop.permute.xlu0 %862
    %864 = vrot.lane.b32.xlu0 %v847, 120
    %v865 = vpop.permute.xlu0 %864
    %866 = vrot.lane.b32.xlu0 %v848, 120
    %v867 = vpop.permute.xlu0 %866
    %868 = vrot.lane.b32.xlu0 %v849, 120
    %v869 = vpop.permute.xlu0 %868
    %v871 = vsel %vm501, %v863, 0
    %v874 = vsel %vm501, %v865, 0
    %v877 = vsel %vm501, %v867, 0
    %v880 = vsel %vm501, %v869, 0
    %v883 = vsel %vm317, %v850, 0
    %885 = vmatprep.subr.bf16.mxu0 0
    %886 = vmatpush1.bf16.msra.mxu0 0
    %887 = vmatprep.subr.bf16.mxu0 0
    %888 = vmatpush1.bf16.msra.mxu0 0
    %889 = vmatprep.subr.bf16.mxu0 0
    %890 = vmatpush1.bf16.msra.mxu0 0
    %891 = vmatprep.subr.bf16.mxu0 0
    %892 = vmatpush1.bf16.msra.mxu0 0
    %893 = vmatprep.subr.bf16.mxu0 0
    %894 = vmatpush1.bf16.msra.mxu0 0
    %895 = vmatprep.subr.bf16.mxu0 0
    %896 = vmatpush1.bf16.msra.mxu0 0
    %897 = vmatprep.subr.bf16.mxu0 0
    %898 = vmatpush1.bf16.msra.mxu0 0
    %899 = vmatprep.subr.bf16.mxu0 0
    %900 = vmatpush1.bf16.msra.mxu0 %v883
    %901 = vmatprep.subr.bf16.mxu0 0
    %902 = vmatpush2.bf16.msra.mxu0 0
    %903 = vmatprep.subr.bf16.mxu0 0
    %904 = vmatpush2.bf16.msra.mxu0 0
    %905 = vmatprep.subr.bf16.mxu0 0
    %906 = vmatpush2.bf16.msra.mxu0 0
    %907 = vmatprep.subr.bf16.mxu0 0
    %908 = vmatpush2.bf16.msra.mxu0 0
    %909 = vmatprep.subr.bf16.mxu0 0
    %910 = vmatpush2.bf16.msra.mxu0 0
    %911 = vmatprep.subr.bf16.mxu0 0
    %912 = vmatpush2.bf16.msra.mxu0 0
    %913 = vmatprep.subr.bf16.mxu0 0
    %914 = vmatpush2.bf16.msra.mxu0 0
    %915 = vmatprep.subr.bf16.mxu0 0
    %916 = vmatpush2.bf16.msra.mxu0 0
    %917 = vmatprep.mubr.bf16.mxu0 0
    %918 = vmatmul.mubr.bf16.gmra.mxu0 %v871
    %v919 = vpop.f32.mrf.mxu0
    %v920 = vadd.f32 %v856, %v919
    %v921 = vpop.f32.mrf.mxu0
    %v922 = vpop.f32.mrf.mxu0
    %v923 = vadd.f32 %v856, %v922
    %v924 = vpop.f32.mrf.mxu0
    %925 = vmatprep.mubr.bf16.mxu0 0
    %926 = vmatmul.mubr.bf16.gmra.mxu0 %v874
    %v927 = vpop.f32.mrf.mxu0
    %v928 = vadd.f32 %v856, %v927
    %v929 = vpop.f32.mrf.mxu0
    %v930 = vpop.f32.mrf.mxu0
    %v931 = vadd.f32 %v856, %v930
    %v932 = vpop.f32.mrf.mxu0
    %933 = vmatprep.mubr.bf16.mxu0 0
    %934 = vmatmul.mubr.bf16.gmra.mxu0 %v877
    %v935 = vpop.f32.mrf.mxu0
    %v936 = vadd.f32 %v856, %v935
    %v937 = vpop.f32.mrf.mxu0
    %v938 = vpop.f32.mrf.mxu0
    %v939 = vadd.f32 %v856, %v938
    %v940 = vpop.f32.mrf.mxu0
    %941 = vmatprep.mubr.bf16.mxu0 0
    %942 = vmatmul.mubr.bf16.gmra.mxu0 %v880
    %v943 = vpop.f32.mrf.mxu0
    %v944 = vadd.f32 %v856, %v943
    %v945 = vpop.f32.mrf.mxu0
    %v946 = vpop.f32.mrf.mxu0
    %v947 = vadd.f32 %v856, %v946
    %v948 = vpop.f32.mrf.mxu0
    %949 = vdwg.mxu0
    %v950 = vmax.f32 %v920, 0.0
    %v951 = vmax.f32 %v923, 0.0
    %v952 = vmax.f32 %v928, 0.0
    %v953 = vmax.f32 %v931, 0.0
    %v954 = vmax.f32 %v936, 0.0
    %v955 = vmax.f32 %v939, 0.0
    %v956 = vmax.f32 %v944, 0.0
    %v957 = vmax.f32 %v947, 0.0
    %966 = vrot.lane.b32.xlu0 %v950, 16
    %v967 = vpop.permute.xlu0 %966
    %968 = vrot.lane.b32.xlu0 %v951, 16
    %v969 = vpop.permute.xlu0 %968
    %970 = vrot.lane.b32.xlu0 %v952, 16
    %v971 = vpop.permute.xlu0 %970
    %972 = vrot.lane.b32.xlu0 %v953, 16
    %v973 = vpop.permute.xlu0 %972
    %974 = vrot.lane.b32.xlu0 %v954, 16
    %v975 = vpop.permute.xlu0 %974
    %976 = vrot.lane.b32.xlu0 %v955, 16
    %v977 = vpop.permute.xlu0 %976
    %978 = vrot.lane.b32.xlu0 %v956, 16
    %v979 = vpop.permute.xlu0 %978
    %980 = vrot.lane.b32.xlu0 %v957, 16
    %v981 = vpop.permute.xlu0 %980
    %v990 = vadd.f32 %v582, %v967
    %v991 = vadd.f32 %v583, %v969
    %v992 = vadd.f32 %v584, %v971
    %v993 = vadd.f32 %v585, %v973
    %v994 = vadd.f32 %v586, %v975
    %v995 = vadd.f32 %v587, %v977
    %v996 = vadd.f32 %v588, %v979
    %v997 = vadd.f32 %v589, %v981
    %1006 = vrot.lane.b32.xlu0 %v838, 8
    %v1007 = vpop.permute.xlu0 %1006
    %1008 = vrot.lane.b32.xlu0 %v839, 8
    %v1009 = vpop.permute.xlu0 %1008
    %1010 = vrot.lane.b32.xlu0 %v840, 8
    %v1011 = vpop.permute.xlu0 %1010
    %1012 = vrot.lane.b32.xlu0 %v841, 8
    %v1013 = vpop.permute.xlu0 %1012
    %1014 = vrot.lane.b32.xlu0 %v842, 8
    %v1015 = vpop.permute.xlu0 %1014
    %1016 = vrot.lane.b32.xlu0 %v843, 8
    %v1017 = vpop.permute.xlu0 %1016
    %1018 = vrot.lane.b32.xlu0 %v844, 8
    %v1019 = vpop.permute.xlu0 %1018
    %1020 = vrot.lane.b32.xlu0 %v845, 8
    %v1021 = vpop.permute.xlu0 %1020
    %1038 = vrot.lane.b32.xlu0 %v990, 8
    %v1039 = vpop.permute.xlu0 %1038
    %1040 = vrot.lane.b32.xlu0 %v991, 8
    %v1041 = vpop.permute.xlu0 %1040
    %1042 = vrot.lane.b32.xlu0 %v992, 8
    %v1043 = vpop.permute.xlu0 %1042
    %1044 = vrot.lane.b32.xlu0 %v993, 8
    %v1045 = vpop.permute.xlu0 %1044
    %1046 = vrot.lane.b32.xlu0 %v994, 8
    %v1047 = vpop.permute.xlu0 %1046
    %1048 = vrot.lane.b32.xlu0 %v995, 8
    %v1049 = vpop.permute.xlu0 %1048
    %1050 = vrot.lane.b32.xlu0 %v996, 8
    %v1051 = vpop.permute.xlu0 %1050
    %1052 = vrot.lane.b32.xlu0 %v997, 8
    %v1053 = vpop.permute.xlu0 %1052
    %v1062 = vsel %vm501, %v690, %v815
    %v1063 = vsel %vm501, %v691, %v817
    %v1064 = vsel %vm501, %v692, %v819
    %v1065 = vsel %vm501, %v693, %v821
    %v1066 = vsel %vm501, %v694, %v823
    %v1067 = vsel %vm501, %v695, %v825
    %v1068 = vsel %vm501, %v696, %v827
    %v1069 = vsel %vm501, %v697, %v829
    %vm1070 = vcmask 130048
    %v1071 = vsel %vm1070, %v1062, %v1007
    %v1072 = vsel %vm1070, %v1063, %v1009
    %v1073 = vsel %vm1070, %v1064, %v1011
    %v1074 = vsel %vm1070, %v1065, %v1013
    %v1075 = vsel %vm1070, %v1066, %v1015
    %v1076 = vsel %vm1070, %v1067, %v1017
    %v1077 = vsel %vm1070, %v1068, %v1019
    %v1078 = vsel %vm1070, %v1069, %v1021
    %v1079 = vsel %vm304, %v1071, %v1039
    %v1080 = vsel %vm304, %v1072, %v1041
    %v1081 = vsel %vm304, %v1073, %v1043
    %v1082 = vsel %vm304, %v1074, %v1045
    %v1083 = vsel %vm304, %v1075, %v1047
    %v1084 = vsel %vm304, %v1076, %v1049
    %v1085 = vsel %vm304, %v1077, %v1051
    %v1086 = vsel %vm304, %v1078, %v1053
    %v1087 = vld [vmem:[%s31] sm:$0xf]
    %v1088 = vld [vmem:[%s31 + $0x4] sm:$0xf]
    %v1089 = vld [vmem:[%s31 + $0x8] sm:$0xf]
    %v1090 = vld [vmem:[%s33] sm:$0x1]
    %v1092 = vlaneseq
    %v1093 = vshrl.u32 %v1092, 7
    %v1094 = vsub.s32 0, %v1093
    %v1095 = vrot.slane %v1090, %v1094
    %v1100 = vunpack.c.l.b16 %v1087
    %v1101 = vunpack.c.l.b16 %v1088
    %v1102 = vunpack.c.l.b16 %v1089
    %v1103 = vpack.c.b16 %v1101, %v1100
    %v1104 = vpack.c.b16 %v1102, %v1102
    %v1107 = vsel %vm317, %v1104, 0
    %1109 = vmatprep.subr.bf16.mxu0 0
    %1110 = vmatpush1.bf16.msra.mxu0 0
    %1111 = vmatprep.subr.bf16.mxu0 0
    %1112 = vmatpush1.bf16.msra.mxu0 0
    %1113 = vmatprep.subr.bf16.mxu0 0
    %1114 = vmatpush1.bf16.msra.mxu0 0
    %1115 = vmatprep.subr.bf16.mxu0 0
    %1116 = vmatpush1.bf16.msra.mxu0 0
    %1117 = vmatprep.subr.bf16.mxu0 0
    %1118 = vmatpush1.bf16.msra.mxu0 0
    %1119 = vmatprep.subr.bf16.mxu0 0
    %1120 = vmatpush1.bf16.msra.mxu0 0
    %1121 = vmatprep.subr.bf16.mxu0 0
    %1122 = vmatpush1.bf16.msra.mxu0 %v1107
    %1123 = vmatprep.subr.bf16.mxu0 0
    %1124 = vmatpush1.bf16.msra.mxu0 %v1103
    %1125 = vmatprep.subr.bf16.mxu0 0
    %1126 = vmatpush2.bf16.msra.mxu0 0
    %1127 = vmatprep.subr.bf16.mxu0 0
    %1128 = vmatpush2.bf16.msra.mxu0 0
    %1129 = vmatprep.subr.bf16.mxu0 0
    %1130 = vmatpush2.bf16.msra.mxu0 0
    %1131 = vmatprep.subr.bf16.mxu0 0
    %1132 = vmatpush2.bf16.msra.mxu0 0
    %1133 = vmatprep.subr.bf16.mxu0 0
    %1134 = vmatpush2.bf16.msra.mxu0 0
    %1135 = vmatprep.subr.bf16.mxu0 0
    %1136 = vmatpush2.bf16.msra.mxu0 0
    %1137 = vmatprep.subr.bf16.mxu0 0
    %1138 = vmatpush2.bf16.msra.mxu0 0
    %1139 = vmatprep.subr.bf16.mxu0 0
    %1140 = vmatpush2.bf16.msra.mxu0 0
    %1141 = vmatprep.mubr.bf16.mxu0 0
    %1142 = vmatmul.mubr.bf16.gmra.mxu0 %v306
    %v1143 = vpop.f32.mrf.mxu0
    %v1144 = vadd.f32 %v1095, %v1143
    %v1145 = vpop.f32.mrf.mxu0
    %v1146 = vpop.f32.mrf.mxu0
    %v1147 = vadd.f32 %v1095, %v1146
    %v1148 = vpop.f32.mrf.mxu0
    %1149 = vmatprep.mubr.bf16.mxu0 0
    %1150 = vmatmul.mubr.bf16.gmra.mxu0 %v309
    %v1151 = vpop.f32.mrf.mxu0
    %v1152 = vadd.f32 %v1095, %v1151
    %v1153 = vpop.f32.mrf.mxu0
    %v1154 = vpop.f32.mrf.mxu0
    %v1155 = vadd.f32 %v1095, %v1154
    %v1156 = vpop.f32.mrf.mxu0
    %1157 = vmatprep.mubr.bf16.mxu0 0
    %1158 = vmatmul.mubr.bf16.gmra.mxu0 %v312
    %v1159 = vpop.f32.mrf.mxu0
    %v1160 = vadd.f32 %v1095, %v1159
    %v1161 = vpop.f32.mrf.mxu0
    %v1162 = vpop.f32.mrf.mxu0
    %v1163 = vadd.f32 %v1095, %v1162
    %v1164 = vpop.f32.mrf.mxu0
    %1165 = vmatprep.mubr.bf16.mxu0 0
    %1166 = vmatmul.mubr.bf16.gmra.mxu0 %v315
    %v1167 = vpop.f32.mrf.mxu0
    %v1168 = vadd.f32 %v1095, %v1167
    %v1169 = vpop.f32.mrf.mxu0
    %v1170 = vpop.f32.mrf.mxu0
    %v1171 = vadd.f32 %v1095, %v1170
    %v1172 = vpop.f32.mrf.mxu0
    %1173 = vdwg.mxu0
    %v1174 = vmax.f32 %v1144, 0.0
    %v1175 = vmax.f32 %v1147, 0.0
    %v1176 = vmax.f32 %v1152, 0.0
    %v1177 = vmax.f32 %v1155, 0.0
    %v1178 = vmax.f32 %v1160, 0.0
    %v1179 = vmax.f32 %v1163, 0.0
    %v1180 = vmax.f32 %v1168, 0.0
    %v1181 = vmax.f32 %v1171, 0.0
    %v1182 = vpack.c.bf16 %v1080, %v1079
    %v1183 = vpack.c.bf16 %v1082, %v1081
    %v1184 = vpack.c.bf16 %v1084, %v1083
    %v1185 = vpack.c.bf16 %v1086, %v1085
    %v1186 = vld [vmem:[%s35] sm:$0xf]
    %v1187 = vld [vmem:[%s35 + $0x4] sm:$0xf]
    %v1188 = vld [vmem:[%s35 + $0x8] sm:$0xf]
    %v1189 = vld [vmem:[%s35 + $0xc] sm:$0xf]
    %v1190 = vld [vmem:[%s37] sm:$0x1]
    %v1192 = vlaneseq
    %v1193 = vshrl.u32 %v1192, 7
    %v1194 = vsub.s32 0, %v1193
    %v1195 = vrot.slane %v1190, %v1194
    %v1201 = vunpack.c.l.b16 %v1186
    %v1202 = vunpack.c.l.b16 %v1187
    %v1203 = vunpack.c.l.b16 %v1188
    %v1204 = vunpack.c.l.b16 %v1189
    %v1205 = vpack.c.b16 %v1202, %v1201
    %v1206 = vpack.c.b16 %v1204, %v1203
    %vm1209 = vcmask 261120
    %v1211 = vsel %vm1209, %v1182, 0
    %v1214 = vsel %vm1209, %v1183, 0
    %v1217 = vsel %vm1209, %v1184, 0
    %v1220 = vsel %vm1209, %v1185, 0
    %1222 = vmatprep.subr.bf16.mxu0 0
    %1223 = vmatpush1.bf16.msra.mxu0 0
    %1224 = vmatprep.subr.bf16.mxu0 0
    %1225 = vmatpush1.bf16.msra.mxu0 0
    %1226 = vmatprep.subr.bf16.mxu0 0
    %1227 = vmatpush1.bf16.msra.mxu0 0
    %1228 = vmatprep.subr.bf16.mxu0 0
    %1229 = vmatpush1.bf16.msra.mxu0 0
    %1230 = vmatprep.subr.bf16.mxu0 0
    %1231 = vmatpush1.bf16.msra.mxu0 0
    %1232 = vmatprep.subr.bf16.mxu0 0
    %1233 = vmatpush1.bf16.msra.mxu0 0
    %1234 = vmatprep.subr.bf16.mxu0 0
    %1235 = vmatpush1.bf16.msra.mxu0 %v1206
    %1236 = vmatprep.subr.bf16.mxu0 0
    %1237 = vmatpush1.bf16.msra.mxu0 %v1205
    %1238 = vmatprep.subr.bf16.mxu0 0
    %1239 = vmatpush2.bf16.msra.mxu0 0
    %1240 = vmatprep.subr.bf16.mxu0 0
    %1241 = vmatpush2.bf16.msra.mxu0 0
    %1242 = vmatprep.subr.bf16.mxu0 0
    %1243 = vmatpush2.bf16.msra.mxu0 0
    %1244 = vmatprep.subr.bf16.mxu0 0
    %1245 = vmatpush2.bf16.msra.mxu0 0
    %1246 = vmatprep.subr.bf16.mxu0 0
    %1247 = vmatpush2.bf16.msra.mxu0 0
    %1248 = vmatprep.subr.bf16.mxu0 0
    %1249 = vmatpush2.bf16.msra.mxu0 0
    %1250 = vmatprep.subr.bf16.mxu0 0
    %1251 = vmatpush2.bf16.msra.mxu0 0
    %1252 = vmatprep.subr.bf16.mxu0 0
    %1253 = vmatpush2.bf16.msra.mxu0 0
    %1254 = vmatprep.mubr.bf16.mxu0 0
    %1255 = vmatmul.mubr.bf16.gmra.mxu0 %v1211
    %v1256 = vpop.f32.mrf.mxu0
    %v1257 = vadd.f32 %v1195, %v1256
    %v1258 = vpop.f32.mrf.mxu0
    %v1259 = vpop.f32.mrf.mxu0
    %v1260 = vadd.f32 %v1195, %v1259
    %v1261 = vpop.f32.mrf.mxu0
    %1262 = vmatprep.mubr.bf16.mxu0 0
    %1263 = vmatmul.mubr.bf16.gmra.mxu0 %v1214
    %v1264 = vpop.f32.mrf.mxu0
    %v1265 = vadd.f32 %v1195, %v1264
    %v1266 = vpop.f32.mrf.mxu0
    %v1267 = vpop.f32.mrf.mxu0
    %v1268 = vadd.f32 %v1195, %v1267
    %v1269 = vpop.f32.mrf.mxu0
    %1270 = vmatprep.mubr.bf16.mxu0 0
    %1271 = vmatmul.mubr.bf16.gmra.mxu0 %v1217
    %v1272 = vpop.f32.mrf.mxu0
    %v1273 = vadd.f32 %v1195, %v1272
    %v1274 = vpop.f32.mrf.mxu0
    %v1275 = vpop.f32.mrf.mxu0
    %v1276 = vadd.f32 %v1195, %v1275
    %v1277 = vpop.f32.mrf.mxu0
    %1278 = vmatprep.mubr.bf16.mxu0 0
    %1279 = vmatmul.mubr.bf16.gmra.mxu0 %v1220
    %v1280 = vpop.f32.mrf.mxu0
    %v1281 = vadd.f32 %v1195, %v1280
    %v1282 = vpop.f32.mrf.mxu0
    %v1283 = vpop.f32.mrf.mxu0
    %v1284 = vadd.f32 %v1195, %v1283
    %v1285 = vpop.f32.mrf.mxu0
    %1286 = vdwg.mxu0
    %v1287 = vmax.f32 %v1257, 0.0
    %v1288 = vmax.f32 %v1260, 0.0
    %v1289 = vmax.f32 %v1265, 0.0
    %v1290 = vmax.f32 %v1268, 0.0
    %v1291 = vmax.f32 %v1273, 0.0
    %v1292 = vmax.f32 %v1276, 0.0
    %v1293 = vmax.f32 %v1281, 0.0
    %v1294 = vmax.f32 %v1284, 0.0
    %v1295 = vpack.c.bf16 %v1175, %v1174
    %v1296 = vpack.c.bf16 %v1177, %v1176
    %v1297 = vpack.c.bf16 %v1179, %v1178
    %v1298 = vpack.c.bf16 %v1181, %v1180
    %v1299 = vld [vmem:[%s39] sm:$0xf]
    %v1300 = vld [vmem:[%s41] sm:$0x1]
    %v1302 = vlaneseq
    %v1303 = vshrl.u32 %v1302, 7
    %v1304 = vsub.s32 0, %v1303
    %v1305 = vrot.slane %v1300, %v1304
    %v1308 = vsel %vm501, %v1295, 0
    %v1311 = vsel %vm501, %v1296, 0
    %v1314 = vsel %vm501, %v1297, 0
    %v1317 = vsel %vm501, %v1298, 0
    %v1320 = vsel %vm317, %v1299, 0
    %1322 = vmatprep.subr.bf16.mxu0 0
    %1323 = vmatpush1.bf16.msra.mxu0 0
    %1324 = vmatprep.subr.bf16.mxu0 0
    %1325 = vmatpush1.bf16.msra.mxu0 0
    %1326 = vmatprep.subr.bf16.mxu0 0
    %1327 = vmatpush1.bf16.msra.mxu0 0
    %1328 = vmatprep.subr.bf16.mxu0 0
    %1329 = vmatpush1.bf16.msra.mxu0 0
    %1330 = vmatprep.subr.bf16.mxu0 0
    %1331 = vmatpush1.bf16.msra.mxu0 0
    %1332 = vmatprep.subr.bf16.mxu0 0
    %1333 = vmatpush1.bf16.msra.mxu0 0
    %1334 = vmatprep.subr.bf16.mxu0 0
    %1335 = vmatpush1.bf16.msra.mxu0 0
    %1336 = vmatprep.subr.bf16.mxu0 0
    %1337 = vmatpush1.bf16.msra.mxu0 %v1320
    %1338 = vmatprep.subr.bf16.mxu0 0
    %1339 = vmatpush2.bf16.msra.mxu0 0
    %1340 = vmatprep.subr.bf16.mxu0 0
    %1341 = vmatpush2.bf16.msra.mxu0 0
    %1342 = vmatprep.subr.bf16.mxu0 0
    %1343 = vmatpush2.bf16.msra.mxu0 0
    %1344 = vmatprep.subr.bf16.mxu0 0
    %1345 = vmatpush2.bf16.msra.mxu0 0
    %1346 = vmatprep.subr.bf16.mxu0 0
    %1347 = vmatpush2.bf16.msra.mxu0 0
    %1348 = vmatprep.subr.bf16.mxu0 0
    %1349 = vmatpush2.bf16.msra.mxu0 0
    %1350 = vmatprep.subr.bf16.mxu0 0
    %1351 = vmatpush2.bf16.msra.mxu0 0
    %1352 = vmatprep.subr.bf16.mxu0 0
    %1353 = vmatpush2.bf16.msra.mxu0 0
    %1354 = vmatprep.mubr.bf16.mxu0 0
    %1355 = vmatmul.mubr.bf16.gmra.mxu0 %v1308
    %v1356 = vpop.f32.mrf.mxu0
    %v1357 = vadd.f32 %v1305, %v1356
    %v1358 = vpop.f32.mrf.mxu0
    %v1359 = vpop.f32.mrf.mxu0
    %v1360 = vadd.f32 %v1305, %v1359
    %v1361 = vpop.f32.mrf.mxu0
    %1362 = vmatprep.mubr.bf16.mxu0 0
    %1363 = vmatmul.mubr.bf16.gmra.mxu0 %v1311
    %v1364 = vpop.f32.mrf.mxu0
    %v1365 = vadd.f32 %v1305, %v1364
    %v1366 = vpop.f32.mrf.mxu0
    %v1367 = vpop.f32.mrf.mxu0
    %v1368 = vadd.f32 %v1305, %v1367
    %v1369 = vpop.f32.mrf.mxu0
    %1370 = vmatprep.mubr.bf16.mxu0 0
    %1371 = vmatmul.mubr.bf16.gmra.mxu0 %v1314
    %v1372 = vpop.f32.mrf.mxu0
    %v1373 = vadd.f32 %v1305, %v1372
    %v1374 = vpop.f32.mrf.mxu0
    %v1375 = vpop.f32.mrf.mxu0
    %v1376 = vadd.f32 %v1305, %v1375
    %v1377 = vpop.f32.mrf.mxu0
    %1378 = vmatprep.mubr.bf16.mxu0 0
    %1379 = vmatmul.mubr.bf16.gmra.mxu0 %v1317
    %v1380 = vpop.f32.mrf.mxu0
    %v1381 = vadd.f32 %v1305, %v1380
    %v1382 = vpop.f32.mrf.mxu0
    %v1383 = vpop.f32.mrf.mxu0
    %v1384 = vadd.f32 %v1305, %v1383
    %v1385 = vpop.f32.mrf.mxu0
    %1386 = vdwg.mxu0
    %v1387 = vmax.f32 %v1357, 0.0
    %v1388 = vmax.f32 %v1360, 0.0
    %v1389 = vmax.f32 %v1365, 0.0
    %v1390 = vmax.f32 %v1368, 0.0
    %v1391 = vmax.f32 %v1373, 0.0
    %v1392 = vmax.f32 %v1376, 0.0
    %v1393 = vmax.f32 %v1381, 0.0
    %v1394 = vmax.f32 %v1384, 0.0
    %v1395 = vpack.c.bf16 %v1288, %v1287
    %v1396 = vpack.c.bf16 %v1290, %v1289
    %v1397 = vpack.c.bf16 %v1292, %v1291
    %v1398 = vpack.c.bf16 %v1294, %v1293
    %v1399 = vld [vmem:[%s43] sm:$0xf]
    %v1400 = vld [vmem:[%s45] sm:$0x1]
    %v1402 = vlaneseq
    %v1403 = vshrl.u32 %v1402, 7
    %v1404 = vsub.s32 0, %v1403
    %v1405 = vrot.slane %v1400, %v1404
    %v1408 = vsel %vm501, %v1395, 0
    %v1411 = vsel %vm501, %v1396, 0
    %v1414 = vsel %vm501, %v1397, 0
    %v1417 = vsel %vm501, %v1398, 0
    %v1420 = vsel %vm317, %v1399, 0
    %1422 = vmatprep.subr.bf16.mxu0 0
    %1423 = vmatpush1.bf16.msra.mxu0 0
    %1424 = vmatprep.subr.bf16.mxu0 0
    %1425 = vmatpush1.bf16.msra.mxu0 0
    %1426 = vmatprep.subr.bf16.mxu0 0
    %1427 = vmatpush1.bf16.msra.mxu0 0
    %1428 = vmatprep.subr.bf16.mxu0 0
    %1429 = vmatpush1.bf16.msra.mxu0 0
    %1430 = vmatprep.subr.bf16.mxu0 0
    %1431 = vmatpush1.bf16.msra.mxu0 0
    %1432 = vmatprep.subr.bf16.mxu0 0
    %1433 = vmatpush1.bf16.msra.mxu0 0
    %1434 = vmatprep.subr.bf16.mxu0 0
    %1435 = vmatpush1.bf16.msra.mxu0 0
    %1436 = vmatprep.subr.bf16.mxu0 0
    %1437 = vmatpush1.bf16.msra.mxu0 %v1420
    %1438 = vmatprep.subr.bf16.mxu0 0
    %1439 = vmatpush2.bf16.msra.mxu0 0
    %1440 = vmatprep.subr.bf16.mxu0 0
    %1441 = vmatpush2.bf16.msra.mxu0 0
    %1442 = vmatprep.subr.bf16.mxu0 0
    %1443 = vmatpush2.bf16.msra.mxu0 0
    %1444 = vmatprep.subr.bf16.mxu0 0
    %1445 = vmatpush2.bf16.msra.mxu0 0
    %1446 = vmatprep.subr.bf16.mxu0 0
    %1447 = vmatpush2.bf16.msra.mxu0 0
    %1448 = vmatprep.subr.bf16.mxu0 0
    %1449 = vmatpush2.bf16.msra.mxu0 0
    %1450 = vmatprep.subr.bf16.mxu0 0
    %1451 = vmatpush2.bf16.msra.mxu0 0
    %1452 = vmatprep.subr.bf16.mxu0 0
    %1453 = vmatpush2.bf16.msra.mxu0 0
    %1454 = vmatprep.mubr.bf16.mxu0 0
    %1455 = vmatmul.mubr.bf16.gmra.mxu0 %v1408
    %v1456 = vpop.f32.mrf.mxu0
    %v1457 = vadd.f32 %v1405, %v1456
    %v1458 = vpop.f32.mrf.mxu0
    %v1459 = vpop.f32.mrf.mxu0
    %v1460 = vadd.f32 %v1405, %v1459
    %v1461 = vpop.f32.mrf.mxu0
    %1462 = vmatprep.mubr.bf16.mxu0 0
    %1463 = vmatmul.mubr.bf16.gmra.mxu0 %v1411
    %v1464 = vpop.f32.mrf.mxu0
    %v1465 = vadd.f32 %v1405, %v1464
    %v1466 = vpop.f32.mrf.mxu0
    %v1467 = vpop.f32.mrf.mxu0
    %v1468 = vadd.f32 %v1405, %v1467
    %v1469 = vpop.f32.mrf.mxu0
    %1470 = vmatprep.mubr.bf16.mxu0 0
    %1471 = vmatmul.mubr.bf16.gmra.mxu0 %v1414
    %v1472 = vpop.f32.mrf.mxu0
    %v1473 = vadd.f32 %v1405, %v1472
    %v1474 = vpop.f32.mrf.mxu0
    %v1475 = vpop.f32.mrf.mxu0
    %v1476 = vadd.f32 %v1405, %v1475
    %v1477 = vpop.f32.mrf.mxu0
    %1478 = vmatprep.mubr.bf16.mxu0 0
    %1479 = vmatmul.mubr.bf16.gmra.mxu0 %v1417
    %v1480 = vpop.f32.mrf.mxu0
    %v1481 = vadd.f32 %v1405, %v1480
    %v1482 = vpop.f32.mrf.mxu0
    %v1483 = vpop.f32.mrf.mxu0
    %v1484 = vadd.f32 %v1405, %v1483
    %v1485 = vpop.f32.mrf.mxu0
    %1486 = vdwg.mxu0
    %v1487 = vmax.f32 %v1457, 0.0
    %v1488 = vmax.f32 %v1460, 0.0
    %v1489 = vmax.f32 %v1465, 0.0
    %v1490 = vmax.f32 %v1468, 0.0
    %v1491 = vmax.f32 %v1473, 0.0
    %v1492 = vmax.f32 %v1476, 0.0
    %v1493 = vmax.f32 %v1481, 0.0
    %v1494 = vmax.f32 %v1484, 0.0
    %v1495 = vadd.f32 %v1387, %v1487
    %v1496 = vadd.f32 %v1388, %v1488
    %v1497 = vadd.f32 %v1389, %v1489
    %v1498 = vadd.f32 %v1390, %v1490
    %v1499 = vadd.f32 %v1391, %v1491
    %v1500 = vadd.f32 %v1392, %v1492
    %v1501 = vadd.f32 %v1393, %v1493
    %v1502 = vadd.f32 %v1394, %v1494
    %v1503 = vpack.c.bf16 %v1496, %v1495
    %v1504 = vpack.c.bf16 %v1498, %v1497
    %v1505 = vpack.c.bf16 %v1500, %v1499
    %v1506 = vpack.c.bf16 %v1502, %v1501
    %v1507 = vld [vmem:[%s47] sm:$0xf]
    %v1508 = vld [vmem:[%s49] sm:$0x1]
    %v1510 = vlaneseq
    %v1511 = vshrl.u32 %v1510, 7
    %v1512 = vsub.s32 0, %v1511
    %v1513 = vrot.slane %v1508, %v1512
    %v1516 = vsel %vm501, %v1503, 0
    %v1519 = vsel %vm501, %v1504, 0
    %v1522 = vsel %vm501, %v1505, 0
    %v1525 = vsel %vm501, %v1506, 0
    %v1528 = vsel %vm317, %v1507, 0
    %1530 = vmatprep.subr.bf16.mxu0 0
    %1531 = vmatpush1.bf16.msra.mxu0 0
    %1532 = vmatprep.subr.bf16.mxu0 0
    %1533 = vmatpush1.bf16.msra.mxu0 0
    %1534 = vmatprep.subr.bf16.mxu0 0
    %1535 = vmatpush1.bf16.msra.mxu0 0
    %1536 = vmatprep.subr.bf16.mxu0 0
    %1537 = vmatpush1.bf16.msra.mxu0 0
    %1538 = vmatprep.subr.bf16.mxu0 0
    %1539 = vmatpush1.bf16.msra.mxu0 0
    %1540 = vmatprep.subr.bf16.mxu0 0
    %1541 = vmatpush1.bf16.msra.mxu0 0
    %1542 = vmatprep.subr.bf16.mxu0 0
    %1543 = vmatpush1.bf16.msra.mxu0 0
    %1544 = vmatprep.subr.bf16.mxu0 0
    %1545 = vmatpush1.bf16.msra.mxu0 %v1528
    %1546 = vmatprep.subr.bf16.mxu0 0
    %1547 = vmatpush2.bf16.msra.mxu0 0
    %1548 = vmatprep.subr.bf16.mxu0 0
    %1549 = vmatpush2.bf16.msra.mxu0 0
    %1550 = vmatprep.subr.bf16.mxu0 0
    %1551 = vmatpush2.bf16.msra.mxu0 0
    %1552 = vmatprep.subr.bf16.mxu0 0
    %1553 = vmatpush2.bf16.msra.mxu0 0
    %1554 = vmatprep.subr.bf16.mxu0 0
    %1555 = vmatpush2.bf16.msra.mxu0 0
    %1556 = vmatprep.subr.bf16.mxu0 0
    %1557 = vmatpush2.bf16.msra.mxu0 0
    %1558 = vmatprep.subr.bf16.mxu0 0
    %1559 = vmatpush2.bf16.msra.mxu0 0
    %1560 = vmatprep.subr.bf16.mxu0 0
    %1561 = vmatpush2.bf16.msra.mxu0 0
    %1562 = vmatprep.mubr.bf16.mxu0 0
    %1563 = vmatmul.mubr.bf16.gmra.mxu0 %v1516
    %v1564 = vpop.f32.mrf.mxu0
    %v1565 = vadd.f32 %v1513, %v1564
    %v1566 = vpop.f32.mrf.mxu0
    %v1567 = vpop.f32.mrf.mxu0
    %v1568 = vadd.f32 %v1513, %v1567
    %v1569 = vpop.f32.mrf.mxu0
    %1570 = vmatprep.mubr.bf16.mxu0 0
    %1571 = vmatmul.mubr.bf16.gmra.mxu0 %v1519
    %v1572 = vpop.f32.mrf.mxu0
    %v1573 = vadd.f32 %v1513, %v1572
    %v1574 = vpop.f32.mrf.mxu0
    %v1575 = vpop.f32.mrf.mxu0
    %v1576 = vadd.f32 %v1513, %v1575
    %v1577 = vpop.f32.mrf.mxu0
    %1578 = vmatprep.mubr.bf16.mxu0 0
    %1579 = vmatmul.mubr.bf16.gmra.mxu0 %v1522
    %v1580 = vpop.f32.mrf.mxu0
    %v1581 = vadd.f32 %v1513, %v1580
    %v1582 = vpop.f32.mrf.mxu0
    %v1583 = vpop.f32.mrf.mxu0
    %v1584 = vadd.f32 %v1513, %v1583
    %v1585 = vpop.f32.mrf.mxu0
    %1586 = vmatprep.mubr.bf16.mxu0 0
    %1587 = vmatmul.mubr.bf16.gmra.mxu0 %v1525
    %v1588 = vpop.f32.mrf.mxu0
    %v1589 = vadd.f32 %v1513, %v1588
    %v1590 = vpop.f32.mrf.mxu0
    %v1591 = vpop.f32.mrf.mxu0
    %v1592 = vadd.f32 %v1513, %v1591
    %v1593 = vpop.f32.mrf.mxu0
    %1594 = vdwg.mxu0
    %v1595 = vmax.f32 %v1565, 0.0
    %v1596 = vmax.f32 %v1568, 0.0
    %v1597 = vmax.f32 %v1573, 0.0
    %v1598 = vmax.f32 %v1576, 0.0
    %v1599 = vmax.f32 %v1581, 0.0
    %v1600 = vmax.f32 %v1584, 0.0
    %v1601 = vmax.f32 %v1589, 0.0
    %v1602 = vmax.f32 %v1592, 0.0
    %v1603 = vadd.f32 %v1174, %v1595
    %v1604 = vadd.f32 %v1175, %v1596
    %v1605 = vadd.f32 %v1176, %v1597
    %v1606 = vadd.f32 %v1177, %v1598
    %v1607 = vadd.f32 %v1178, %v1599
    %v1608 = vadd.f32 %v1179, %v1600
    %v1609 = vadd.f32 %v1180, %v1601
    %v1610 = vadd.f32 %v1181, %v1602
    %1619 = vrot.lane.b32.xlu0 %v1603, 8
    %v1620 = vpop.permute.xlu0 %1619
    %1621 = vrot.lane.b32.xlu0 %v1604, 8
    %v1622 = vpop.permute.xlu0 %1621
    %1623 = vrot.lane.b32.xlu0 %v1605, 8
    %v1624 = vpop.permute.xlu0 %1623
    %1625 = vrot.lane.b32.xlu0 %v1606, 8
    %v1626 = vpop.permute.xlu0 %1625
    %1627 = vrot.lane.b32.xlu0 %v1607, 8
    %v1628 = vpop.permute.xlu0 %1627
    %1629 = vrot.lane.b32.xlu0 %v1608, 8
    %v1630 = vpop.permute.xlu0 %1629
    %1631 = vrot.lane.b32.xlu0 %v1609, 8
    %v1632 = vpop.permute.xlu0 %1631
    %1633 = vrot.lane.b32.xlu0 %v1610, 8
    %v1634 = vpop.permute.xlu0 %1633
    %v1643 = vadd.f32 %v1387, %v1620
    %v1644 = vadd.f32 %v1388, %v1622
    %v1645 = vadd.f32 %v1389, %v1624
    %v1646 = vadd.f32 %v1390, %v1626
    %v1647 = vadd.f32 %v1391, %v1628
    %v1648 = vadd.f32 %v1392, %v1630
    %v1649 = vadd.f32 %v1393, %v1632
    %v1650 = vadd.f32 %v1394, %v1634
    %v1651 = vpack.c.bf16 %v1644, %v1643
    %v1652 = vpack.c.bf16 %v1646, %v1645
    %v1653 = vpack.c.bf16 %v1648, %v1647
    %v1654 = vpack.c.bf16 %v1650, %v1649
    %v1655 = vld [vmem:[%s51] sm:$0xf]
    %v1656 = vld [vmem:[%s53] sm:$0x1]
    %v1658 = vlaneseq
    %v1659 = vshrl.u32 %v1658, 7
    %v1660 = vsub.s32 0, %v1659
    %v1661 = vrot.slane %v1656, %v1660
    %1667 = vrot.lane.b32.xlu0 %v1651, 120
    %v1668 = vpop.permute.xlu0 %1667
    %1669 = vrot.lane.b32.xlu0 %v1652, 120
    %v1670 = vpop.permute.xlu0 %1669
    %1671 = vrot.lane.b32.xlu0 %v1653, 120
    %v1672 = vpop.permute.xlu0 %1671
    %1673 = vrot.lane.b32.xlu0 %v1654, 120
    %v1674 = vpop.permute.xlu0 %1673
    %v1676 = vsel %vm501, %v1668, 0
    %v1679 = vsel %vm501, %v1670, 0
    %v1682 = vsel %vm501, %v1672, 0
    %v1685 = vsel %vm501, %v1674, 0
    %v1688 = vsel %vm317, %v1655, 0
    %1690 = vmatprep.subr.bf16.mxu0 0
    %1691 = vmatpush1.bf16.msra.mxu0 0
    %1692 = vmatprep.subr.bf16.mxu0 0
    %1693 = vmatpush1.bf16.msra.mxu0 0
    %1694 = vmatprep.subr.bf16.mxu0 0
    %1695 = vmatpush1.bf16.msra.mxu0 0
    %1696 = vmatprep.subr.bf16.mxu0 0
    %1697 = vmatpush1.bf16.msra.mxu0 0
    %1698 = vmatprep.subr.bf16.mxu0 0
    %1699 = vmatpush1.bf16.msra.mxu0 0
    %1700 = vmatprep.subr.bf16.mxu0 0
    %1701 = vmatpush1.bf16.msra.mxu0 0
    %1702 = vmatprep.subr.bf16.mxu0 0
    %1703 = vmatpush1.bf16.msra.mxu0 0
    %1704 = vmatprep.subr.bf16.mxu0 0
    %1705 = vmatpush1.bf16.msra.mxu0 %v1688
    %1706 = vmatprep.subr.bf16.mxu0 0
    %1707 = vmatpush2.bf16.msra.mxu0 0
    %1708 = vmatprep.subr.bf16.mxu0 0
    %1709 = vmatpush2.bf16.msra.mxu0 0
    %1710 = vmatprep.subr.bf16.mxu0 0
    %1711 = vmatpush2.bf16.msra.mxu0 0
    %1712 = vmatprep.subr.bf16.mxu0 0
    %1713 = vmatpush2.bf16.msra.mxu0 0
    %1714 = vmatprep.subr.bf16.mxu0 0
    %1715 = vmatpush2.bf16.msra.mxu0 0
    %1716 = vmatprep.subr.bf16.mxu0 0
    %1717 = vmatpush2.bf16.msra.mxu0 0
    %1718 = vmatprep.subr.bf16.mxu0 0
    %1719 = vmatpush2.bf16.msra.mxu0 0
    %1720 = vmatprep.subr.bf16.mxu0 0
    %1721 = vmatpush2.bf16.msra.mxu0 0
    %1722 = vmatprep.mubr.bf16.mxu0 0
    %1723 = vmatmul.mubr.bf16.gmra.mxu0 %v1676
    %v1724 = vpop.f32.mrf.mxu0
    %v1725 = vadd.f32 %v1661, %v1724
    %v1726 = vpop.f32.mrf.mxu0
    %v1727 = vpop.f32.mrf.mxu0
    %v1728 = vadd.f32 %v1661, %v1727
    %v1729 = vpop.f32.mrf.mxu0
    %1730 = vmatprep.mubr.bf16.mxu0 0
    %1731 = vmatmul.mubr.bf16.gmra.mxu0 %v1679
    %v1732 = vpop.f32.mrf.mxu0
    %v1733 = vadd.f32 %v1661, %v1732
    %v1734 = vpop.f32.mrf.mxu0
    %v1735 = vpop.f32.mrf.mxu0
    %v1736 = vadd.f32 %v1661, %v1735
    %v1737 = vpop.f32.mrf.mxu0
    %1738 = vmatprep.mubr.bf16.mxu0 0
    %1739 = vmatmul.mubr.bf16.gmra.mxu0 %v1682
    %v1740 = vpop.f32.mrf.mxu0
    %v1741 = vadd.f32 %v1661, %v1740
    %v1742 = vpop.f32.mrf.mxu0
    %v1743 = vpop.f32.mrf.mxu0
    %v1744 = vadd.f32 %v1661, %v1743
    %v1745 = vpop.f32.mrf.mxu0
    %1746 = vmatprep.mubr.bf16.mxu0 0
    %1747 = vmatmul.mubr.bf16.gmra.mxu0 %v1685
    %v1748 = vpop.f32.mrf.mxu0
    %v1749 = vadd.f32 %v1661, %v1748
    %v1750 = vpop.f32.mrf.mxu0
    %v1751 = vpop.f32.mrf.mxu0
    %v1752 = vadd.f32 %v1661, %v1751
    %v1753 = vpop.f32.mrf.mxu0
    %1754 = vdwg.mxu0
    %v1755 = vmax.f32 %v1725, 0.0
    %v1756 = vmax.f32 %v1728, 0.0
    %v1757 = vmax.f32 %v1733, 0.0
    %v1758 = vmax.f32 %v1736, 0.0
    %v1759 = vmax.f32 %v1741, 0.0
    %v1760 = vmax.f32 %v1744, 0.0
    %v1761 = vmax.f32 %v1749, 0.0
    %v1762 = vmax.f32 %v1752, 0.0
    %1771 = vrot.lane.b32.xlu0 %v1755, 16
    %v1772 = vpop.permute.xlu0 %1771
    %1773 = vrot.lane.b32.xlu0 %v1756, 16
    %v1774 = vpop.permute.xlu0 %1773
    %1775 = vrot.lane.b32.xlu0 %v1757, 16
    %v1776 = vpop.permute.xlu0 %1775
    %1777 = vrot.lane.b32.xlu0 %v1758, 16
    %v1778 = vpop.permute.xlu0 %1777
    %1779 = vrot.lane.b32.xlu0 %v1759, 16
    %v1780 = vpop.permute.xlu0 %1779
    %1781 = vrot.lane.b32.xlu0 %v1760, 16
    %v1782 = vpop.permute.xlu0 %1781
    %1783 = vrot.lane.b32.xlu0 %v1761, 16
    %v1784 = vpop.permute.xlu0 %1783
    %1785 = vrot.lane.b32.xlu0 %v1762, 16
    %v1786 = vpop.permute.xlu0 %1785
    %v1795 = vadd.f32 %v1387, %v1772
    %v1796 = vadd.f32 %v1388, %v1774
    %v1797 = vadd.f32 %v1389, %v1776
    %v1798 = vadd.f32 %v1390, %v1778
    %v1799 = vadd.f32 %v1391, %v1780
    %v1800 = vadd.f32 %v1392, %v1782
    %v1801 = vadd.f32 %v1393, %v1784
    %v1802 = vadd.f32 %v1394, %v1786
    %1811 = vrot.lane.b32.xlu0 %v1643, 8
    %v1812 = vpop.permute.xlu0 %1811
    %1813 = vrot.lane.b32.xlu0 %v1644, 8
    %v1814 = vpop.permute.xlu0 %1813
    %1815 = vrot.lane.b32.xlu0 %v1645, 8
    %v1816 = vpop.permute.xlu0 %1815
    %1817 = vrot.lane.b32.xlu0 %v1646, 8
    %v1818 = vpop.permute.xlu0 %1817
    %1819 = vrot.lane.b32.xlu0 %v1647, 8
    %v1820 = vpop.permute.xlu0 %1819
    %1821 = vrot.lane.b32.xlu0 %v1648, 8
    %v1822 = vpop.permute.xlu0 %1821
    %1823 = vrot.lane.b32.xlu0 %v1649, 8
    %v1824 = vpop.permute.xlu0 %1823
    %1825 = vrot.lane.b32.xlu0 %v1650, 8
    %v1826 = vpop.permute.xlu0 %1825
    %1843 = vrot.lane.b32.xlu0 %v1795, 8
    %v1844 = vpop.permute.xlu0 %1843
    %1845 = vrot.lane.b32.xlu0 %v1796, 8
    %v1846 = vpop.permute.xlu0 %1845
    %1847 = vrot.lane.b32.xlu0 %v1797, 8
    %v1848 = vpop.permute.xlu0 %1847
    %1849 = vrot.lane.b32.xlu0 %v1798, 8
    %v1850 = vpop.permute.xlu0 %1849
    %1851 = vrot.lane.b32.xlu0 %v1799, 8
    %v1852 = vpop.permute.xlu0 %1851
    %1853 = vrot.lane.b32.xlu0 %v1800, 8
    %v1854 = vpop.permute.xlu0 %1853
    %1855 = vrot.lane.b32.xlu0 %v1801, 8
    %v1856 = vpop.permute.xlu0 %1855
    %1857 = vrot.lane.b32.xlu0 %v1802, 8
    %v1858 = vpop.permute.xlu0 %1857
    %v1867 = vsel %vm501, %v1495, %v1620
    %v1868 = vsel %vm501, %v1496, %v1622
    %v1869 = vsel %vm501, %v1497, %v1624
    %v1870 = vsel %vm501, %v1498, %v1626
    %v1871 = vsel %vm501, %v1499, %v1628
    %v1872 = vsel %vm501, %v1500, %v1630
    %v1873 = vsel %vm501, %v1501, %v1632
    %v1874 = vsel %vm501, %v1502, %v1634
    %v1875 = vsel %vm1070, %v1867, %v1812
    %v1876 = vsel %vm1070, %v1868, %v1814
    %v1877 = vsel %vm1070, %v1869, %v1816
    %v1878 = vsel %vm1070, %v1870, %v1818
    %v1879 = vsel %vm1070, %v1871, %v1820
    %v1880 = vsel %vm1070, %v1872, %v1822
    %v1881 = vsel %vm1070, %v1873, %v1824
    %v1882 = vsel %vm1070, %v1874, %v1826
    %v1883 = vsel %vm304, %v1875, %v1844
    %v1884 = vsel %vm304, %v1876, %v1846
    %v1885 = vsel %vm304, %v1877, %v1848
    %v1886 = vsel %vm304, %v1878, %v1850
    %v1887 = vsel %vm304, %v1879, %v1852
    %v1888 = vsel %vm304, %v1880, %v1854
    %v1889 = vsel %vm304, %v1881, %v1856
    %v1890 = vsel %vm304, %v1882, %v1858
    %1899 = vrot.lane.b32.xlu0 %v1079, 24
    %v1900 = vpop.permute.xlu0 %1899
    %1901 = vrot.lane.b32.xlu0 %v1080, 24
    %v1902 = vpop.permute.xlu0 %1901
    %1903 = vrot.lane.b32.xlu0 %v1081, 24
    %v1904 = vpop.permute.xlu0 %1903
    %1905 = vrot.lane.b32.xlu0 %v1082, 24
    %v1906 = vpop.permute.xlu0 %1905
    %1907 = vrot.lane.b32.xlu0 %v1083, 24
    %v1908 = vpop.permute.xlu0 %1907
    %1909 = vrot.lane.b32.xlu0 %v1084, 24
    %v1910 = vpop.permute.xlu0 %1909
    %1911 = vrot.lane.b32.xlu0 %v1085, 24
    %v1912 = vpop.permute.xlu0 %1911
    %1913 = vrot.lane.b32.xlu0 %v1086, 24
    %v1914 = vpop.permute.xlu0 %1913
    %1931 = vrot.lane.b32.xlu0 %v1883, 56
    %v1932 = vpop.permute.xlu0 %1931
    %1933 = vrot.lane.b32.xlu0 %v1884, 56
    %v1934 = vpop.permute.xlu0 %1933
    %1935 = vrot.lane.b32.xlu0 %v1885, 56
    %v1936 = vpop.permute.xlu0 %1935
    %1937 = vrot.lane.b32.xlu0 %v1886, 56
    %v1938 = vpop.permute.xlu0 %1937
    %1939 = vrot.lane.b32.xlu0 %v1887, 56
    %v1940 = vpop.permute.xlu0 %1939
    %1941 = vrot.lane.b32.xlu0 %v1888, 56
    %v1942 = vpop.permute.xlu0 %1941
    %1943 = vrot.lane.b32.xlu0 %v1889, 56
    %v1944 = vpop.permute.xlu0 %1943
    %1945 = vrot.lane.b32.xlu0 %v1890, 56
    %v1946 = vpop.permute.xlu0 %1945
    %v1955 = vsel %vm304, %v251, %v1900
    %v1956 = vsel %vm304, %v254, %v1902
    %v1957 = vsel %vm304, %v259, %v1904
    %v1958 = vsel %vm304, %v262, %v1906
    %v1959 = vsel %vm304, %v267, %v1908
    %v1960 = vsel %vm304, %v270, %v1910
    %v1961 = vsel %vm304, %v275, %v1912
    %v1962 = vsel %vm304, %v278, %v1914
    %vm1963 = vcmask 457728
    %v1964 = vsel %vm1963, %v1955, %v1932
    %v1965 = vsel %vm1963, %v1956, %v1934
    %v1966 = vsel %vm1963, %v1957, %v1936
    %v1967 = vsel %vm1963, %v1958, %v1938
    %v1968 = vsel %vm1963, %v1959, %v1940
    %v1969 = vsel %vm1963, %v1960, %v1942
    %v1970 = vsel %vm1963, %v1961, %v1944
    %v1971 = vsel %vm1963, %v1962, %v1946
    %v1972 = vpack.c.bf16 %v1965, %v1964
    %v1973 = vpack.c.bf16 %v1967, %v1966
    %v1974 = vpack.c.bf16 %v1969, %v1968
    %v1975 = vpack.c.bf16 %v1971, %v1970
    %v1976 = vld [vmem:[%s55] sm:$0xf]
    %v1977 = vld [vmem:[%s55 + $0x4] sm:$0xf]
    %v1978 = vld [vmem:[%s55 + $0x8] sm:$0xf]
    %v1979 = vld [vmem:[%s55 + $0xc] sm:$0xf]
    %v1980 = vld [vmem:[%s55 + $0x10] sm:$0xf]
    %v1981 = vld [vmem:[%s55 + $0x14] sm:$0xf]
    %v1982 = vld [vmem:[%s55 + $0x18] sm:$0xf]
    %v1983 = vld [vmem:[%s55 + $0x1c] sm:$0xf]
    %v1984 = vld [vmem:[%s55 + $0x20] sm:$0xf]
    %v1985 = vld [vmem:[%s55 + $0x24] sm:$0xf]
    %v1986 = vld [vmem:[%s55 + $0x28] sm:$0xf]
    %v1987 = vld [vmem:[%s57] sm:$0x1]
    %v1989 = vlaneseq
    %v1990 = vshrl.u32 %v1989, 7
    %v1991 = vsub.s32 0, %v1990
    %v1992 = vrot.slane %v1987, %v1991
    %v2005 = vunpack.c.l.b16 %v1976
    %v2006 = vunpack.c.l.b16 %v1977
    %v2007 = vunpack.c.l.b16 %v1978
    %v2008 = vunpack.c.l.b16 %v1979
    %v2009 = vunpack.c.l.b16 %v1980
    %v2010 = vunpack.c.l.b16 %v1981
    %v2011 = vunpack.c.l.b16 %v1982
    %v2012 = vunpack.c.l.b16 %v1983
    %v2013 = vunpack.c.l.b16 %v1984
    %v2014 = vunpack.c.l.b16 %v1985
    %v2015 = vunpack.c.l.b16 %v1986
    %v2016 = vpack.c.b16 %v2006, %v2005
    %v2017 = vpack.c.b16 %v2008, %v2007
    %v2018 = vpack.c.b16 %v2010, %v2009
    %v2019 = vpack.c.b16 %v2012, %v2011
    %v2020 = vpack.c.b16 %v2014, %v2013
    %v2021 = vpack.c.b16 %v2015, %v2015
    %vm2027 = vcmask 719872
    %v2029 = vsel %vm2027, %v1972, 0
    %v2032 = vsel %vm2027, %v1973, 0
    %v2035 = vsel %vm2027, %v1974, 0
    %v2038 = vsel %vm2027, %v1975, 0
    %v2041 = vsel %vm317, %v2021, 0
    %2043 = vmatprep.subr.bf16.mxu0 0
    %2044 = vmatpush1.bf16.msra.mxu0 0
    %2045 = vmatprep.subr.bf16.mxu0 0
    %2046 = vmatpush1.bf16.msra.mxu0 0
    %2047 = vmatprep.subr.bf16.mxu0 0
    %2048 = vmatpush1.bf16.msra.mxu0 %v2041
    %2049 = vmatprep.subr.bf16.mxu0 0
    %2050 = vmatpush1.bf16.msra.mxu0 %v2020
    %2051 = vmatprep.subr.bf16.mxu0 0
    %2052 = vmatpush1.bf16.msra.mxu0 %v2019
    %2053 = vmatprep.subr.bf16.mxu0 0
    %2054 = vmatpush1.bf16.msra.mxu0 %v2018
    %2055 = vmatprep.subr.bf16.mxu0 0
    %2056 = vmatpush1.bf16.msra.mxu0 %v2017
    %2057 = vmatprep.subr.bf16.mxu0 0
    %2058 = vmatpush1.bf16.msra.mxu0 %v2016
    %2059 = vmatprep.subr.bf16.mxu0 0
    %2060 = vmatpush2.bf16.msra.mxu0 0
    %2061 = vmatprep.subr.bf16.mxu0 0
    %2062 = vmatpush2.bf16.msra.mxu0 0
    %2063 = vmatprep.subr.bf16.mxu0 0
    %2064 = vmatpush2.bf16.msra.mxu0 0
    %2065 = vmatprep.subr.bf16.mxu0 0
    %2066 = vmatpush2.bf16.msra.mxu0 0
    %2067 = vmatprep.subr.bf16.mxu0 0
    %2068 = vmatpush2.bf16.msra.mxu0 0
    %2069 = vmatprep.subr.bf16.mxu0 0
    %2070 = vmatpush2.bf16.msra.mxu0 0
    %2071 = vmatprep.subr.bf16.mxu0 0
    %2072 = vmatpush2.bf16.msra.mxu0 0
    %2073 = vmatprep.subr.bf16.mxu0 0
    %2074 = vmatpush2.bf16.msra.mxu0 0
    %2075 = vmatprep.mubr.bf16.mxu0 0
    %2076 = vmatmul.mubr.bf16.gmra.mxu0 %v2029
    %v2077 = vpop.f32.mrf.mxu0
    %v2078 = vadd.f32 %v1992, %v2077
    %v2079 = vpop.f32.mrf.mxu0
    %v2080 = vpop.f32.mrf.mxu0
    %v2081 = vadd.f32 %v1992, %v2080
    %v2082 = vpop.f32.mrf.mxu0
    %2083 = vmatprep.mubr.bf16.mxu0 0
    %2084 = vmatmul.mubr.bf16.gmra.mxu0 %v2032
    %v2085 = vpop.f32.mrf.mxu0
    %v2086 = vadd.f32 %v1992, %v2085
    %v2087 = vpop.f32.mrf.mxu0
    %v2088 = vpop.f32.mrf.mxu0
    %v2089 = vadd.f32 %v1992, %v2088
    %v2090 = vpop.f32.mrf.mxu0
    %2091 = vmatprep.mubr.bf16.mxu0 0
    %2092 = vmatmul.mubr.bf16.gmra.mxu0 %v2035
    %v2093 = vpop.f32.mrf.mxu0
    %v2094 = vadd.f32 %v1992, %v2093
    %v2095 = vpop.f32.mrf.mxu0
    %v2096 = vpop.f32.mrf.mxu0
    %v2097 = vadd.f32 %v1992, %v2096
    %v2098 = vpop.f32.mrf.mxu0
    %2099 = vmatprep.mubr.bf16.mxu0 0
    %2100 = vmatmul.mubr.bf16.gmra.mxu0 %v2038
    %v2101 = vpop.f32.mrf.mxu0
    %v2102 = vadd.f32 %v1992, %v2101
    %v2103 = vpop.f32.mrf.mxu0
    %v2104 = vpop.f32.mrf.mxu0
    %v2105 = vadd.f32 %v1992, %v2104
    %v2106 = vpop.f32.mrf.mxu0
    %2107 = vdwg.mxu0
    %vm2108 = vcmp.gt.f32.partialorder %v2078, 0.0
    %vm2109 = vcmp.gt.f32.partialorder %v2081, 0.0
    %vm2110 = vcmp.gt.f32.partialorder %v2086, 0.0
    %vm2111 = vcmp.gt.f32.partialorder %v2089, 0.0
    %vm2112 = vcmp.gt.f32.partialorder %v2094, 0.0
    %vm2113 = vcmp.gt.f32.partialorder %v2097, 0.0
    %vm2114 = vcmp.gt.f32.partialorder %v2102, 0.0
    %vm2115 = vcmp.gt.f32.partialorder %v2105, 0.0
    %v2116 = vmul.f32 %v2078, 0.2
    %v2117 = vmul.f32 %v2081, 0.2
    %v2118 = vmul.f32 %v2086, 0.2
    %v2119 = vmul.f32 %v2089, 0.2
    %v2120 = vmul.f32 %v2094, 0.2
    %v2121 = vmul.f32 %v2097, 0.2
    %v2122 = vmul.f32 %v2102, 0.2
    %v2123 = vmul.f32 %v2105, 0.2
    %v2124 = vsel %vm2108, %v2078, %v2116
    %v2125 = vsel %vm2109, %v2081, %v2117
    %v2126 = vsel %vm2110, %v2086, %v2118
    %v2127 = vsel %vm2111, %v2089, %v2119
    %v2128 = vsel %vm2112, %v2094, %v2120
    %v2129 = vsel %vm2113, %v2097, %v2121
    %v2130 = vsel %vm2114, %v2102, %v2122
    %v2131 = vsel %vm2115, %v2105, %v2123
    %vm2132 = vcmask 523264
    %v2133 = vsel %vm2132, %v2124, -inf
    %v2134 = vsel %vm2132, %v2125, -inf
    %v2135 = vsel %vm2132, %v2126, -inf
    %v2136 = vmax.f32 %v2133, %v2135
    %v2137 = vsel %vm2132, %v2127, -inf
    %v2138 = vmax.f32 %v2134, %v2137
    %v2139 = vmax.f32 %v2136, %v2138
    %v2140 = vrot.slane %v2139, 4
    %v2141 = vmax.f32 %v2139, %v2140
    %v2142 = vrot.slane %v2141, 2
    %v2143 = vmax.f32 %v2141, %v2142
    %v2144 = vrot.slane %v2143, 1
    %v2145 = vmax.f32 %v2143, %v2144
    %v2146 = vsel %vm2132, %v2128, -inf
    %v2147 = vsel %vm2132, %v2129, -inf
    %v2148 = vsel %vm2132, %v2130, -inf
    %v2149 = vmax.f32 %v2146, %v2148
    %v2150 = vsel %vm2132, %v2131, -inf
    %v2151 = vmax.f32 %v2147, %v2150
    %v2152 = vmax.f32 %v2149, %v2151
    %v2153 = vrot.slane %v2152, 4
    %v2154 = vmax.f32 %v2152, %v2153
    %v2155 = vrot.slane %v2154, 2
    %v2156 = vmax.f32 %v2154, %v2155
    %v2157 = vrot.slane %v2156, 1
    %v2158 = vmax.f32 %v2156, %v2157
    %v2159 = vsel %vm2132, %v2124, 0.0
    %v2160 = vsel %vm2132, %v2125, 0.0
    %v2161 = vadd.f32 %v2159, %v2160
    %v2162 = vsel %vm2132, %v2126, 0.0
    %v2163 = vadd.f32 %v2161, %v2162
    %v2164 = vsel %vm2132, %v2127, 0.0
    %v2165 = vadd.f32 %v2163, %v2164
    %v2166 = vrot.slane %v2165, 4
    %v2167 = vadd.f32 %v2165, %v2166
    %v2168 = vrot.slane %v2167, 2
    %v2169 = vadd.f32 %v2167, %v2168
    %v2170 = vrot.slane %v2169, 1
    %v2171 = vadd.f32 %v2169, %v2170
    %v2172 = vsel %vm2132, %v2128, 0.0
    %v2173 = vsel %vm2132, %v2129, 0.0
    %v2174 = vadd.f32 %v2172, %v2173
    %v2175 = vsel %vm2132, %v2130, 0.0
    %v2176 = vadd.f32 %v2174, %v2175
    %v2177 = vsel %vm2132, %v2131, 0.0
    %v2178 = vadd.f32 %v2176, %v2177
    %v2179 = vrot.slane %v2178, 4
    %v2180 = vadd.f32 %v2178, %v2179
    %v2181 = vrot.slane %v2180, 2
    %v2182 = vadd.f32 %v2180, %v2181
    %v2183 = vrot.slane %v2182, 1
    %v2184 = vadd.f32 %v2182, %v2183
    %v2185 = vrcp.pop 32.0
    %v2186 = vmul.f32 %v2171, %v2185
    %v2187 = vmul.f32 %v2184, %v2185
    %vm2190 = vcmask 1041409
    %v2191 = vsel %vm2190, %v2158, %v2145
    %v2195 = vsel %vm2190, %v2187, %v2186
    %2196 = vrot.lane.b32.xlu0 %v2195, 64
    %v2197 = vpop.permute.xlu0 %2196
    %v2199 = vsel %vm2132, %v2191, %v2197
    %v2200 = vpack.c.bf16 %v2199, %v2199
    %v2201 = vld [vmem:[#allocation2] sm:$0xff]
    %v2202 = vld [vmem:[#allocation2 + $0x8] sm:$0xff]
    %v2203 = vld [vmem:[#allocation2 + $0x10] sm:$0xff]
    %v2204 = vld [vmem:[#allocation2 + $0x18] sm:$0xff]
    %v2205 = vld [vmem:[#allocation2 + $0x20] sm:$0xff]
    %v2206 = vld [vmem:[#allocation2 + $0x28] sm:$0xff]
    %v2207 = vld [vmem:[#allocation2 + $0x30] sm:$0xff]
    %v2208 = vld [vmem:[#allocation2 + $0x38] sm:$0xff]
    %v2209 = vld [vmem:[#allocation2 + $0x40] sm:$0xff]
    %v2210 = vld [vmem:[#allocation2 + $0x48] sm:$0xff]
    %v2211 = vld [vmem:[#allocation2 + $0x50] sm:$0xff]
    %v2212 = vld [vmem:[#allocation2 + $0x58] sm:$0xff]
    %v2213 = vld [vmem:[#allocation2 + $0x60] sm:$0xff]
    %v2214 = vld [vmem:[#allocation2 + $0x68] sm:$0xff]
    %v2215 = vld [vmem:[#allocation2 + $0x70] sm:$0xff]
    %v2216 = vld [vmem:[#allocation2 + $0x78] sm:$0xff]
    %v2217 = vld [vmem:[#allocation2 + $0x80] sm:$0xff]
    %v2218 = vld [vmem:[#allocation2 + $0x88] sm:$0xff]
    %v2219 = vld [vmem:[#allocation2 + $0x90] sm:$0xff]
    %v2220 = vld [vmem:[#allocation2 + $0x98] sm:$0xff]
    %v2221 = vld [vmem:[#allocation2 + $0xa0] sm:$0xff]
    %v2222 = vld [vmem:[#allocation2 + $0xa8] sm:$0xff]
    %v2223 = vld [vmem:[#allocation2 + $0xb0] sm:$0xff]
    %v2224 = vld [vmem:[#allocation2 + $0xb8] sm:$0xff]
    %v2225 = vld [vmem:[#allocation2 + $0xc0] sm:$0xff]
    %v2226 = vld [vmem:[#allocation2 + $0xc8] sm:$0xff]
    %v2227 = vld [vmem:[#allocation2 + $0xd0] sm:$0xff]
    %v2228 = vld [vmem:[#allocation2 + $0xd8] sm:$0xff]
    %v2229 = vld [vmem:[#allocation2 + $0xe0] sm:$0xff]
    %v2230 = vld [vmem:[#allocation2 + $0xe8] sm:$0xff]
    %v2231 = vld [vmem:[#allocation2 + $0xf0] sm:$0xff]
    %v2232 = vld [vmem:[#allocation2 + $0xf8] sm:$0xff]
    %v2233 = vld [vmem:[%s61] sm:$0xf]
    %v2235 = vlaneseq
    %v2236 = vshrl.u32 %v2235, 7
    %v2237 = vsub.s32 0, %v2236
    %v2238 = vrot.slane %v2233, %v2237
    %v2239 = vlaneseq
    %v2240 = vshrl.u32 %v2239, 7
    %v2241 = vsub.s32 1, %v2240
    %v2242 = vrot.slane %v2233, %v2241
    %v2243 = vlaneseq
    %v2244 = vshrl.u32 %v2243, 7
    %v2245 = vsub.s32 2, %v2244
    %v2246 = vrot.slane %v2233, %v2245
    %v2247 = vlaneseq
    %v2248 = vshrl.u32 %v2247, 7
    %v2249 = vsub.s32 3, %v2248
    %v2250 = vrot.slane %v2233, %v2249
    %v2287 = vunpack.c.l.b16 %v2201
    %v2288 = vunpack.c.h.b16 %v2201
    %v2289 = vunpack.c.l.b16 %v2202
    %v2290 = vunpack.c.h.b16 %v2202
    %v2291 = vunpack.c.l.b16 %v2203
    %v2292 = vunpack.c.h.b16 %v2203
    %v2293 = vunpack.c.l.b16 %v2204
    %v2294 = vunpack.c.h.b16 %v2204
    %v2295 = vunpack.c.l.b16 %v2205
    %v2296 = vunpack.c.h.b16 %v2205
    %v2297 = vunpack.c.l.b16 %v2206
    %v2298 = vunpack.c.h.b16 %v2206
    %v2299 = vunpack.c.l.b16 %v2207
    %v2300 = vunpack.c.h.b16 %v2207
    %v2301 = vunpack.c.l.b16 %v2208
    %v2302 = vunpack.c.h.b16 %v2208
    %v2303 = vunpack.c.l.b16 %v2209
    %v2304 = vunpack.c.h.b16 %v2209
    %v2305 = vunpack.c.l.b16 %v2210
    %v2306 = vunpack.c.h.b16 %v2210
    %v2307 = vunpack.c.l.b16 %v2211
    %v2308 = vunpack.c.h.b16 %v2211
    %v2309 = vunpack.c.l.b16 %v2212
    %v2310 = vunpack.c.h.b16 %v2212
    %v2311 = vunpack.c.l.b16 %v2213
    %v2312 = vunpack.c.h.b16 %v2213
    %v2313 = vunpack.c.l.b16 %v2214
    %v2314 = vunpack.c.h.b16 %v2214
    %v2315 = vunpack.c.l.b16 %v2215
    %v2316 = vunpack.c.h.b16 %v2215
    %v2317 = vunpack.c.l.b16 %v2216
    %v2318 = vunpack.c.h.b16 %v2216
    %v2319 = vunpack.c.l.b16 %v2217
    %v2320 = vunpack.c.h.b16 %v2217
    %v2321 = vunpack.c.l.b16 %v2218
    %v2322 = vunpack.c.h.b16 %v2218
    %v2323 = vunpack.c.l.b16 %v2219
    %v2324 = vunpack.c.h.b16 %v2219
    %v2325 = vunpack.c.l.b16 %v2220
    %v2326 = vunpack.c.h.b16 %v2220
    %v2327 = vunpack.c.l.b16 %v2221
    %v2328 = vunpack.c.h.b16 %v2221
    %v2329 = vunpack.c.l.b16 %v2222
    %v2330 = vunpack.c.h.b16 %v2222
    %v2331 = vunpack.c.l.b16 %v2223
    %v2332 = vunpack.c.h.b16 %v2223
    %v2333 = vunpack.c.l.b16 %v2224
    %v2334 = vunpack.c.h.b16 %v2224
    %v2335 = vunpack.c.l.b16 %v2225
    %v2336 = vunpack.c.h.b16 %v2225
    %v2337 = vunpack.c.l.b16 %v2226
    %v2338 = vunpack.c.h.b16 %v2226
    %v2339 = vunpack.c.l.b16 %v2227
    %v2340 = vunpack.c.h.b16 %v2227
    %v2341 = vunpack.c.l.b16 %v2228
    %v2342 = vunpack.c.h.b16 %v2228
    %v2343 = vunpack.c.l.b16 %v2229
    %v2344 = vunpack.c.h.b16 %v2229
    %v2345 = vunpack.c.l.b16 %v2230
    %v2346 = vunpack.c.h.b16 %v2230
    %v2347 = vunpack.c.l.b16 %v2231
    %v2348 = vunpack.c.h.b16 %v2231
    %v2349 = vunpack.c.l.b16 %v2232
    %v2350 = vunpack.c.h.b16 %v2232
    %v2351 = vpack.c.b16 %v2291, %v2287
    %v2352 = vpack.c.b16 %v2292, %v2288
    %v2353 = vpack.c.b16 %v2293, %v2289
    %v2354 = vpack.c.b16 %v2294, %v2290
    %v2355 = vpack.c.b16 %v2299, %v2295
    %v2356 = vpack.c.b16 %v2300, %v2296
    %v2357 = vpack.c.b16 %v2301, %v2297
    %v2358 = vpack.c.b16 %v2302, %v2298
    %v2359 = vpack.c.b16 %v2307, %v2303
    %v2360 = vpack.c.b16 %v2308, %v2304
    %v2361 = vpack.c.b16 %v2309, %v2305
    %v2362 = vpack.c.b16 %v2310, %v2306
    %v2363 = vpack.c.b16 %v2315, %v2311
    %v2364 = vpack.c.b16 %v2316, %v2312
    %v2365 = vpack.c.b16 %v2317, %v2313
    %v2366 = vpack.c.b16 %v2318, %v2314
    %v2367 = vpack.c.b16 %v2323, %v2319
    %v2368 = vpack.c.b16 %v2324, %v2320
    %v2369 = vpack.c.b16 %v2325, %v2321
    %v2370 = vpack.c.b16 %v2326, %v2322
    %v2371 = vpack.c.b16 %v2331, %v2327
    %v2372 = vpack.c.b16 %v2332, %v2328
    %v2373 = vpack.c.b16 %v2333, %v2329
    %v2374 = vpack.c.b16 %v2334, %v2330
    %v2375 = vpack.c.b16 %v2339, %v2335
    %v2376 = vpack.c.b16 %v2340, %v2336
    %v2377 = vpack.c.b16 %v2341, %v2337
    %v2378 = vpack.c.b16 %v2342, %v2338
    %v2379 = vpack.c.b16 %v2347, %v2343
    %v2380 = vpack.c.b16 %v2348, %v2344
    %v2381 = vpack.c.b16 %v2349, %v2345
    %v2382 = vpack.c.b16 %v2350, %v2346
    %2415 = vmatprep.subr.bf16.mxu0 %v2380
    %2416 = vmatpush1.bf16.msra.mxu0 %v2379
    %2417 = vmatprep.subr.bf16.mxu0 %v2376
    %2418 = vmatpush1.bf16.msra.mxu0 %v2375
    %2419 = vmatprep.subr.bf16.mxu0 %v2372
    %2420 = vmatpush1.bf16.msra.mxu0 %v2371
    %2421 = vmatprep.subr.bf16.mxu0 %v2368
    %2422 = vmatpush1.bf16.msra.mxu0 %v2367
    %2423 = vmatprep.subr.bf16.mxu0 %v2364
    %2424 = vmatpush1.bf16.msra.mxu0 %v2363
    %2425 = vmatprep.subr.bf16.mxu0 %v2360
    %2426 = vmatpush1.bf16.msra.mxu0 %v2359
    %2427 = vmatprep.subr.bf16.mxu0 %v2356
    %2428 = vmatpush1.bf16.msra.mxu0 %v2355
    %2429 = vmatprep.subr.bf16.mxu0 %v2352
    %2430 = vmatpush1.bf16.msra.mxu0 %v2351
    %2431 = vmatprep.subr.bf16.mxu0 0
    %2432 = vmatpush2.bf16.msra.mxu0 0
    %2433 = vmatprep.subr.bf16.mxu0 0
    %2434 = vmatpush2.bf16.msra.mxu0 0
    %2435 = vmatprep.subr.bf16.mxu0 0
    %2436 = vmatpush2.bf16.msra.mxu0 0
    %2437 = vmatprep.subr.bf16.mxu0 0
    %2438 = vmatpush2.bf16.msra.mxu0 0
    %2439 = vmatprep.subr.bf16.mxu0 0
    %2440 = vmatpush2.bf16.msra.mxu0 0
    %2441 = vmatprep.subr.bf16.mxu0 0
    %2442 = vmatpush2.bf16.msra.mxu0 0
    %2443 = vmatprep.subr.bf16.mxu0 0
    %2444 = vmatpush2.bf16.msra.mxu0 0
    %2445 = vmatprep.subr.bf16.mxu0 0
    %2446 = vmatpush2.bf16.msra.mxu0 0
    %2447 = vmatprep.mubr.bf16.mxu0 0
    %2448 = vmatmul.mubr.bf16.gmra.mxu0 %v2200
    %v2449 = vpop.f32.mrf.mxu0
    %v2450 = vadd.f32 %v2238, %v2449
    %v2451 = vpop.f32.mrf.mxu0
    %v2452 = vadd.f32 %v2242, %v2451
    %v2453 = vpop.f32.mrf.mxu0
    %v2454 = vpop.f32.mrf.mxu0
    %2455 = vdwg.mxu0
    %2456 = vmatprep.subr.bf16.mxu0 %v2382
    %2457 = vmatpush1.bf16.msra.mxu0 %v2381
    %2458 = vmatprep.subr.bf16.mxu0 %v2378
    %2459 = vmatpush1.bf16.msra.mxu0 %v2377
    %2460 = vmatprep.subr.bf16.mxu0 %v2374
    %2461 = vmatpush1.bf16.msra.mxu0 %v2373
    %2462 = vmatprep.subr.bf16.mxu0 %v2370
    %2463 = vmatpush1.bf16.msra.mxu0 %v2369
    %2464 = vmatprep.subr.bf16.mxu0 %v2366
    %2465 = vmatpush1.bf16.msra.mxu0 %v2365
    %2466 = vmatprep.subr.bf16.mxu0 %v2362
    %2467 = vmatpush1.bf16.msra.mxu0 %v2361
    %2468 = vmatprep.subr.bf16.mxu0 %v2358
    %2469 = vmatpush1.bf16.msra.mxu0 %v2357
    %2470 = vmatprep.subr.bf16.mxu0 %v2354
    %2471 = vmatpush1.bf16.msra.mxu0 %v2353
    %2472 = vmatprep.subr.bf16.mxu0 0
    %2473 = vmatpush2.bf16.msra.mxu0 0
    %2474 = vmatprep.subr.bf16.mxu0 0
    %2475 = vmatpush2.bf16.msra.mxu0 0
    %2476 = vmatprep.subr.bf16.mxu0 0
    %2477 = vmatpush2.bf16.msra.mxu0 0
    %2478 = vmatprep.subr.bf16.mxu0 0
    %2479 = vmatpush2.bf16.msra.mxu0 0
    %2480 = vmatprep.subr.bf16.mxu0 0
    %2481 = vmatpush2.bf16.msra.mxu0 0
    %2482 = vmatprep.subr.bf16.mxu0 0
    %2483 = vmatpush2.bf16.msra.mxu0 0
    %2484 = vmatprep.subr.bf16.mxu0 0
    %2485 = vmatpush2.bf16.msra.mxu0 0
    %2486 = vmatprep.subr.bf16.mxu0 0
    %2487 = vmatpush2.bf16.msra.mxu0 0
    %2488 = vmatprep.mubr.bf16.mxu0 0
    %2489 = vmatmul.mubr.bf16.gmra.mxu0 %v2200
    %v2490 = vpop.f32.mrf.mxu0
    %v2491 = vadd.f32 %v2246, %v2490
    %v2492 = vpop.f32.mrf.mxu0
    %v2493 = vadd.f32 %v2250, %v2492
    %v2494 = vpop.f32.mrf.mxu0
    %v2495 = vpop.f32.mrf.mxu0
    %2496 = vdwg.mxu0
    %vm2497 = vcmp.gt.f32.partialorder %v2450, 0.0
    %vm2498 = vcmp.gt.f32.partialorder %v2452, 0.0
    %vm2499 = vcmp.gt.f32.partialorder %v2491, 0.0
    %vm2500 = vcmp.gt.f32.partialorder %v2493, 0.0
    %v2501 = vmul.f32 %v2450, 0.2
    %v2502 = vmul.f32 %v2452, 0.2
    %v2503 = vmul.f32 %v2491, 0.2
    %v2504 = vmul.f32 %v2493, 0.2
    %v2505 = vsel %vm2497, %v2450, %v2501
    %v2506 = vsel %vm2498, %v2452, %v2502
    %v2507 = vsel %vm2499, %v2491, %v2503
    %v2508 = vsel %vm2500, %v2493, %v2504
    %v2509 = vpack.c.bf16 %v2505, %v2505
    %v2510 = vpack.c.bf16 %v2506, %v2506
    %v2511 = vpack.c.bf16 %v2507, %v2507
    %v2512 = vpack.c.bf16 %v2508, %v2508
    %v2513 = vld [vmem:[#allocation5] sm:$0xff]
    %v2514 = vld [vmem:[#allocation5 + $0x8] sm:$0xff]
    %v2515 = vld [vmem:[#allocation5 + $0x10] sm:$0xff]
    %v2516 = vld [vmem:[#allocation5 + $0x18] sm:$0xff]
    %v2517 = vld [vmem:[#allocation5 + $0x20] sm:$0xff]
    %v2518 = vld [vmem:[#allocation5 + $0x28] sm:$0xff]
    %v2519 = vld [vmem:[#allocation5 + $0x30] sm:$0xff]
    %v2520 = vld [vmem:[#allocation5 + $0x38] sm:$0xff]
    %v2521 = vld [vmem:[#allocation5 + $0x40] sm:$0xff]
    %v2522 = vld [vmem:[#allocation5 + $0x48] sm:$0xff]
    %v2523 = vld [vmem:[#allocation5 + $0x50] sm:$0xff]
    %v2524 = vld [vmem:[#allocation5 + $0x58] sm:$0xff]
    %v2525 = vld [vmem:[#allocation5 + $0x60] sm:$0xff]
    %v2526 = vld [vmem:[#allocation5 + $0x68] sm:$0xff]
    %v2527 = vld [vmem:[#allocation5 + $0x70] sm:$0xff]
    %v2528 = vld [vmem:[#allocation5 + $0x78] sm:$0xff]
    %v2529 = vld [vmem:[#allocation5 + $0x80] sm:$0xff]
    %v2530 = vld [vmem:[#allocation5 + $0x88] sm:$0xff]
    %v2531 = vld [vmem:[#allocation5 + $0x90] sm:$0xff]
    %v2532 = vld [vmem:[#allocation5 + $0x98] sm:$0xff]
    %v2533 = vld [vmem:[#allocation5 + $0xa0] sm:$0xff]
    %v2534 = vld [vmem:[#allocation5 + $0xa8] sm:$0xff]
    %v2535 = vld [vmem:[#allocation5 + $0xb0] sm:$0xff]
    %v2536 = vld [vmem:[#allocation5 + $0xb8] sm:$0xff]
    %v2537 = vld [vmem:[#allocation5 + $0xc0] sm:$0xff]
    %v2538 = vld [vmem:[#allocation5 + $0xc8] sm:$0xff]
    %v2539 = vld [vmem:[#allocation5 + $0xd0] sm:$0xff]
    %v2540 = vld [vmem:[#allocation5 + $0xd8] sm:$0xff]
    %v2541 = vld [vmem:[#allocation5 + $0xe0] sm:$0xff]
    %v2542 = vld [vmem:[#allocation5 + $0xe8] sm:$0xff]
    %v2543 = vld [vmem:[#allocation5 + $0xf0] sm:$0xff]
    %v2544 = vld [vmem:[#allocation5 + $0xf8] sm:$0xff]
    %v2545 = vld [vmem:[#allocation5 + $0x100] sm:$0xff]
    %v2546 = vld [vmem:[#allocation5 + $0x108] sm:$0xff]
    %v2547 = vld [vmem:[#allocation5 + $0x110] sm:$0xff]
    %v2548 = vld [vmem:[#allocation5 + $0x118] sm:$0xff]
    %v2549 = vld [vmem:[#allocation5 + $0x120] sm:$0xff]
    %v2550 = vld [vmem:[#allocation5 + $0x128] sm:$0xff]
    %v2551 = vld [vmem:[#allocation5 + $0x130] sm:$0xff]
    %v2552 = vld [vmem:[#allocation5 + $0x138] sm:$0xff]
    %v2553 = vld [vmem:[#allocation5 + $0x140] sm:$0xff]
    %v2554 = vld [vmem:[#allocation5 + $0x148] sm:$0xff]
    %v2555 = vld [vmem:[#allocation5 + $0x150] sm:$0xff]
    %v2556 = vld [vmem:[#allocation5 + $0x158] sm:$0xff]
    %v2557 = vld [vmem:[#allocation5 + $0x160] sm:$0xff]
    %v2558 = vld [vmem:[#allocation5 + $0x168] sm:$0xff]
    %v2559 = vld [vmem:[#allocation5 + $0x170] sm:$0xff]
    %v2560 = vld [vmem:[#allocation5 + $0x178] sm:$0xff]
    %v2561 = vld [vmem:[#allocation5 + $0x180] sm:$0xff]
    %v2562 = vld [vmem:[#allocation5 + $0x188] sm:$0xff]
    %v2563 = vld [vmem:[#allocation5 + $0x190] sm:$0xff]
    %v2564 = vld [vmem:[#allocation5 + $0x198] sm:$0xff]
    %v2565 = vld [vmem:[#allocation5 + $0x1a0] sm:$0xff]
    %v2566 = vld [vmem:[#allocation5 + $0x1a8] sm:$0xff]
    %v2567 = vld [vmem:[#allocation5 + $0x1b0] sm:$0xff]
    %v2568 = vld [vmem:[#allocation5 + $0x1b8] sm:$0xff]
    %v2569 = vld [vmem:[#allocation5 + $0x1c0] sm:$0xff]
    %v2570 = vld [vmem:[#allocation5 + $0x1c8] sm:$0xff]
    %v2571 = vld [vmem:[#allocation5 + $0x1d0] sm:$0xff]
    %v2572 = vld [vmem:[#allocation5 + $0x1d8] sm:$0xff]
    %v2573 = vld [vmem:[#allocation5 + $0x1e0] sm:$0xff]
    %v2574 = vld [vmem:[#allocation5 + $0x1e8] sm:$0xff]
    %v2575 = vld [vmem:[#allocation5 + $0x1f0] sm:$0xff]
    %v2576 = vld [vmem:[#allocation5 + $0x1f8] sm:$0xff]
    %v2577 = vld [vmem:[%s65] sm:$0x3]
    %v2579 = vlaneseq
    %v2580 = vshrl.u32 %v2579, 7
    %v2581 = vsub.s32 0, %v2580
    %v2582 = vrot.slane %v2577, %v2581
    %v2583 = vlaneseq
    %v2584 = vshrl.u32 %v2583, 7
    %v2585 = vsub.s32 1, %v2584
    %v2586 = vrot.slane %v2577, %v2585
    %v2653 = vunpack.c.l.b16 %v2513
    %v2654 = vunpack.c.h.b16 %v2513
    %v2655 = vunpack.c.l.b16 %v2514
    %v2656 = vunpack.c.h.b16 %v2514
    %v2657 = vunpack.c.l.b16 %v2515
    %v2658 = vunpack.c.h.b16 %v2515
    %v2659 = vunpack.c.l.b16 %v2516
    %v2660 = vunpack.c.h.b16 %v2516
    %v2661 = vunpack.c.l.b16 %v2517
    %v2662 = vunpack.c.h.b16 %v2517
    %v2663 = vunpack.c.l.b16 %v2518
    %v2664 = vunpack.c.h.b16 %v2518
    %v2665 = vunpack.c.l.b16 %v2519
    %v2666 = vunpack.c.h.b16 %v2519
    %v2667 = vunpack.c.l.b16 %v2520
    %v2668 = vunpack.c.h.b16 %v2520
    %v2669 = vunpack.c.l.b16 %v2521
    %v2670 = vunpack.c.h.b16 %v2521
    %v2671 = vunpack.c.l.b16 %v2522
    %v2672 = vunpack.c.h.b16 %v2522
    %v2673 = vunpack.c.l.b16 %v2523
    %v2674 = vunpack.c.h.b16 %v2523
    %v2675 = vunpack.c.l.b16 %v2524
    %v2676 = vunpack.c.h.b16 %v2524
    %v2677 = vunpack.c.l.b16 %v2525
    %v2678 = vunpack.c.h.b16 %v2525
    %v2679 = vunpack.c.l.b16 %v2526
    %v2680 = vunpack.c.h.b16 %v2526
    %v2681 = vunpack.c.l.b16 %v2527
    %v2682 = vunpack.c.h.b16 %v2527
    %v2683 = vunpack.c.l.b16 %v2528
    %v2684 = vunpack.c.h.b16 %v2528
    %v2685 = vunpack.c.l.b16 %v2529
    %v2686 = vunpack.c.h.b16 %v2529
    %v2687 = vunpack.c.l.b16 %v2530
    %v2688 = vunpack.c.h.b16 %v2530
    %v2689 = vunpack.c.l.b16 %v2531
    %v2690 = vunpack.c.h.b16 %v2531
    %v2691 = vunpack.c.l.b16 %v2532
    %v2692 = vunpack.c.h.b16 %v2532
    %v2693 = vunpack.c.l.b16 %v2533
    %v2694 = vunpack.c.h.b16 %v2533
    %v2695 = vunpack.c.l.b16 %v2534
    %v2696 = vunpack.c.h.b16 %v2534
    %v2697 = vunpack.c.l.b16 %v2535
    %v2698 = vunpack.c.h.b16 %v2535
    %v2699 = vunpack.c.l.b16 %v2536
    %v2700 = vunpack.c.h.b16 %v2536
    %v2701 = vunpack.c.l.b16 %v2537
    %v2702 = vunpack.c.h.b16 %v2537
    %v2703 = vunpack.c.l.b16 %v2538
    %v2704 = vunpack.c.h.b16 %v2538
    %v2705 = vunpack.c.l.b16 %v2539
    %v2706 = vunpack.c.h.b16 %v2539
    %v2707 = vunpack.c.l.b16 %v2540
    %v2708 = vunpack.c.h.b16 %v2540
    %v2709 = vunpack.c.l.b16 %v2541
    %v2710 = vunpack.c.h.b16 %v2541
    %v2711 = vunpack.c.l.b16 %v2542
    %v2712 = vunpack.c.h.b16 %v2542
    %v2713 = vunpack.c.l.b16 %v2543
    %v2714 = vunpack.c.h.b16 %v2543
    %v2715 = vunpack.c.l.b16 %v2544
    %v2716 = vunpack.c.h.b16 %v2544
    %v2717 = vunpack.c.l.b16 %v2545
    %v2718 = vunpack.c.h.b16 %v2545
    %v2719 = vunpack.c.l.b16 %v2546
    %v2720 = vunpack.c.h.b16 %v2546
    %v2721 = vunpack.c.l.b16 %v2547
    %v2722 = vunpack.c.h.b16 %v2547
    %v2723 = vunpack.c.l.b16 %v2548
    %v2724 = vunpack.c.h.b16 %v2548
    %v2725 = vunpack.c.l.b16 %v2549
    %v2726 = vunpack.c.h.b16 %v2549
    %v2727 = vunpack.c.l.b16 %v2550
    %v2728 = vunpack.c.h.b16 %v2550
    %v2729 = vunpack.c.l.b16 %v2551
    %v2730 = vunpack.c.h.b16 %v2551
    %v2731 = vunpack.c.l.b16 %v2552
    %v2732 = vunpack.c.h.b16 %v2552
    %v2733 = vunpack.c.l.b16 %v2553
    %v2734 = vunpack.c.h.b16 %v2553
    %v2735 = vunpack.c.l.b16 %v2554
    %v2736 = vunpack.c.h.b16 %v2554
    %v2737 = vunpack.c.l.b16 %v2555
    %v2738 = vunpack.c.h.b16 %v2555
    %v2739 = vunpack.c.l.b16 %v2556
    %v2740 = vunpack.c.h.b16 %v2556
    %v2741 = vunpack.c.l.b16 %v2557
    %v2742 = vunpack.c.h.b16 %v2557
    %v2743 = vunpack.c.l.b16 %v2558
    %v2744 = vunpack.c.h.b16 %v2558
    %v2745 = vunpack.c.l.b16 %v2559
    %v2746 = vunpack.c.h.b16 %v2559
    %v2747 = vunpack.c.l.b16 %v2560
    %v2748 = vunpack.c.h.b16 %v2560
    %v2749 = vunpack.c.l.b16 %v2561
    %v2750 = vunpack.c.h.b16 %v2561
    %v2751 = vunpack.c.l.b16 %v2562
    %v2752 = vunpack.c.h.b16 %v2562
    %v2753 = vunpack.c.l.b16 %v2563
    %v2754 = vunpack.c.h.b16 %v2563
    %v2755 = vunpack.c.l.b16 %v2564
    %v2756 = vunpack.c.h.b16 %v2564
    %v2757 = vunpack.c.l.b16 %v2565
    %v2758 = vunpack.c.h.b16 %v2565
    %v2759 = vunpack.c.l.b16 %v2566
    %v2760 = vunpack.c.h.b16 %v2566
    %v2761 = vunpack.c.l.b16 %v2567
    %v2762 = vunpack.c.h.b16 %v2567
    %v2763 = vunpack.c.l.b16 %v2568
    %v2764 = vunpack.c.h.b16 %v2568
    %v2765 = vunpack.c.l.b16 %v2569
    %v2766 = vunpack.c.h.b16 %v2569
    %v2767 = vunpack.c.l.b16 %v2570
    %v2768 = vunpack.c.h.b16 %v2570
    %v2769 = vunpack.c.l.b16 %v2571
    %v2770 = vunpack.c.h.b16 %v2571
    %v2771 = vunpack.c.l.b16 %v2572
    %v2772 = vunpack.c.h.b16 %v2572
    %v2773 = vunpack.c.l.b16 %v2573
    %v2774 = vunpack.c.h.b16 %v2573
    %v2775 = vunpack.c.l.b16 %v2574
    %v2776 = vunpack.c.h.b16 %v2574
    %v2777 = vunpack.c.l.b16 %v2575
    %v2778 = vunpack.c.h.b16 %v2575
    %v2779 = vunpack.c.l.b16 %v2576
    %v2780 = vunpack.c.h.b16 %v2576
    %v2781 = vpack.c.b16 %v2655, %v2653
    %v2782 = vpack.c.b16 %v2656, %v2654
    %v2783 = vpack.c.b16 %v2659, %v2657
    %v2784 = vpack.c.b16 %v2660, %v2658
    %v2785 = vpack.c.b16 %v2663, %v2661
    %v2786 = vpack.c.b16 %v2664, %v2662
    %v2787 = vpack.c.b16 %v2667, %v2665
    %v2788 = vpack.c.b16 %v2668, %v2666
    %v2789 = vpack.c.b16 %v2671, %v2669
    %v2790 = vpack.c.b16 %v2672, %v2670
    %v2791 = vpack.c.b16 %v2675, %v2673
    %v2792 = vpack.c.b16 %v2676, %v2674
    %v2793 = vpack.c.b16 %v2679, %v2677
    %v2794 = vpack.c.b16 %v2680, %v2678
    %v2795 = vpack.c.b16 %v2683, %v2681
    %v2796 = vpack.c.b16 %v2684, %v2682
    %v2797 = vpack.c.b16 %v2687, %v2685
    %v2798 = vpack.c.b16 %v2688, %v2686
    %v2799 = vpack.c.b16 %v2691, %v2689
    %v2800 = vpack.c.b16 %v2692, %v2690
    %v2801 = vpack.c.b16 %v2695, %v2693
    %v2802 = vpack.c.b16 %v2696, %v2694
    %v2803 = vpack.c.b16 %v2699, %v2697
    %v2804 = vpack.c.b16 %v2700, %v2698
    %v2805 = vpack.c.b16 %v2703, %v2701
    %v2806 = vpack.c.b16 %v2704, %v2702
    %v2807 = vpack.c.b16 %v2707, %v2705
    %v2808 = vpack.c.b16 %v2708, %v2706
    %v2809 = vpack.c.b16 %v2711, %v2709
    %v2810 = vpack.c.b16 %v2712, %v2710
    %v2811 = vpack.c.b16 %v2715, %v2713
    %v2812 = vpack.c.b16 %v2716, %v2714
    %v2813 = vpack.c.b16 %v2719, %v2717
    %v2814 = vpack.c.b16 %v2720, %v2718
    %v2815 = vpack.c.b16 %v2723, %v2721
    %v2816 = vpack.c.b16 %v2724, %v2722
    %v2817 = vpack.c.b16 %v2727, %v2725
    %v2818 = vpack.c.b16 %v2728, %v2726
    %v2819 = vpack.c.b16 %v2731, %v2729
    %v2820 = vpack.c.b16 %v2732, %v2730
    %v2821 = vpack.c.b16 %v2735, %v2733
    %v2822 = vpack.c.b16 %v2736, %v2734
    %v2823 = vpack.c.b16 %v2739, %v2737
    %v2824 = vpack.c.b16 %v2740, %v2738
    %v2825 = vpack.c.b16 %v2743, %v2741
    %v2826 = vpack.c.b16 %v2744, %v2742
    %v2827 = vpack.c.b16 %v2747, %v2745
    %v2828 = vpack.c.b16 %v2748, %v2746
    %v2829 = vpack.c.b16 %v2751, %v2749
    %v2830 = vpack.c.b16 %v2752, %v2750
    %v2831 = vpack.c.b16 %v2755, %v2753
    %v2832 = vpack.c.b16 %v2756, %v2754
    %v2833 = vpack.c.b16 %v2759, %v2757
    %v2834 = vpack.c.b16 %v2760, %v2758
    %v2835 = vpack.c.b16 %v2763, %v2761
    %v2836 = vpack.c.b16 %v2764, %v2762
    %v2837 = vpack.c.b16 %v2767, %v2765
    %v2838 = vpack.c.b16 %v2768, %v2766
    %v2839 = vpack.c.b16 %v2771, %v2769
    %v2840 = vpack.c.b16 %v2772, %v2770
    %v2841 = vpack.c.b16 %v2775, %v2773
    %v2842 = vpack.c.b16 %v2776, %v2774
    %v2843 = vpack.c.b16 %v2779, %v2777
    %v2844 = vpack.c.b16 %v2780, %v2778
    %2909 = vmatprep.subr.bf16.mxu0 %v2796
    %2910 = vmatpush1.bf16.msra.mxu0 %v2795
    %2911 = vmatprep.subr.bf16.mxu0 %v2794
    %2912 = vmatpush1.bf16.msra.mxu0 %v2793
    %2913 = vmatprep.subr.bf16.mxu0 %v2792
    %2914 = vmatpush1.bf16.msra.mxu0 %v2791
    %2915 = vmatprep.subr.bf16.mxu0 %v2790
    %2916 = vmatpush1.bf16.msra.mxu0 %v2789
    %2917 = vmatprep.subr.bf16.mxu0 %v2788
    %2918 = vmatpush1.bf16.msra.mxu0 %v2787
    %2919 = vmatprep.subr.bf16.mxu0 %v2786
    %2920 = vmatpush1.bf16.msra.mxu0 %v2785
    %2921 = vmatprep.subr.bf16.mxu0 %v2784
    %2922 = vmatpush1.bf16.msra.mxu0 %v2783
    %2923 = vmatprep.subr.bf16.mxu0 %v2782
    %2924 = vmatpush1.bf16.msra.mxu0 %v2781
    %2925 = vmatprep.subr.bf16.mxu0 %v2812
    %2926 = vmatpush2.bf16.msra.mxu0 %v2811
    %2927 = vmatprep.subr.bf16.mxu0 %v2810
    %2928 = vmatpush2.bf16.msra.mxu0 %v2809
    %2929 = vmatprep.subr.bf16.mxu0 %v2808
    %2930 = vmatpush2.bf16.msra.mxu0 %v2807
    %2931 = vmatprep.subr.bf16.mxu0 %v2806
    %2932 = vmatpush2.bf16.msra.mxu0 %v2805
    %2933 = vmatprep.subr.bf16.mxu0 %v2804
    %2934 = vmatpush2.bf16.msra.mxu0 %v2803
    %2935 = vmatprep.subr.bf16.mxu0 %v2802
    %2936 = vmatpush2.bf16.msra.mxu0 %v2801
    %2937 = vmatprep.subr.bf16.mxu0 %v2800
    %2938 = vmatpush2.bf16.msra.mxu0 %v2799
    %2939 = vmatprep.subr.bf16.mxu0 %v2798
    %2940 = vmatpush2.bf16.msra.mxu0 %v2797
    %2941 = vmatprep.mubr.bf16.mxu0 %v2510
    %2942 = vmatmul.mubr.bf16.gmra.mxu0 %v2509
    %v2943 = vpop.f32.mrf.mxu0
    %v2944 = vadd.f32 %v2582, %v2943
    %v2945 = vpop.f32.mrf.mxu0
    %v2946 = vadd.f32 %v2586, %v2945
    %v2947 = vpop.f32.mrf.mxu0
    %v2948 = vpop.f32.mrf.mxu0
    %2949 = vdwg.mxu0
    %2950 = vmatprep.subr.bf16.mxu0 %v2828
    %2951 = vmatpush1.bf16.msra.mxu0 %v2827
    %2952 = vmatprep.subr.bf16.mxu0 %v2826
    %2953 = vmatpush1.bf16.msra.mxu0 %v2825
    %2954 = vmatprep.subr.bf16.mxu0 %v2824
    %2955 = vmatpush1.bf16.msra.mxu0 %v2823
    %2956 = vmatprep.subr.bf16.mxu0 %v2822
    %2957 = vmatpush1.bf16.msra.mxu0 %v2821
    %2958 = vmatprep.subr.bf16.mxu0 %v2820
    %2959 = vmatpush1.bf16.msra.mxu0 %v2819
    %2960 = vmatprep.subr.bf16.mxu0 %v2818
    %2961 = vmatpush1.bf16.msra.mxu0 %v2817
    %2962 = vmatprep.subr.bf16.mxu0 %v2816
    %2963 = vmatpush1.bf16.msra.mxu0 %v2815
    %2964 = vmatprep.subr.bf16.mxu0 %v2814
    %2965 = vmatpush1.bf16.msra.mxu0 %v2813
    %2966 = vmatprep.subr.bf16.mxu0 %v2844
    %2967 = vmatpush2.bf16.msra.mxu0 %v2843
    %2968 = vmatprep.subr.bf16.mxu0 %v2842
    %2969 = vmatpush2.bf16.msra.mxu0 %v2841
    %2970 = vmatprep.subr.bf16.mxu0 %v2840
    %2971 = vmatpush2.bf16.msra.mxu0 %v2839
    %2972 = vmatprep.subr.bf16.mxu0 %v2838
    %2973 = vmatpush2.bf16.msra.mxu0 %v2837
    %2974 = vmatprep.subr.bf16.mxu0 %v2836
    %2975 = vmatpush2.bf16.msra.mxu0 %v2835
    %2976 = vmatprep.subr.bf16.mxu0 %v2834
    %2977 = vmatpush2.bf16.msra.mxu0 %v2833
    %2978 = vmatprep.subr.bf16.mxu0 %v2832
    %2979 = vmatpush2.bf16.msra.mxu0 %v2831
    %2980 = vmatprep.subr.bf16.mxu0 %v2830
    %2981 = vmatpush2.bf16.msra.mxu0 %v2829
    %2982 = vmatprep.mubr.bf16.mxu0 %v2512
    %2983 = vmatmul.mubr.bf16.gmra.mxu0 %v2511
    %v2984 = vpop.f32.mrf.mxu0
    %v2985 = vadd.f32 %v2944, %v2984
    %v2986 = vpop.f32.mrf.mxu0
    %v2987 = vadd.f32 %v2946, %v2986
    %v2988 = vpop.f32.mrf.mxu0
    %v2989 = vpop.f32.mrf.mxu0
    %2990 = vdwg.mxu0
    %vm2991 = vcmp.gt.f32.partialorder %v2985, 0.0
    %vm2992 = vcmp.gt.f32.partialorder %v2987, 0.0
    %v2993 = vmul.f32 %v2985, 0.2
    %v2994 = vmul.f32 %v2987, 0.2
    %v2995 = vsel %vm2991, %v2985, %v2993
    %v2996 = vsel %vm2992, %v2987, %v2994
    %v2997 = vpack.c.bf16 %v2995, %v2995
    %v2998 = vpack.c.bf16 %v2996, %v2996
    %v2999 = vld [vmem:[%s67] sm:$0xf]
    %v3000 = vld [vmem:[%s67 + $0x4] sm:$0xf]
    %v3001 = vld [vmem:[%s67 + $0x8] sm:$0xf]
    %v3002 = vld [vmem:[%s67 + $0xc] sm:$0xf]
    %v3003 = vld [vmem:[%s67 + $0x10] sm:$0xf]
    %v3004 = vld [vmem:[%s67 + $0x14] sm:$0xf]
    %v3005 = vld [vmem:[%s67 + $0x18] sm:$0xf]
    %v3006 = vld [vmem:[%s67 + $0x1c] sm:$0xf]
    %v3007 = vld [vmem:[%s67 + $0x20] sm:$0xf]
    %v3008 = vld [vmem:[%s67 + $0x24] sm:$0xf]
    %v3009 = vld [vmem:[%s67 + $0x28] sm:$0xf]
    %v3010 = vld [vmem:[%s67 + $0x2c] sm:$0xf]
    %v3011 = vld [vmem:[%s67 + $0x30] sm:$0xf]
    %v3012 = vld [vmem:[%s67 + $0x34] sm:$0xf]
    %v3013 = vld [vmem:[%s67 + $0x38] sm:$0xf]
    %v3014 = vld [vmem:[%s67 + $0x3c] sm:$0xf]
    %v3015 = vld [vmem:[%s67 + $0x40] sm:$0xf]
    %v3016 = vld [vmem:[%s67 + $0x44] sm:$0xf]
    %v3017 = vld [vmem:[%s67 + $0x48] sm:$0xf]
    %v3018 = vld [vmem:[%s67 + $0x4c] sm:$0xf]
    %v3019 = vld [vmem:[%s67 + $0x50] sm:$0xf]
    %v3020 = vld [vmem:[%s67 + $0x54] sm:$0xf]
    %v3021 = vld [vmem:[%s67 + $0x58] sm:$0xf]
    %v3022 = vld [vmem:[%s67 + $0x5c] sm:$0xf]
    %v3023 = vld [vmem:[%s67 + $0x60] sm:$0xf]
    %v3024 = vld [vmem:[%s67 + $0x64] sm:$0xf]
    %v3025 = vld [vmem:[%s67 + $0x68] sm:$0xf]
    %v3026 = vld [vmem:[%s67 + $0x6c] sm:$0xf]
    %v3027 = vld [vmem:[%s67 + $0x70] sm:$0xf]
    %v3028 = vld [vmem:[%s67 + $0x74] sm:$0xf]
    %v3029 = vld [vmem:[%s67 + $0x78] sm:$0xf]
    %v3030 = vld [vmem:[%s67 + $0x7c] sm:$0xf]
    %v3031 = vld [vmem:[%s69] sm:$0x1]
    %v3033 = vlaneseq
    %v3034 = vshrl.u32 %v3033, 7
    %v3035 = vsub.s32 0, %v3034
    %v3036 = vrot.slane %v3031, %v3035
    %v3070 = vunpack.c.l.b16 %v2999
    %v3071 = vunpack.c.l.b16 %v3000
    %v3072 = vunpack.c.l.b16 %v3001
    %v3073 = vunpack.c.l.b16 %v3002
    %v3074 = vunpack.c.l.b16 %v3003
    %v3075 = vunpack.c.l.b16 %v3004
    %v3076 = vunpack.c.l.b16 %v3005
    %v3077 = vunpack.c.l.b16 %v3006
    %v3078 = vunpack.c.l.b16 %v3007
    %v3079 = vunpack.c.l.b16 %v3008
    %v3080 = vunpack.c.l.b16 %v3009
    %v3081 = vunpack.c.l.b16 %v3010
    %v3082 = vunpack.c.l.b16 %v3011
    %v3083 = vunpack.c.l.b16 %v3012
    %v3084 = vunpack.c.l.b16 %v3013
    %v3085 = vunpack.c.l.b16 %v3014
    %v3086 = vunpack.c.l.b16 %v3015
    %v3087 = vunpack.c.l.b16 %v3016
    %v3088 = vunpack.c.l.b16 %v3017
    %v3089 = vunpack.c.l.b16 %v3018
    %v3090 = vunpack.c.l.b16 %v3019
    %v3091 = vunpack.c.l.b16 %v3020
    %v3092 = vunpack.c.l.b16 %v3021
    %v3093 = vunpack.c.l.b16 %v3022
    %v3094 = vunpack.c.l.b16 %v3023
    %v3095 = vunpack.c.l.b16 %v3024
    %v3096 = vunpack.c.l.b16 %v3025
    %v3097 = vunpack.c.l.b16 %v3026
    %v3098 = vunpack.c.l.b16 %v3027
    %v3099 = vunpack.c.l.b16 %v3028
    %v3100 = vunpack.c.l.b16 %v3029
    %v3101 = vunpack.c.l.b16 %v3030
    %v3102 = vpack.c.b16 %v3071, %v3070
    %v3103 = vpack.c.b16 %v3073, %v3072
    %v3104 = vpack.c.b16 %v3075, %v3074
    %v3105 = vpack.c.b16 %v3077, %v3076
    %v3106 = vpack.c.b16 %v3079, %v3078
    %v3107 = vpack.c.b16 %v3081, %v3080
    %v3108 = vpack.c.b16 %v3083, %v3082
    %v3109 = vpack.c.b16 %v3085, %v3084
    %v3110 = vpack.c.b16 %v3087, %v3086
    %v3111 = vpack.c.b16 %v3089, %v3088
    %v3112 = vpack.c.b16 %v3091, %v3090
    %v3113 = vpack.c.b16 %v3093, %v3092
    %v3114 = vpack.c.b16 %v3095, %v3094
    %v3115 = vpack.c.b16 %v3097, %v3096
    %v3116 = vpack.c.b16 %v3099, %v3098
    %v3117 = vpack.c.b16 %v3101, %v3100
    %3134 = vmatprep.subr.bf16.mxu0 0
    %3135 = vmatpush1.bf16.msra.mxu0 %v3109
    %3136 = vmatprep.subr.bf16.mxu0 0
    %3137 = vmatpush1.bf16.msra.mxu0 %v3108
    %3138 = vmatprep.subr.bf16.mxu0 0
    %3139 = vmatpush1.bf16.msra.mxu0 %v3107
    %3140 = vmatprep.subr.bf16.mxu0 0
    %3141 = vmatpush1.bf16.msra.mxu0 %v3106
    %3142 = vmatprep.subr.bf16.mxu0 0
    %3143 = vmatpush1.bf16.msra.mxu0 %v3105
    %3144 = vmatprep.subr.bf16.mxu0 0
    %3145 = vmatpush1.bf16.msra.mxu0 %v3104
    %3146 = vmatprep.subr.bf16.mxu0 0
    %3147 = vmatpush1.bf16.msra.mxu0 %v3103
    %3148 = vmatprep.subr.bf16.mxu0 0
    %3149 = vmatpush1.bf16.msra.mxu0 %v3102
    %3150 = vmatprep.subr.bf16.mxu0 0
    %3151 = vmatpush2.bf16.msra.mxu0 %v3117
    %3152 = vmatprep.subr.bf16.mxu0 0
    %3153 = vmatpush2.bf16.msra.mxu0 %v3116
    %3154 = vmatprep.subr.bf16.mxu0 0
    %3155 = vmatpush2.bf16.msra.mxu0 %v3115
    %3156 = vmatprep.subr.bf16.mxu0 0
    %3157 = vmatpush2.bf16.msra.mxu0 %v3114
    %3158 = vmatprep.subr.bf16.mxu0 0
    %3159 = vmatpush2.bf16.msra.mxu0 %v3113
    %3160 = vmatprep.subr.bf16.mxu0 0
    %3161 = vmatpush2.bf16.msra.mxu0 %v3112
    %3162 = vmatprep.subr.bf16.mxu0 0
    %3163 = vmatpush2.bf16.msra.mxu0 %v3111
    %3164 = vmatprep.subr.bf16.mxu0 0
    %3165 = vmatpush2.bf16.msra.mxu0 %v3110
    %3166 = vmatprep.mubr.bf16.mxu0 %v2998
    %3167 = vmatmul.mubr.bf16.gmra.mxu0 %v2997
    %v3168 = vpop.f32.mrf.mxu0
    %v3169 = vadd.f32 %v3036, %v3168
    %v3170 = vpop.f32.mrf.mxu0
    %v3171 = vpop.f32.mrf.mxu0
    %v3172 = vpop.f32.mrf.mxu0
    %3173 = vdwg.mxu0
    %3174 = vst [vmem:[#allocation7] sm:$0x3] %v3169
    // Predicated region
    $region150: #{network_forward.1} parent=1 // pred_check
      _
    $region151: #{network_forward.1} parent=1 // pred_check_branch
      %3176 = sbr.rel (0) target = $region153
    $region152: #{network_forward.1} parent=1 // pred_region
      %s3178 = ssub.s32 32, 32
      %3179 = vsyncadd [#allocation4], %s3178
      %s3181 = sshll.u32 [#allocation7], 4
      %s3182 = int_to_ptr.vmem [resolvable:$true] %s3181
      %3184 = dma.vmem_to_hbm [thread:$0]  %s3182, 32, %s71, [#allocation4]
    $region153: #{network_forward.1} parent=1 // pred_fallthru
      _
    // Predicated region
    $region154: #{network_forward.1} parent=1 // pred_check
      _
    $region155: #{network_forward.1} parent=1 // pred_check_branch
      %3186 = sbr.rel (0) target = $region157
    $region156: #{network_forward.1} parent=1 // pred_region
      %3187 = dma.done [#allocation4], 32
    $region157: #{network_forward.1} parent=1 // pred_fallthru
      _
    %3188 = vsyncpa [#allocation3], 1
    %3189 = vsyncpa [#allocation6], 1
    %3190 = vsyncpa [#allocation4], 1

</llo_original>
